<compile_context>
chip_gen: v6e
topology: v6e:2x2x1
jax: 0.10.0
libtpu: 0.0.40
codegen_flags: <defaults>
</compile_context>

<pallas_src>
import jax
import jax.numpy as jnp
import numpy as np
from jax.experimental import pallas as pl
from jax.experimental.pallas import tpu as pltpu

VOCAB_SIZE = 256
EMBEDDING_DIM = 16
CONTEXT_SIZE = 8
HIDDEN = 128                                   # nn.Linear(context*emb_dim, 128)
IN_FEATURES = CONTEXT_SIZE * EMBEDDING_DIM     # 128
TILE_B = 256   # batch rows per grid step (multiple of 8; 256 fills the MXU M dim)


def ngram_kernel(idx_ref, ew_ref, b1_ref, w2_ref, b2_ref, out_ref):
    tb, ctx = idx_ref.shape                 # (TILE_B, CONTEXT_SIZE)
    vocab = out_ref.shape[-1]               # 256

    ids = idx_ref[...]                      # (tb, ctx) int32
    # Vocab iota along the lane axis, built once per tile (hoisted out of loop).
    vocab_iota = jax.lax.broadcasted_iota(jnp.int32, (tb, vocab), 1)

    # One-hot per context position (exact 0/1 in bf16; an out-of-range token
    # yields an all-zero row instead of reading adjacent memory), concatenated
    # along the lane axis (256 = 2 vregs per chunk -> lane-aligned concat).
    one_hots = []
    for c in range(ctx):                    # static, fully unrolled
        oh_c = (vocab_iota == ids[:, c:c + 1]).astype(jnp.float32)
        one_hots.append(oh_c.astype(jnp.bfloat16))
    oh = jnp.concatenate(one_hots, axis=1)  # (tb, ctx*vocab) bf16

    # Fused embedding gather + linear1: a single full-shaped MXU matmul
    # (K = ctx*vocab = 2048, N = HIDDEN = 128), f32 accumulation.
    acc = jnp.dot(oh, ew_ref[...], preferred_element_type=jnp.float32)  # (tb, 128)
    h = jnp.maximum(acc + b1_ref[...], 0.0)          # bias + ReLU in f32 (VPU)

    # linear2 on the MXU (bf16 operands, f32 accumulation).
    logits = jnp.dot(h.astype(jnp.bfloat16), w2_ref[...],
                     preferred_element_type=jnp.float32) + b2_ref[...]

    # Numerically-stable log_softmax over the vocab (lane) axis;
    # `shifted` is computed once and reused for both exp and output.
    m = jnp.max(logits, axis=1, keepdims=True)
    shifted = logits - m
    lse = jnp.log(jnp.sum(jnp.exp(shifted), axis=1, keepdims=True))
    out_ref[...] = (shifted - lse).astype(out_ref.dtype)


def ngram_forward(indices, emb, w1, b1, w2, b2, *, tile_b=TILE_B,
                  out_dtype=jnp.float32):
    """Batched forward: indices (B, CONTEXT_SIZE) int32 -> (B, VOCAB) log-probs."""
    B, ctx = indices.shape
    vocab, edim = emb.shape
    in_features, hidden = w1.shape
    assert ctx == CONTEXT_SIZE and in_features == ctx * edim

    # ---- fold the embedding into linear1 (exact up to f32 re-association) ----
    #   EW[c*V + v, :] = emb[v, :] @ w1[c*E:(c+1)*E, :]
    ew = jnp.einsum('ve,ceh->cvh', emb, w1.reshape(ctx, edim, hidden))
    ew = ew.reshape(ctx * vocab, hidden).astype(jnp.bfloat16)     # (2048, 128)
    w2_b = w2.astype(jnp.bfloat16)
    b1_f = b1.reshape(1, hidden).astype(jnp.float32)
    b2_f = b2.reshape(1, vocab).astype(jnp.float32)
    indices = indices.astype(jnp.int32)

    # ---- batch tiling: rows multiple of 8, keep >= 2 grid steps (v7x megacore) --
    def round_up(x, m):
        return ((x + m - 1) // m) * m

    tb = min(tile_b, round_up(B, 8))
    if B > 16 and round_up(B, 8) <= tb:     # batch would fit one step: split in two
        tb = max(8, round_up(pl.cdiv(B, 2), 8))
    b_pad = pl.cdiv(B, tb) * tb
    if b_pad != B:
        indices = jnp.pad(indices, ((0, b_pad - B), (0, 0)))   # pad rows = token 0
    grid = (b_pad // tb,)

    out_itemsize = jnp.dtype(out_dtype).itemsize
    cost = pl.CostEstimate(
        flops=int(b_pad * (2 * ctx * vocab * hidden + 2 * hidden * vocab)),
        transcendentals=int(b_pad * (vocab + 1)),
        bytes_accessed=int(ew.size * 2 + w2_b.size * 2
                           + (b1_f.size + b2_f.size) * 4
                           + indices.size * 4 + b_pad * vocab * out_itemsize))

    out = pl.pallas_call(
        ngram_kernel,
        out_shape=jax.ShapeDtypeStruct((b_pad, vocab), out_dtype),
        grid_spec=pltpu.PrefetchScalarGridSpec(
            num_scalar_prefetch=0,
            grid=grid,
            in_specs=[
                # index tile streams with the batch grid axis
                pl.BlockSpec((tb, ctx), lambda i: (i, 0)),
                # weights: constant index maps -> resident in VMEM across steps
                pl.BlockSpec(ew.shape, lambda i: (0, 0)),
                pl.BlockSpec(b1_f.shape, lambda i: (0, 0)),
                pl.BlockSpec(w2_b.shape, lambda i: (0, 0)),
                pl.BlockSpec(b2_f.shape, lambda i: (0, 0)),
            ],
            out_specs=pl.BlockSpec((tb, vocab), lambda i: (i, 0)),  # lane-dense
        ),
        compiler_params=pltpu.CompilerParams(
            dimension_semantics=("parallel",)),   # independent batch tiles
        cost_estimate=cost,
    )(indices, ew, b1_f, w2_b, b2_f)
    return out[:B]


def ngram_forward_single(indices_1d, emb, w1, b1, w2, b2):
    """Exact analogue of the module's forward: (CONTEXT_SIZE,) -> (1, vocab)."""
    return ngram_forward(indices_1d[None, :], emb, w1, b1, w2, b2)


def reference_forward(indices, emb, w1, b1, w2, b2):
    x = emb[indices].reshape(indices.shape[0], -1)    # per-row: view((1, -1))
    h = jnp.maximum(x @ w1 + b1, 0.0)
    logits = h @ w2 + b2
    return jax.nn.log_softmax(logits, axis=-1)


if __name__ == "__main__":
    key = jax.random.PRNGKey(0)
    k_emb, k_w1, k_b1, k_w2, k_b2, k_idx = jax.random.split(key, 6)

    # Deterministic synthetic parameters (shapes follow the module's __init__).
    emb = jax.random.normal(k_emb, (VOCAB_SIZE, EMBEDDING_DIM), jnp.float32) * 0.1
    # nn.Linear weights are (out, in); store transposed (in, out) for y = x @ W + b.
    w1 = jax.random.normal(k_w1, (IN_FEATURES, HIDDEN), jnp.float32) * 0.05
    b1 = jax.random.normal(k_b1, (1, HIDDEN), jnp.float32) * 0.05
    w2 = jax.random.normal(k_w2, (HIDDEN, VOCAB_SIZE), jnp.float32) * 0.05
    b2 = jax.random.normal(k_b2, (1, VOCAB_SIZE), jnp.float32) * 0.05

    # Batch of context windows (each row is one `inputs` of the module).
    B = 512
    indices = jax.random.randint(k_idx, (B, CONTEXT_SIZE), 0, VOCAB_SIZE, jnp.int32)

    log_probs = jax.block_until_ready(ngram_forward(indices, emb, w1, b1, w2, b2))
    ref = reference_forward(indices, emb, w1, b1, w2, b2)
    # bf16 MXU operands -> compare against the f32 reference with loose tolerance.
    np.testing.assert_allclose(np.asarray(log_probs), np.asarray(ref),
                               rtol=1e-2, atol=1e-2)
    assert log_probs.shape == (B, VOCAB_SIZE)

    # Single-context path matching the PyTorch module's signature exactly.
    single = jax.block_until_ready(
        ngram_forward_single(indices[0], emb, w1, b1, w2, b2))
    np.testing.assert_allclose(np.asarray(single), np.asarray(ref[0:1]),
                               rtol=1e-2, atol=1e-2)
    assert single.shape == (1, VOCAB_SIZE)

    # TODO(synk): nn.Embedding raises IndexError on out-of-range ids; the
    # one-hot gather here silently yields a zero embedding row instead.
    print("KERNEL_OK")
</pallas_src>

<mosaic_0001>
module attributes {stable_mosaic.version = 11 : i64} {
  func.func @ngram_kernel(%arg0: i32, %arg1: memref<256x8xi32, #tpu.memory_space<vmem>>, %arg2: memref<2048x128xbf16, #tpu.memory_space<vmem>>, %arg3: memref<1x128xf32, #tpu.memory_space<vmem>>, %arg4: memref<128x256xbf16, #tpu.memory_space<vmem>>, %arg5: memref<1x256xf32, #tpu.memory_space<vmem>>, %arg6: memref<256x256xf32, #tpu.memory_space<vmem>>) attributes {dimension_semantics = [#tpu.dimension_semantics<parallel>], iteration_bounds = array<i64: 2>, scalar_prefetch = 0 : i64, scratch_operands = 0 : i64, tpu.core_type = #tpu.core_type<tc>, window_params = [{transform_indices = @transform_0, window_bounds = array<i64: 256, 8>}, {pipeline_mode = #tpu.pipeline_mode<synchronous>, transform_indices = @transform_1, window_bounds = array<i64: 2048, 128>}, {pipeline_mode = #tpu.pipeline_mode<synchronous>, transform_indices = @transform_2, window_bounds = array<i64: 1, 128>}, {pipeline_mode = #tpu.pipeline_mode<synchronous>, transform_indices = @transform_3, window_bounds = array<i64: 128, 256>}, {pipeline_mode = #tpu.pipeline_mode<synchronous>, transform_indices = @transform_4, window_bounds = array<i64: 1, 256>}, {transform_indices = @transform_5, window_bounds = array<i64: 256, 256>}]} {
    %c0 = arith.constant 0 : index
    %c0_0 = arith.constant 0 : index
    %0 = vector.load %arg1[%c0, %c0_0] : memref<256x8xi32, #tpu.memory_space<vmem>>, vector<256x8xi32>
    %1 = tpu.iota {dimensions = array<i32: 1>} : vector<256x256xi32>
    %2 = vector.extract_strided_slice %0 {offsets = [0, 0], sizes = [256, 1], strides = [1, 1]} : vector<256x8xi32> to vector<256x1xi32>
    %3 = vector.broadcast %2 : vector<256x1xi32> to vector<256x256xi32>
    %4 = arith.cmpi eq, %1, %3 : vector<256x256xi32>
    %5 = arith.extui %4 : vector<256x256xi1> to vector<256x256xi32>
    %6 = arith.sitofp %5 : vector<256x256xi32> to vector<256x256xf32>
    %7 = arith.truncf %6 : vector<256x256xf32> to vector<256x256xbf16>
    %8 = vector.extract_strided_slice %0 {offsets = [0, 1], sizes = [256, 1], strides = [1, 1]} : vector<256x8xi32> to vector<256x1xi32>
    %9 = vector.broadcast %8 : vector<256x1xi32> to vector<256x256xi32>
    %10 = arith.cmpi eq, %1, %9 : vector<256x256xi32>
    %11 = arith.extui %10 : vector<256x256xi1> to vector<256x256xi32>
    %12 = arith.sitofp %11 : vector<256x256xi32> to vector<256x256xf32>
    %13 = arith.truncf %12 : vector<256x256xf32> to vector<256x256xbf16>
    %14 = vector.extract_strided_slice %0 {offsets = [0, 2], sizes = [256, 1], strides = [1, 1]} : vector<256x8xi32> to vector<256x1xi32>
    %15 = vector.broadcast %14 : vector<256x1xi32> to vector<256x256xi32>
    %16 = arith.cmpi eq, %1, %15 : vector<256x256xi32>
    %17 = arith.extui %16 : vector<256x256xi1> to vector<256x256xi32>
    %18 = arith.sitofp %17 : vector<256x256xi32> to vector<256x256xf32>
    %19 = arith.truncf %18 : vector<256x256xf32> to vector<256x256xbf16>
    %20 = vector.extract_strided_slice %0 {offsets = [0, 3], sizes = [256, 1], strides = [1, 1]} : vector<256x8xi32> to vector<256x1xi32>
    %21 = vector.broadcast %20 : vector<256x1xi32> to vector<256x256xi32>
    %22 = arith.cmpi eq, %1, %21 : vector<256x256xi32>
    %23 = arith.extui %22 : vector<256x256xi1> to vector<256x256xi32>
    %24 = arith.sitofp %23 : vector<256x256xi32> to vector<256x256xf32>
    %25 = arith.truncf %24 : vector<256x256xf32> to vector<256x256xbf16>
    %26 = vector.extract_strided_slice %0 {offsets = [0, 4], sizes = [256, 1], strides = [1, 1]} : vector<256x8xi32> to vector<256x1xi32>
    %27 = vector.broadcast %26 : vector<256x1xi32> to vector<256x256xi32>
    %28 = arith.cmpi eq, %1, %27 : vector<256x256xi32>
    %29 = arith.extui %28 : vector<256x256xi1> to vector<256x256xi32>
    %30 = arith.sitofp %29 : vector<256x256xi32> to vector<256x256xf32>
    %31 = arith.truncf %30 : vector<256x256xf32> to vector<256x256xbf16>
    %32 = vector.extract_strided_slice %0 {offsets = [0, 5], sizes = [256, 1], strides = [1, 1]} : vector<256x8xi32> to vector<256x1xi32>
    %33 = vector.broadcast %32 : vector<256x1xi32> to vector<256x256xi32>
    %34 = arith.cmpi eq, %1, %33 : vector<256x256xi32>
    %35 = arith.extui %34 : vector<256x256xi1> to vector<256x256xi32>
    %36 = arith.sitofp %35 : vector<256x256xi32> to vector<256x256xf32>
    %37 = arith.truncf %36 : vector<256x256xf32> to vector<256x256xbf16>
    %38 = vector.extract_strided_slice %0 {offsets = [0, 6], sizes = [256, 1], strides = [1, 1]} : vector<256x8xi32> to vector<256x1xi32>
    %39 = vector.broadcast %38 : vector<256x1xi32> to vector<256x256xi32>
    %40 = arith.cmpi eq, %1, %39 : vector<256x256xi32>
    %41 = arith.extui %40 : vector<256x256xi1> to vector<256x256xi32>
    %42 = arith.sitofp %41 : vector<256x256xi32> to vector<256x256xf32>
    %43 = arith.truncf %42 : vector<256x256xf32> to vector<256x256xbf16>
    %44 = vector.extract_strided_slice %0 {offsets = [0, 7], sizes = [256, 1], strides = [1, 1]} : vector<256x8xi32> to vector<256x1xi32>
    %45 = vector.broadcast %44 : vector<256x1xi32> to vector<256x256xi32>
    %46 = arith.cmpi eq, %1, %45 : vector<256x256xi32>
    %47 = arith.extui %46 : vector<256x256xi1> to vector<256x256xi32>
    %48 = arith.sitofp %47 : vector<256x256xi32> to vector<256x256xf32>
    %49 = arith.truncf %48 : vector<256x256xf32> to vector<256x256xbf16>
    %50 = tpu.concatenate %7, %13, %19, %25, %31, %37, %43, %49 in 1 : vector<256x256xbf16>, vector<256x256xbf16>, vector<256x256xbf16>, vector<256x256xbf16>, vector<256x256xbf16>, vector<256x256xbf16>, vector<256x256xbf16>, vector<256x256xbf16> -> vector<256x2048xbf16>
    %c0_1 = arith.constant 0 : index
    %c0_2 = arith.constant 0 : index
    %51 = vector.load %arg2[%c0_1, %c0_2] : memref<2048x128xbf16, #tpu.memory_space<vmem>>, vector<2048x128xbf16>
    %cst = arith.constant dense<0.000000e+00> : vector<256x128xf32>
    %52 = tpu.matmul %50, %51, %cst {dimension_numbers = #tpu.dot_dimension_numbers<[1], [0], [0], [1], [0, 0, 1, 1], [], []>} : vector<256x2048xbf16>, vector<2048x128xbf16>, vector<256x128xf32> -> vector<256x128xf32>
    %c0_3 = arith.constant 0 : index
    %c0_4 = arith.constant 0 : index
    %53 = vector.load %arg3[%c0_3, %c0_4] : memref<1x128xf32, #tpu.memory_space<vmem>>, vector<1x128xf32>
    %54 = vector.broadcast %53 : vector<1x128xf32> to vector<256x128xf32>
    %55 = arith.addf %52, %54 : vector<256x128xf32>
    %cst_5 = arith.constant 0.000000e+00 : f32
    %56 = vector.broadcast %cst_5 : f32 to vector<256x128xf32>
    %57 = arith.maximumf %55, %56 : vector<256x128xf32>
    %58 = arith.truncf %57 : vector<256x128xf32> to vector<256x128xbf16>
    %c0_6 = arith.constant 0 : index
    %c0_7 = arith.constant 0 : index
    %59 = vector.load %arg4[%c0_6, %c0_7] : memref<128x256xbf16, #tpu.memory_space<vmem>>, vector<128x256xbf16>
    %cst_8 = arith.constant dense<0.000000e+00> : vector<256x256xf32>
    %60 = tpu.matmul %58, %59, %cst_8 {dimension_numbers = #tpu.dot_dimension_numbers<[1], [0], [0], [1], [0, 0, 1, 1], [], []>} : vector<256x128xbf16>, vector<128x256xbf16>, vector<256x256xf32> -> vector<256x256xf32>
    %c0_9 = arith.constant 0 : index
    %c0_10 = arith.constant 0 : index
    %61 = vector.load %arg5[%c0_9, %c0_10] : memref<1x256xf32, #tpu.memory_space<vmem>>, vector<1x256xf32>
    %62 = vector.broadcast %61 : vector<1x256xf32> to vector<256x256xf32>
    %63 = arith.addf %60, %62 : vector<256x256xf32>
    %cst_11 = arith.constant dense<0xFF800000> : vector<256xf32>
    %64 = vector.multi_reduction <maximumf>, %63, %cst_11 [1] : vector<256x256xf32> to vector<256xf32>
    %65 = vector.shape_cast %64 : vector<256xf32> to vector<256x1xf32>
    %66 = vector.broadcast %65 : vector<256x1xf32> to vector<256x256xf32>
    %67 = arith.subf %63, %66 : vector<256x256xf32>
    %68 = math.exp %67 : vector<256x256xf32>
    %cst_12 = arith.constant dense<0.000000e+00> : vector<256xf32>
    %69 = vector.multi_reduction <add>, %68, %cst_12 [1] : vector<256x256xf32> to vector<256xf32>
    %70 = vector.shape_cast %69 : vector<256xf32> to vector<256x1xf32>
    %71 = math.log %70 : vector<256x1xf32>
    %72 = vector.broadcast %71 : vector<256x1xf32> to vector<256x256xf32>
    %73 = arith.subf %67, %72 : vector<256x256xf32>
    %c0_13 = arith.constant 0 : index
    %c0_14 = arith.constant 0 : index
    %74 = vector.load %arg6[%c0_13, %c0_14] : memref<256x256xf32, #tpu.memory_space<vmem>>, vector<256x256xf32>
    tpu.vector_store %arg6[%c0_13, %c0_14], %73 {strides = array<i32>} : memref<256x256xf32, #tpu.memory_space<vmem>>, vector<256x256xf32>,
    return
  }
  func.func @transform_0(%arg0: i32) -> (i32, i32) {
    %c0_i32 = arith.constant 0 : i32
    %c0_i32_0 = arith.constant 0 : i32
    return %arg0, %c0_i32 : i32, i32
  }
  func.func @transform_1(%arg0: i32) -> (i32, i32) {
    %c0_i32 = arith.constant 0 : i32
    %c0_i32_0 = arith.constant 0 : i32
    %c0_i32_1 = arith.constant 0 : i32
    return %c0_i32, %c0_i32_0 : i32, i32
  }
  func.func @transform_2(%arg0: i32) -> (i32, i32) {
    %c0_i32 = arith.constant 0 : i32
    %c0_i32_0 = arith.constant 0 : i32
    %c0_i32_1 = arith.constant 0 : i32
    return %c0_i32, %c0_i32_0 : i32, i32
  }
  func.func @transform_3(%arg0: i32) -> (i32, i32) {
    %c0_i32 = arith.constant 0 : i32
    %c0_i32_0 = arith.constant 0 : i32
    %c0_i32_1 = arith.constant 0 : i32
    return %c0_i32, %c0_i32_0 : i32, i32
  }
  func.func @transform_4(%arg0: i32) -> (i32, i32) {
    %c0_i32 = arith.constant 0 : i32
    %c0_i32_0 = arith.constant 0 : i32
    %c0_i32_1 = arith.constant 0 : i32
    return %c0_i32, %c0_i32_0 : i32, i32
  }
  func.func @transform_5(%arg0: i32) -> (i32, i32) {
    %c0_i32 = arith.constant 0 : i32
    %c0_i32_0 = arith.constant 0 : i32
    return %arg0, %c0_i32 : i32, i32
  }
}

</mosaic_0001>

<llo_original>
// kernel: tpu_custom_call.1
$region0: #{tpu_custom_call.1}
  #allocation0 [shape = 'u32[]', space=smem, size = 0x4, offset = 0x4, fixed_abs, tag = 'smem constant byte address 0x4 - core index']
  #allocation1 [shape = 'u32[144,128]{1,0:T(1,128)}', space=vmem, size = 0x12000, scoped, tag = 'internal scratch']
  %s0 = inlined_call_operand.vmem [shape: s32[512,8], index: 0, kind: input, shape index: {}]
  %s1 = inlined_call_operand.hbm [shape: bf16[2048,128], index: 1, kind: input, shape index: {}]
  %s2 = inlined_call_operand.vmem [shape: f32[1,128], index: 2, kind: input, shape index: {}]
  %s3 = inlined_call_operand.vmem [shape: bf16[128,256], index: 3, kind: input, shape index: {}]
  %s4 = inlined_call_operand.vmem [shape: f32[1,256], index: 4, kind: input, shape index: {}]
  %s5 = inlined_call_operand.hbm [shape: f32[512,256], index: 5, kind: output, shape index: {}]
  %s6 = sld [smem:[#allocation0]]
  $region57: #{tpu_custom_call.1} parent=0
    _
  %s8 = ssub.s32 1, %s6
  %s9 = scalar_select 0, %s8, %s6
  $region1: #{tpu_custom_call.1} parent=0
    #allocation2 [shape = 'u8[524288]{0}', space=vmem, size = 0x80000, scoped, tag = 'input window, operand 1, single buffered']
    #allocation3 [shape = 's32[2]{0}', space=sflag, size = 0x8, scoped, tag = 'scoped memory for tpu_custom_call.1']
    #allocation4 [shape = 's32[2]{0}', space=sflag, size = 0x8, scoped, tag = 'scoped memory for tpu_custom_call.1']
    #allocation5 [shape = 'u8[524288]{0}', space=vmem, size = 0x80000, scoped, tag = 'output window, operand 0']
    %10 = vsyncpa [#allocation3], 0
    %11 = vsyncpa [#allocation4], 0
    %s12 = scalar_lea.sflag [#allocation4], 1
    %13 = vsyncpa %s12, 0
    loop: start=0, step=1, limit=4
    $region2: #{tpu_custom_call.1} parent=1 // loop_pre_header
      _
    $region3: #{tpu_custom_call.1} parent=1 // loop_header
      %s15 = sphi 0, %s19
      %p16 = scmp.ge.s32.totalorder %s15, 4
      %s25 = sphi 0, %s27
      %s28 = sphi 0, %s25
      %s29 = sphi 0, %s28
      %s45 = sphi 0, %s29
      %s49 = sphi 0, %s49
      %s51 = sphi 0, %s49
      %s52 = sphi 0, %s51
      %s66 = sphi 0, %s52
      %s70 = sphi 0, %s70
      %s72 = sphi 0, %s70
      %s73 = sphi 0, %s72
      %s87 = sphi 0, %s73
      %s91 = sphi 0, %s91
      %s93 = sphi 0, %s91
      %s94 = sphi 0, %s93
      %s108 = sphi 0, %s94
      %s112 = sphi 0, %s112
      %s114 = sphi 0, %s112
      %s115 = sphi 0, %s114
      %s129 = sphi 0, %s115
      %s135 = sphi 0, %s137
      %s138 = sphi 0, %s135
      %s139 = sphi 0, %s138
      %s155 = sphi 0, %s139
    $region4: #{tpu_custom_call.1} parent=1 // loop_header_branch
      %18 = sbr.rel (%p16) target = $region8
    $region5: #{tpu_custom_call.1} parent=1 // loop_body
      %s20 = ssub.s32 %s15, 1
      %s21 = ssub.s32 %s15, 2
      %s22 = sadd.s32 %s15, 1
      %s23 = ssub.s32 %s15, %s22
      %p24 = scmp.eq.s32.totalorder %s23, 0
      %s26 = sadd.s32 %s25, 1
      %s27 = scalar_select %p24, %s25, %s26
      %p30 = pneg %p24
      %p31 = scmp.eq.s32.totalorder %s15, 1
      %p32 = por %p30, %p31
      %p33 = scmp.ne.s32.totalorder %s25, %s28
      %p34 = scmp.eq.s32.totalorder %s15, 0
      %p35 = por %p33, %p34
      %p36 = scmp.ne.s32.totalorder %s25, %s28
      %p37 = scmp.eq.s32.totalorder %s20, 1
      %p38 = por %p36, %p37
      %p39 = scmp.ne.s32.totalorder %s28, %s29
      %p40 = scmp.eq.s32.totalorder %s20, 0
      %p41 = por %p39, %p40
      %p42 = scmp.ne.s32.totalorder %s28, %s29
      %p43 = scmp.eq.s32.totalorder %s21, 1
      %p44 = por %p42, %p43
      %p46 = scmp.ne.s32.totalorder %s29, %s45
      %p47 = scmp.eq.s32.totalorder %s21, 0
      %p48 = por %p46, %p47
      %s50 = sadd.s32 %s49, 1
      %p53 = scmp.eq.s32.totalorder %s15, 1
      %p54 = scmp.ne.s32.totalorder %s49, %s51
      %p55 = scmp.eq.s32.totalorder %s15, 0
      %p56 = por %p54, %p55
      %p57 = scmp.ne.s32.totalorder %s49, %s51
      %p58 = scmp.eq.s32.totalorder %s20, 1
      %p59 = por %p57, %p58
      %p60 = scmp.ne.s32.totalorder %s51, %s52
      %p61 = scmp.eq.s32.totalorder %s20, 0
      %p62 = por %p60, %p61
      %p63 = scmp.ne.s32.totalorder %s51, %s52
      %p64 = scmp.eq.s32.totalorder %s21, 1
      %p65 = por %p63, %p64
      %p67 = scmp.ne.s32.totalorder %s52, %s66
      %p68 = scmp.eq.s32.totalorder %s21, 0
      %p69 = por %p67, %p68
      %s71 = sadd.s32 %s70, 1
      %p74 = scmp.eq.s32.totalorder %s15, 1
      %p75 = scmp.ne.s32.totalorder %s70, %s72
      %p76 = scmp.eq.s32.totalorder %s15, 0
      %p77 = por %p75, %p76
      %p78 = scmp.ne.s32.totalorder %s70, %s72
      %p79 = scmp.eq.s32.totalorder %s20, 1
      %p80 = por %p78, %p79
      %p81 = scmp.ne.s32.totalorder %s72, %s73
      %p82 = scmp.eq.s32.totalorder %s20, 0
      %p83 = por %p81, %p82
      %p84 = scmp.ne.s32.totalorder %s72, %s73
      %p85 = scmp.eq.s32.totalorder %s21, 1
      %p86 = por %p84, %p85
      %p88 = scmp.ne.s32.totalorder %s73, %s87
      %p89 = scmp.eq.s32.totalorder %s21, 0
      %p90 = por %p88, %p89
      %s92 = sadd.s32 %s91, 1
      %p95 = scmp.eq.s32.totalorder %s15, 1
      %p96 = scmp.ne.s32.totalorder %s91, %s93
      %p97 = scmp.eq.s32.totalorder %s15, 0
      %p98 = por %p96, %p97
      %p99 = scmp.ne.s32.totalorder %s91, %s93
      %p100 = scmp.eq.s32.totalorder %s20, 1
      %p101 = por %p99, %p100
      %p102 = scmp.ne.s32.totalorder %s93, %s94
      %p103 = scmp.eq.s32.totalorder %s20, 0
      %p104 = por %p102, %p103
      %p105 = scmp.ne.s32.totalorder %s93, %s94
      %p106 = scmp.eq.s32.totalorder %s21, 1
      %p107 = por %p105, %p106
      %p109 = scmp.ne.s32.totalorder %s94, %s108
      %p110 = scmp.eq.s32.totalorder %s21, 0
      %p111 = por %p109, %p110
      %s113 = sadd.s32 %s112, 1
      %p116 = scmp.eq.s32.totalorder %s15, 1
      %p117 = scmp.ne.s32.totalorder %s112, %s114
      %p118 = scmp.eq.s32.totalorder %s15, 0
      %p119 = por %p117, %p118
      %p120 = scmp.ne.s32.totalorder %s112, %s114
      %p121 = scmp.eq.s32.totalorder %s20, 1
      %p122 = por %p120, %p121
      %p123 = scmp.ne.s32.totalorder %s114, %s115
      %p124 = scmp.eq.s32.totalorder %s20, 0
      %p125 = por %p123, %p124
      %p126 = scmp.ne.s32.totalorder %s114, %s115
      %p127 = scmp.eq.s32.totalorder %s21, 1
      %p128 = por %p126, %p127
      %p130 = scmp.ne.s32.totalorder %s115, %s129
      %p131 = scmp.eq.s32.totalorder %s21, 0
      %p132 = por %p130, %p131
      %s133 = ssub.s32 %s15, %s22
      %p134 = scmp.eq.s32.totalorder %s133, 0
      %s136 = sadd.s32 %s135, 1
      %s137 = scalar_select %p134, %s135, %s136
      %p140 = pneg %p134
      %p141 = scmp.eq.s32.totalorder %s15, 1
      %p142 = por %p140, %p141
      %p143 = scmp.ne.s32.totalorder %s135, %s138
      %p144 = scmp.eq.s32.totalorder %s15, 0
      %p145 = por %p143, %p144
      %p146 = scmp.ne.s32.totalorder %s135, %s138
      %p147 = scmp.eq.s32.totalorder %s20, 1
      %p148 = por %p146, %p147
      %p149 = scmp.ne.s32.totalorder %s138, %s139
      %p150 = scmp.eq.s32.totalorder %s20, 0
      %p151 = por %p149, %p150
      %p152 = scmp.ne.s32.totalorder %s138, %s139
      %p153 = scmp.eq.s32.totalorder %s21, 1
      %p154 = por %p152, %p153
      %p156 = scmp.ne.s32.totalorder %s139, %s155
      %p157 = scmp.eq.s32.totalorder %s21, 0
      %p158 = por %p156, %p157
      %p159 = scmp.le.s32.totalorder 1, %s15
      %p160 = scmp.lt.s32.totalorder %s15, 3
      %p161 = pnand %p159, %p160
      %p162 = pneg %p161
      // Predicated region
      $region9: #{tpu_custom_call.1} parent=5 // pred_check
        _
      $region10: #{tpu_custom_call.1} parent=5 // pred_check_branch
        %164 = sbr.rel (%p161) target = $region12
      $region11: #{tpu_custom_call.1} parent=5 // pred_region
        %s165 = ssub.s32 %s15, 1
        // Predicated region
        $region13: #{tpu_custom_call.1} parent=11 // pred_check
          %p166 = pneg %p62
        $region14: #{tpu_custom_call.1} parent=11 // pred_check_branch
          %168 = sbr.rel (%p166) target = $region16
        $region15: #{tpu_custom_call.1} parent=11 // pred_region
          %s170 = ssub.s32 16384, 16384
          %171 = vsyncadd [#allocation3], %s170
          %s172 = sshll.u32 [#allocation2], 4
          %s173 = int_to_ptr.vmem [resolvable:$true] %s172
          %178 = dma.hbm_to_vmem [thread:$0]  %s1, 16384, %s173, [#allocation3], 64, 64, 4
        $region16: #{tpu_custom_call.1} parent=11 // pred_fallthru
          _
        // Predicated region
        $region17: #{tpu_custom_call.1} parent=11 // pred_check
          %p179 = pneg %p83
        $region18: #{tpu_custom_call.1} parent=11 // pred_check_branch
          %181 = sbr.rel (%p179) target = $region20
        $region19: #{tpu_custom_call.1} parent=11 // pred_region
          _
        $region20: #{tpu_custom_call.1} parent=11 // pred_fallthru
          _
        // Predicated region
        $region21: #{tpu_custom_call.1} parent=11 // pred_check
          %p182 = pneg %p104
        $region22: #{tpu_custom_call.1} parent=11 // pred_check_branch
          %184 = sbr.rel (%p182) target = $region24
        $region23: #{tpu_custom_call.1} parent=11 // pred_region
          _
        $region24: #{tpu_custom_call.1} parent=11 // pred_fallthru
          _
        // Predicated region
        $region25: #{tpu_custom_call.1} parent=11 // pred_check
          %p185 = pneg %p125
        $region26: #{tpu_custom_call.1} parent=11 // pred_check_branch
          %187 = sbr.rel (%p185) target = $region28
        $region27: #{tpu_custom_call.1} parent=11 // pred_region
          _
        $region28: #{tpu_custom_call.1} parent=11 // pred_fallthru
          _
      $region12: #{tpu_custom_call.1} parent=5 // pred_fallthru
        _
      %p188 = scmp.lt.s32.totalorder %s15, 2
      // Predicated region
      $region29: #{tpu_custom_call.1} parent=5 // pred_check
        %p189 = pneg %p188
      $region30: #{tpu_custom_call.1} parent=5 // pred_check_branch
        %191 = sbr.rel (%p189) target = $region32
      $region31: #{tpu_custom_call.1} parent=5 // pred_region
        // Predicated region
        $region33: #{tpu_custom_call.1} parent=31 // pred_check
          %p192 = pneg %p35
        $region34: #{tpu_custom_call.1} parent=31 // pred_check_branch
          %194 = sbr.rel (%p192) target = $region36
        $region35: #{tpu_custom_call.1} parent=31 // pred_region
          %s195 = smul.u32 32, %s15
          %p196 = scmp.lt.s32.totalorder %s195, 63
          %s197 = scalar_select %p196, %s195, 63
          %s198 = smul.addr %s197, 8
          %s199 = scalar_lea.vmem %s0, %s198
          %s200 = smul.u32 32, %s15
        $region36: #{tpu_custom_call.1} parent=31 // pred_fallthru
          _
      $region32: #{tpu_custom_call.1} parent=5 // pred_fallthru
        _
      %p201 = scmp.le.s32.totalorder 1, %s15
      %p202 = scmp.lt.s32.totalorder %s15, 3
      %p203 = pnand %p201, %p202
      %p204 = pneg %p203
      // Predicated region
      $region37: #{tpu_custom_call.1} parent=5 // pred_check
        _
      $region38: #{tpu_custom_call.1} parent=5 // pred_check_branch
        %206 = sbr.rel (%p203) target = $region40
      $region39: #{tpu_custom_call.1} parent=5 // pred_region
        %s207 = ssub.s32 %s15, 1
        // Predicated region
        $region41: #{tpu_custom_call.1} parent=39 // pred_check
          %p208 = pneg %p62
        $region42: #{tpu_custom_call.1} parent=39 // pred_check_branch
          %210 = sbr.rel (%p208) target = $region44
        $region43: #{tpu_custom_call.1} parent=39 // pred_region
          %211 = dma.done [#allocation3], 16384
        $region44: #{tpu_custom_call.1} parent=39 // pred_fallthru
          _
        %s212 = smul.u32 32, %s20
        %p213 = scmp.lt.s32.totalorder %s212, 63
        %s214 = scalar_select %p213, %s212, 63
        %s215 = smul.addr %s214, 8
        %s216 = scalar_lea.vmem %s0, %s215
        %p217 = pneg %p41
        %p218 = pneg %p38
        %p219 = pneg %p62
        %p220 = pneg %p59
        %p221 = pneg %p83
        %p222 = pneg %p80
        %p223 = pneg %p104
        %p224 = pneg %p101
        %p225 = pneg %p125
        %p226 = pneg %p122
        %p227 = pneg %p151
        %p228 = pneg %p148
        %s229 = sand.u32 %s138, 1
        %s230 = scalar_lea.sflag [#allocation4], %s229
        %s231 = sand.u32 %s138, 1
        %s232 = smul.addr %s231, 512
        %s233 = scalar_lea.vmem [#allocation5], %s232
        %s234 = smul.u32 32, %s20
        %p235 = scmp.lt.s32.totalorder %s234, 63
        %s236 = scalar_select %p235, %s234, 63
        %s237 = smul.addr %s236, 8
        %s238 = scalar_lea.vmem %s0, %s237
        %s239 = smul.u32 32, %s20
        %s240 = smul.u32 32, %s20
        %v242 = vld [vmem:[%s238] sm:$0xff]
        %v243 = vld [vmem:[%s238 + $0x8] sm:$0xff]
        %v244 = vld [vmem:[%s238 + $0x10] sm:$0xff]
        %v245 = vld [vmem:[%s238 + $0x18] sm:$0xff]
        %v246 = vld [vmem:[%s238 + $0x20] sm:$0xff]
        %v247 = vld [vmem:[%s238 + $0x28] sm:$0xff]
        %v248 = vld [vmem:[%s238 + $0x30] sm:$0xff]
        %v249 = vld [vmem:[%s238 + $0x38] sm:$0xff]
        %v250 = vld [vmem:[%s238 + $0x40] sm:$0xff]
        %v251 = vld [vmem:[%s238 + $0x48] sm:$0xff]
        %v252 = vld [vmem:[%s238 + $0x50] sm:$0xff]
        %v253 = vld [vmem:[%s238 + $0x58] sm:$0xff]
        %v254 = vld [vmem:[%s238 + $0x60] sm:$0xff]
        %v255 = vld [vmem:[%s238 + $0x68] sm:$0xff]
        %v256 = vld [vmem:[%s238 + $0x70] sm:$0xff]
        %v257 = vld [vmem:[%s238 + $0x78] sm:$0xff]
        %v258 = vld [vmem:[%s238 + $0x80] sm:$0xff]
        %v259 = vld [vmem:[%s238 + $0x88] sm:$0xff]
        %v260 = vld [vmem:[%s238 + $0x90] sm:$0xff]
        %v261 = vld [vmem:[%s238 + $0x98] sm:$0xff]
        %v262 = vld [vmem:[%s238 + $0xa0] sm:$0xff]
        %v263 = vld [vmem:[%s238 + $0xa8] sm:$0xff]
        %v264 = vld [vmem:[%s238 + $0xb0] sm:$0xff]
        %v265 = vld [vmem:[%s238 + $0xb8] sm:$0xff]
        %v266 = vld [vmem:[%s238 + $0xc0] sm:$0xff]
        %v267 = vld [vmem:[%s238 + $0xc8] sm:$0xff]
        %v268 = vld [vmem:[%s238 + $0xd0] sm:$0xff]
        %v269 = vld [vmem:[%s238 + $0xd8] sm:$0xff]
        %v270 = vld [vmem:[%s238 + $0xe0] sm:$0xff]
        %v271 = vld [vmem:[%s238 + $0xe8] sm:$0xff]
        %v272 = vld [vmem:[%s238 + $0xf0] sm:$0xff]
        %v273 = vld [vmem:[%s238 + $0xf8] sm:$0xff]
        %v274 = vlaneseq
        %v275 = vand.u32 %v274, 127
        %v276 = vadd.s32 %v275, 128
        %277 = vset.pattern.permute.xlu0 0
        %278 = vperm.xlu0 %277, %v242
        %v279 = vpop.permute.xlu0 %278
        %280 = vset.pattern.permute.xlu0 0
        %281 = vperm.xlu0 %280, %v243
        %v282 = vpop.permute.xlu0 %281
        %283 = vset.pattern.permute.xlu0 0
        %284 = vperm.xlu0 %283, %v244
        %v285 = vpop.permute.xlu0 %284
        %286 = vset.pattern.permute.xlu0 0
        %287 = vperm.xlu0 %286, %v245
        %v288 = vpop.permute.xlu0 %287
        %289 = vset.pattern.permute.xlu0 0
        %290 = vperm.xlu0 %289, %v246
        %v291 = vpop.permute.xlu0 %290
        %292 = vset.pattern.permute.xlu0 0
        %293 = vperm.xlu0 %292, %v247
        %v294 = vpop.permute.xlu0 %293
        %295 = vset.pattern.permute.xlu0 0
        %296 = vperm.xlu0 %295, %v248
        %v297 = vpop.permute.xlu0 %296
        %298 = vset.pattern.permute.xlu0 0
        %299 = vperm.xlu0 %298, %v249
        %v300 = vpop.permute.xlu0 %299
        %301 = vset.pattern.permute.xlu0 0
        %302 = vperm.xlu0 %301, %v250
        %v303 = vpop.permute.xlu0 %302
        %304 = vset.pattern.permute.xlu0 0
        %305 = vperm.xlu0 %304, %v251
        %v306 = vpop.permute.xlu0 %305
        %307 = vset.pattern.permute.xlu0 0
        %308 = vperm.xlu0 %307, %v252
        %v309 = vpop.permute.xlu0 %308
        %310 = vset.pattern.permute.xlu0 0
        %311 = vperm.xlu0 %310, %v253
        %v312 = vpop.permute.xlu0 %311
        %313 = vset.pattern.permute.xlu0 0
        %314 = vperm.xlu0 %313, %v254
        %v315 = vpop.permute.xlu0 %314
        %316 = vset.pattern.permute.xlu0 0
        %317 = vperm.xlu0 %316, %v255
        %v318 = vpop.permute.xlu0 %317
        %319 = vset.pattern.permute.xlu0 0
        %320 = vperm.xlu0 %319, %v256
        %v321 = vpop.permute.xlu0 %320
        %322 = vset.pattern.permute.xlu0 0
        %323 = vperm.xlu0 %322, %v257
        %v324 = vpop.permute.xlu0 %323
        %325 = vset.pattern.permute.xlu0 0
        %326 = vperm.xlu0 %325, %v258
        %v327 = vpop.permute.xlu0 %326
        %328 = vset.pattern.permute.xlu0 0
        %329 = vperm.xlu0 %328, %v259
        %v330 = vpop.permute.xlu0 %329
        %331 = vset.pattern.permute.xlu0 0
        %332 = vperm.xlu0 %331, %v260
        %v333 = vpop.permute.xlu0 %332
        %334 = vset.pattern.permute.xlu0 0
        %335 = vperm.xlu0 %334, %v261
        %v336 = vpop.permute.xlu0 %335
        %337 = vset.pattern.permute.xlu0 0
        %338 = vperm.xlu0 %337, %v262
        %v339 = vpop.permute.xlu0 %338
        %340 = vset.pattern.permute.xlu0 0
        %341 = vperm.xlu0 %340, %v263
        %v342 = vpop.permute.xlu0 %341
        %343 = vset.pattern.permute.xlu0 0
        %344 = vperm.xlu0 %343, %v264
        %v345 = vpop.permute.xlu0 %344
        %346 = vset.pattern.permute.xlu0 0
        %347 = vperm.xlu0 %346, %v265
        %v348 = vpop.permute.xlu0 %347
        %349 = vset.pattern.permute.xlu0 0
        %350 = vperm.xlu0 %349, %v266
        %v351 = vpop.permute.xlu0 %350
        %352 = vset.pattern.permute.xlu0 0
        %353 = vperm.xlu0 %352, %v267
        %v354 = vpop.permute.xlu0 %353
        %355 = vset.pattern.permute.xlu0 0
        %356 = vperm.xlu0 %355, %v268
        %v357 = vpop.permute.xlu0 %356
        %358 = vset.pattern.permute.xlu0 0
        %359 = vperm.xlu0 %358, %v269
        %v360 = vpop.permute.xlu0 %359
        %361 = vset.pattern.permute.xlu0 0
        %362 = vperm.xlu0 %361, %v270
        %v363 = vpop.permute.xlu0 %362
        %364 = vset.pattern.permute.xlu0 0
        %365 = vperm.xlu0 %364, %v271
        %v366 = vpop.permute.xlu0 %365
        %367 = vset.pattern.permute.xlu0 0
        %368 = vperm.xlu0 %367, %v272
        %v369 = vpop.permute.xlu0 %368
        %370 = vset.pattern.permute.xlu0 0
        %371 = vperm.xlu0 %370, %v273
        %v372 = vpop.permute.xlu0 %371
        %vm373 = vcmp.eq.s32.totalorder %v275, %v279
        %vm374 = vcmp.eq.s32.totalorder %v276, %v279
        %vm375 = vcmp.eq.s32.totalorder %v275, %v282
        %vm376 = vcmp.eq.s32.totalorder %v276, %v282
        %vm377 = vcmp.eq.s32.totalorder %v275, %v285
        %vm378 = vcmp.eq.s32.totalorder %v276, %v285
        %vm379 = vcmp.eq.s32.totalorder %v275, %v288
        %vm380 = vcmp.eq.s32.totalorder %v276, %v288
        %vm381 = vcmp.eq.s32.totalorder %v275, %v291
        %vm382 = vcmp.eq.s32.totalorder %v276, %v291
        %vm383 = vcmp.eq.s32.totalorder %v275, %v294
        %vm384 = vcmp.eq.s32.totalorder %v276, %v294
        %vm385 = vcmp.eq.s32.totalorder %v275, %v297
        %vm386 = vcmp.eq.s32.totalorder %v276, %v297
        %vm387 = vcmp.eq.s32.totalorder %v275, %v300
        %vm388 = vcmp.eq.s32.totalorder %v276, %v300
        %vm389 = vcmp.eq.s32.totalorder %v275, %v303
        %vm390 = vcmp.eq.s32.totalorder %v276, %v303
        %vm391 = vcmp.eq.s32.totalorder %v275, %v306
        %vm392 = vcmp.eq.s32.totalorder %v276, %v306
        %vm393 = vcmp.eq.s32.totalorder %v275, %v309
        %vm394 = vcmp.eq.s32.totalorder %v276, %v309
        %vm395 = vcmp.eq.s32.totalorder %v275, %v312
        %vm396 = vcmp.eq.s32.totalorder %v276, %v312
        %vm397 = vcmp.eq.s32.totalorder %v275, %v315
        %vm398 = vcmp.eq.s32.totalorder %v276, %v315
        %vm399 = vcmp.eq.s32.totalorder %v275, %v318
        %vm400 = vcmp.eq.s32.totalorder %v276, %v318
        %vm401 = vcmp.eq.s32.totalorder %v275, %v321
        %vm402 = vcmp.eq.s32.totalorder %v276, %v321
        %vm403 = vcmp.eq.s32.totalorder %v275, %v324
        %vm404 = vcmp.eq.s32.totalorder %v276, %v324
        %vm405 = vcmp.eq.s32.totalorder %v275, %v327
        %vm406 = vcmp.eq.s32.totalorder %v276, %v327
        %vm407 = vcmp.eq.s32.totalorder %v275, %v330
        %vm408 = vcmp.eq.s32.totalorder %v276, %v330
        %vm409 = vcmp.eq.s32.totalorder %v275, %v333
        %vm410 = vcmp.eq.s32.totalorder %v276, %v333
        %vm411 = vcmp.eq.s32.totalorder %v275, %v336
        %vm412 = vcmp.eq.s32.totalorder %v276, %v336
        %vm413 = vcmp.eq.s32.totalorder %v275, %v339
        %vm414 = vcmp.eq.s32.totalorder %v276, %v339
        %vm415 = vcmp.eq.s32.totalorder %v275, %v342
        %vm416 = vcmp.eq.s32.totalorder %v276, %v342
        %vm417 = vcmp.eq.s32.totalorder %v275, %v345
        %vm418 = vcmp.eq.s32.totalorder %v276, %v345
        %vm419 = vcmp.eq.s32.totalorder %v275, %v348
        %vm420 = vcmp.eq.s32.totalorder %v276, %v348
        %vm421 = vcmp.eq.s32.totalorder %v275, %v351
        %vm422 = vcmp.eq.s32.totalorder %v276, %v351
        %vm423 = vcmp.eq.s32.totalorder %v275, %v354
        %vm424 = vcmp.eq.s32.totalorder %v276, %v354
        %vm425 = vcmp.eq.s32.totalorder %v275, %v357
        %vm426 = vcmp.eq.s32.totalorder %v276, %v357
        %vm427 = vcmp.eq.s32.totalorder %v275, %v360
        %vm428 = vcmp.eq.s32.totalorder %v276, %v360
        %vm429 = vcmp.eq.s32.totalorder %v275, %v363
        %vm430 = vcmp.eq.s32.totalorder %v276, %v363
        %vm431 = vcmp.eq.s32.totalorder %v275, %v366
        %vm432 = vcmp.eq.s32.totalorder %v276, %v366
        %vm433 = vcmp.eq.s32.totalorder %v275, %v369
        %vm434 = vcmp.eq.s32.totalorder %v276, %v369
        %vm435 = vcmp.eq.s32.totalorder %v275, %v372
        %vm436 = vcmp.eq.s32.totalorder %v276, %v372
        %v437 = vsel %vm373, 1, 0
        %v438 = vsel %vm374, 1, 0
        %v439 = vsel %vm375, 1, 0
        %v440 = vsel %vm376, 1, 0
        %v441 = vsel %vm377, 1, 0
        %v442 = vsel %vm378, 1, 0
        %v443 = vsel %vm379, 1, 0
        %v444 = vsel %vm380, 1, 0
        %v445 = vsel %vm381, 1, 0
        %v446 = vsel %vm382, 1, 0
        %v447 = vsel %vm383, 1, 0
        %v448 = vsel %vm384, 1, 0
        %v449 = vsel %vm385, 1, 0
        %v450 = vsel %vm386, 1, 0
        %v451 = vsel %vm387, 1, 0
        %v452 = vsel %vm388, 1, 0
        %v453 = vsel %vm389, 1, 0
        %v454 = vsel %vm390, 1, 0
        %v455 = vsel %vm391, 1, 0
        %v456 = vsel %vm392, 1, 0
        %v457 = vsel %vm393, 1, 0
        %v458 = vsel %vm394, 1, 0
        %v459 = vsel %vm395, 1, 0
        %v460 = vsel %vm396, 1, 0
        %v461 = vsel %vm397, 1, 0
        %v462 = vsel %vm398, 1, 0
        %v463 = vsel %vm399, 1, 0
        %v464 = vsel %vm400, 1, 0
        %v465 = vsel %vm401, 1, 0
        %v466 = vsel %vm402, 1, 0
        %v467 = vsel %vm403, 1, 0
        %v468 = vsel %vm404, 1, 0
        %v469 = vsel %vm405, 1, 0
        %v470 = vsel %vm406, 1, 0
        %v471 = vsel %vm407, 1, 0
        %v472 = vsel %vm408, 1, 0
        %v473 = vsel %vm409, 1, 0
        %v474 = vsel %vm410, 1, 0
        %v475 = vsel %vm411, 1, 0
        %v476 = vsel %vm412, 1, 0
        %v477 = vsel %vm413, 1, 0
        %v478 = vsel %vm414, 1, 0
        %v479 = vsel %vm415, 1, 0
        %v480 = vsel %vm416, 1, 0
        %v481 = vsel %vm417, 1, 0
        %v482 = vsel %vm418, 1, 0
        %v483 = vsel %vm419, 1, 0
        %v484 = vsel %vm420, 1, 0
        %v485 = vsel %vm421, 1, 0
        %v486 = vsel %vm422, 1, 0
        %v487 = vsel %vm423, 1, 0
        %v488 = vsel %vm424, 1, 0
        %v489 = vsel %vm425, 1, 0
        %v490 = vsel %vm426, 1, 0
        %v491 = vsel %vm427, 1, 0
        %v492 = vsel %vm428, 1, 0
        %v493 = vsel %vm429, 1, 0
        %v494 = vsel %vm430, 1, 0
        %v495 = vsel %vm431, 1, 0
        %v496 = vsel %vm432, 1, 0
        %v497 = vsel %vm433, 1, 0
        %v498 = vsel %vm434, 1, 0
        %v499 = vsel %vm435, 1, 0
        %v500 = vsel %vm436, 1, 0
        %v501 = vcvt.s32.f32 %v437
        %v502 = vcvt.s32.f32 %v438
        %v503 = vcvt.s32.f32 %v439
        %v504 = vcvt.s32.f32 %v440
        %v505 = vcvt.s32.f32 %v441
        %v506 = vcvt.s32.f32 %v442
        %v507 = vcvt.s32.f32 %v443
        %v508 = vcvt.s32.f32 %v444
        %v509 = vcvt.s32.f32 %v445
        %v510 = vcvt.s32.f32 %v446
        %v511 = vcvt.s32.f32 %v447
        %v512 = vcvt.s32.f32 %v448
        %v513 = vcvt.s32.f32 %v449
        %v514 = vcvt.s32.f32 %v450
        %v515 = vcvt.s32.f32 %v451
        %v516 = vcvt.s32.f32 %v452
        %v517 = vcvt.s32.f32 %v453
        %v518 = vcvt.s32.f32 %v454
        %v519 = vcvt.s32.f32 %v455
        %v520 = vcvt.s32.f32 %v456
        %v521 = vcvt.s32.f32 %v457
        %v522 = vcvt.s32.f32 %v458
        %v523 = vcvt.s32.f32 %v459
        %v524 = vcvt.s32.f32 %v460
        %v525 = vcvt.s32.f32 %v461
        %v526 = vcvt.s32.f32 %v462
        %v527 = vcvt.s32.f32 %v463
        %v528 = vcvt.s32.f32 %v464
        %v529 = vcvt.s32.f32 %v465
        %v530 = vcvt.s32.f32 %v466
        %v531 = vcvt.s32.f32 %v467
        %v532 = vcvt.s32.f32 %v468
        %v533 = vcvt.s32.f32 %v469
        %v534 = vcvt.s32.f32 %v470
        %v535 = vcvt.s32.f32 %v471
        %v536 = vcvt.s32.f32 %v472
        %v537 = vcvt.s32.f32 %v473
        %v538 = vcvt.s32.f32 %v474
        %v539 = vcvt.s32.f32 %v475
        %v540 = vcvt.s32.f32 %v476
        %v541 = vcvt.s32.f32 %v477
        %v542 = vcvt.s32.f32 %v478
        %v543 = vcvt.s32.f32 %v479
        %v544 = vcvt.s32.f32 %v480
        %v545 = vcvt.s32.f32 %v481
        %v546 = vcvt.s32.f32 %v482
        %v547 = vcvt.s32.f32 %v483
        %v548 = vcvt.s32.f32 %v484
        %v549 = vcvt.s32.f32 %v485
        %v550 = vcvt.s32.f32 %v486
        %v551 = vcvt.s32.f32 %v487
        %v552 = vcvt.s32.f32 %v488
        %v553 = vcvt.s32.f32 %v489
        %v554 = vcvt.s32.f32 %v490
        %v555 = vcvt.s32.f32 %v491
        %v556 = vcvt.s32.f32 %v492
        %v557 = vcvt.s32.f32 %v493
        %v558 = vcvt.s32.f32 %v494
        %v559 = vcvt.s32.f32 %v495
        %v560 = vcvt.s32.f32 %v496
        %v561 = vcvt.s32.f32 %v497
        %v562 = vcvt.s32.f32 %v498
        %v563 = vcvt.s32.f32 %v499
        %v564 = vcvt.s32.f32 %v500
        %v565 = vpack.c.bf16 %v503, %v501
        %v566 = vpack.c.bf16 %v504, %v502
        %v567 = vpack.c.bf16 %v507, %v505
        %v568 = vpack.c.bf16 %v508, %v506
        %v569 = vpack.c.bf16 %v511, %v509
        %v570 = vpack.c.bf16 %v512, %v510
        %v571 = vpack.c.bf16 %v515, %v513
        %v572 = vpack.c.bf16 %v516, %v514
        %v573 = vpack.c.bf16 %v519, %v517
        %v574 = vpack.c.bf16 %v520, %v518
        %v575 = vpack.c.bf16 %v523, %v521
        %v576 = vpack.c.bf16 %v524, %v522
        %v577 = vpack.c.bf16 %v527, %v525
        %v578 = vpack.c.bf16 %v528, %v526
        %v579 = vpack.c.bf16 %v531, %v529
        %v580 = vpack.c.bf16 %v532, %v530
        %v581 = vpack.c.bf16 %v535, %v533
        %v582 = vpack.c.bf16 %v536, %v534
        %v583 = vpack.c.bf16 %v539, %v537
        %v584 = vpack.c.bf16 %v540, %v538
        %v585 = vpack.c.bf16 %v543, %v541
        %v586 = vpack.c.bf16 %v544, %v542
        %v587 = vpack.c.bf16 %v547, %v545
        %v588 = vpack.c.bf16 %v548, %v546
        %v589 = vpack.c.bf16 %v551, %v549
        %v590 = vpack.c.bf16 %v552, %v550
        %v591 = vpack.c.bf16 %v555, %v553
        %v592 = vpack.c.bf16 %v556, %v554
        %v593 = vpack.c.bf16 %v559, %v557
        %v594 = vpack.c.bf16 %v560, %v558
        %v595 = vpack.c.bf16 %v563, %v561
        %v596 = vpack.c.bf16 %v564, %v562
        %597 = vset.pattern.permute.xlu0 1
        %598 = vperm.xlu0 %597, %v242
        %v599 = vpop.permute.xlu0 %598
        %600 = vset.pattern.permute.xlu0 1
        %601 = vperm.xlu0 %600, %v243
        %v602 = vpop.permute.xlu0 %601
        %603 = vset.pattern.permute.xlu0 1
        %604 = vperm.xlu0 %603, %v244
        %v605 = vpop.permute.xlu0 %604
        %606 = vset.pattern.permute.xlu0 1
        %607 = vperm.xlu0 %606, %v245
        %v608 = vpop.permute.xlu0 %607
        %609 = vset.pattern.permute.xlu0 1
        %610 = vperm.xlu0 %609, %v246
        %v611 = vpop.permute.xlu0 %610
        %612 = vset.pattern.permute.xlu0 1
        %613 = vperm.xlu0 %612, %v247
        %v614 = vpop.permute.xlu0 %613
        %615 = vset.pattern.permute.xlu0 1
        %616 = vperm.xlu0 %615, %v248
        %v617 = vpop.permute.xlu0 %616
        %618 = vset.pattern.permute.xlu0 1
        %619 = vperm.xlu0 %618, %v249
        %v620 = vpop.permute.xlu0 %619
        %621 = vset.pattern.permute.xlu0 1
        %622 = vperm.xlu0 %621, %v250
        %v623 = vpop.permute.xlu0 %622
        %624 = vset.pattern.permute.xlu0 1
        %625 = vperm.xlu0 %624, %v251
        %v626 = vpop.permute.xlu0 %625
        %627 = vset.pattern.permute.xlu0 1
        %628 = vperm.xlu0 %627, %v252
        %v629 = vpop.permute.xlu0 %628
        %630 = vset.pattern.permute.xlu0 1
        %631 = vperm.xlu0 %630, %v253
        %v632 = vpop.permute.xlu0 %631
        %633 = vset.pattern.permute.xlu0 1
        %634 = vperm.xlu0 %633, %v254
        %v635 = vpop.permute.xlu0 %634
        %636 = vset.pattern.permute.xlu0 1
        %637 = vperm.xlu0 %636, %v255
        %v638 = vpop.permute.xlu0 %637
        %639 = vset.pattern.permute.xlu0 1
        %640 = vperm.xlu0 %639, %v256
        %v641 = vpop.permute.xlu0 %640
        %642 = vset.pattern.permute.xlu0 1
        %643 = vperm.xlu0 %642, %v257
        %v644 = vpop.permute.xlu0 %643
        %645 = vset.pattern.permute.xlu0 1
        %646 = vperm.xlu0 %645, %v258
        %v647 = vpop.permute.xlu0 %646
        %648 = vset.pattern.permute.xlu0 1
        %649 = vperm.xlu0 %648, %v259
        %v650 = vpop.permute.xlu0 %649
        %651 = vset.pattern.permute.xlu0 1
        %652 = vperm.xlu0 %651, %v260
        %v653 = vpop.permute.xlu0 %652
        %654 = vset.pattern.permute.xlu0 1
        %655 = vperm.xlu0 %654, %v261
        %v656 = vpop.permute.xlu0 %655
        %657 = vset.pattern.permute.xlu0 1
        %658 = vperm.xlu0 %657, %v262
        %v659 = vpop.permute.xlu0 %658
        %660 = vset.pattern.permute.xlu0 1
        %661 = vperm.xlu0 %660, %v263
        %v662 = vpop.permute.xlu0 %661
        %663 = vset.pattern.permute.xlu0 1
        %664 = vperm.xlu0 %663, %v264
        %v665 = vpop.permute.xlu0 %664
        %666 = vset.pattern.permute.xlu0 1
        %667 = vperm.xlu0 %666, %v265
        %v668 = vpop.permute.xlu0 %667
        %669 = vset.pattern.permute.xlu0 1
        %670 = vperm.xlu0 %669, %v266
        %v671 = vpop.permute.xlu0 %670
        %672 = vset.pattern.permute.xlu0 1
        %673 = vperm.xlu0 %672, %v267
        %v674 = vpop.permute.xlu0 %673
        %675 = vset.pattern.permute.xlu0 1
        %676 = vperm.xlu0 %675, %v268
        %v677 = vpop.permute.xlu0 %676
        %678 = vset.pattern.permute.xlu0 1
        %679 = vperm.xlu0 %678, %v269
        %v680 = vpop.permute.xlu0 %679
        %681 = vset.pattern.permute.xlu0 1
        %682 = vperm.xlu0 %681, %v270
        %v683 = vpop.permute.xlu0 %682
        %684 = vset.pattern.permute.xlu0 1
        %685 = vperm.xlu0 %684, %v271
        %v686 = vpop.permute.xlu0 %685
        %687 = vset.pattern.permute.xlu0 1
        %688 = vperm.xlu0 %687, %v272
        %v689 = vpop.permute.xlu0 %688
        %690 = vset.pattern.permute.xlu0 1
        %691 = vperm.xlu0 %690, %v273
        %v692 = vpop.permute.xlu0 %691
        %vm693 = vcmp.eq.s32.totalorder %v275, %v599
        %vm694 = vcmp.eq.s32.totalorder %v276, %v599
        %vm695 = vcmp.eq.s32.totalorder %v275, %v602
        %vm696 = vcmp.eq.s32.totalorder %v276, %v602
        %vm697 = vcmp.eq.s32.totalorder %v275, %v605
        %vm698 = vcmp.eq.s32.totalorder %v276, %v605
        %vm699 = vcmp.eq.s32.totalorder %v275, %v608
        %vm700 = vcmp.eq.s32.totalorder %v276, %v608
        %vm701 = vcmp.eq.s32.totalorder %v275, %v611
        %vm702 = vcmp.eq.s32.totalorder %v276, %v611
        %vm703 = vcmp.eq.s32.totalorder %v275, %v614
        %vm704 = vcmp.eq.s32.totalorder %v276, %v614
        %vm705 = vcmp.eq.s32.totalorder %v275, %v617
        %vm706 = vcmp.eq.s32.totalorder %v276, %v617
        %vm707 = vcmp.eq.s32.totalorder %v275, %v620
        %vm708 = vcmp.eq.s32.totalorder %v276, %v620
        %vm709 = vcmp.eq.s32.totalorder %v275, %v623
        %vm710 = vcmp.eq.s32.totalorder %v276, %v623
        %vm711 = vcmp.eq.s32.totalorder %v275, %v626
        %vm712 = vcmp.eq.s32.totalorder %v276, %v626
        %vm713 = vcmp.eq.s32.totalorder %v275, %v629
        %vm714 = vcmp.eq.s32.totalorder %v276, %v629
        %vm715 = vcmp.eq.s32.totalorder %v275, %v632
        %vm716 = vcmp.eq.s32.totalorder %v276, %v632
        %vm717 = vcmp.eq.s32.totalorder %v275, %v635
        %vm718 = vcmp.eq.s32.totalorder %v276, %v635
        %vm719 = vcmp.eq.s32.totalorder %v275, %v638
        %vm720 = vcmp.eq.s32.totalorder %v276, %v638
        %vm721 = vcmp.eq.s32.totalorder %v275, %v641
        %vm722 = vcmp.eq.s32.totalorder %v276, %v641
        %vm723 = vcmp.eq.s32.totalorder %v275, %v644
        %vm724 = vcmp.eq.s32.totalorder %v276, %v644
        %vm725 = vcmp.eq.s32.totalorder %v275, %v647
        %vm726 = vcmp.eq.s32.totalorder %v276, %v647
        %vm727 = vcmp.eq.s32.totalorder %v275, %v650
        %vm728 = vcmp.eq.s32.totalorder %v276, %v650
        %vm729 = vcmp.eq.s32.totalorder %v275, %v653
        %vm730 = vcmp.eq.s32.totalorder %v276, %v653
        %vm731 = vcmp.eq.s32.totalorder %v275, %v656
        %vm732 = vcmp.eq.s32.totalorder %v276, %v656
        %vm733 = vcmp.eq.s32.totalorder %v275, %v659
        %vm734 = vcmp.eq.s32.totalorder %v276, %v659
        %vm735 = vcmp.eq.s32.totalorder %v275, %v662
        %vm736 = vcmp.eq.s32.totalorder %v276, %v662
        %vm737 = vcmp.eq.s32.totalorder %v275, %v665
        %vm738 = vcmp.eq.s32.totalorder %v276, %v665
        %vm739 = vcmp.eq.s32.totalorder %v275, %v668
        %vm740 = vcmp.eq.s32.totalorder %v276, %v668
        %vm741 = vcmp.eq.s32.totalorder %v275, %v671
        %vm742 = vcmp.eq.s32.totalorder %v276, %v671
        %vm743 = vcmp.eq.s32.totalorder %v275, %v674
        %vm744 = vcmp.eq.s32.totalorder %v276, %v674
        %vm745 = vcmp.eq.s32.totalorder %v275, %v677
        %vm746 = vcmp.eq.s32.totalorder %v276, %v677
        %vm747 = vcmp.eq.s32.totalorder %v275, %v680
        %vm748 = vcmp.eq.s32.totalorder %v276, %v680
        %vm749 = vcmp.eq.s32.totalorder %v275, %v683
        %vm750 = vcmp.eq.s32.totalorder %v276, %v683
        %vm751 = vcmp.eq.s32.totalorder %v275, %v686
        %vm752 = vcmp.eq.s32.totalorder %v276, %v686
        %vm753 = vcmp.eq.s32.totalorder %v275, %v689
        %vm754 = vcmp.eq.s32.totalorder %v276, %v689
        %vm755 = vcmp.eq.s32.totalorder %v275, %v692
        %vm756 = vcmp.eq.s32.totalorder %v276, %v692
        %v757 = vsel %vm693, 1, 0
        %v758 = vsel %vm694, 1, 0
        %v759 = vsel %vm695, 1, 0
        %v760 = vsel %vm696, 1, 0
        %v761 = vsel %vm697, 1, 0
        %v762 = vsel %vm698, 1, 0
        %v763 = vsel %vm699, 1, 0
        %v764 = vsel %vm700, 1, 0
        %v765 = vsel %vm701, 1, 0
        %v766 = vsel %vm702, 1, 0
        %v767 = vsel %vm703, 1, 0
        %v768 = vsel %vm704, 1, 0
        %v769 = vsel %vm705, 1, 0
        %v770 = vsel %vm706, 1, 0
        %v771 = vsel %vm707, 1, 0
        %v772 = vsel %vm708, 1, 0
        %v773 = vsel %vm709, 1, 0
        %v774 = vsel %vm710, 1, 0
        %v775 = vsel %vm711, 1, 0
        %v776 = vsel %vm712, 1, 0
        %v777 = vsel %vm713, 1, 0
        %v778 = vsel %vm714, 1, 0
        %v779 = vsel %vm715, 1, 0
        %v780 = vsel %vm716, 1, 0
        %v781 = vsel %vm717, 1, 0
        %v782 = vsel %vm718, 1, 0
        %v783 = vsel %vm719, 1, 0
        %v784 = vsel %vm720, 1, 0
        %v785 = vsel %vm721, 1, 0
        %v786 = vsel %vm722, 1, 0
        %v787 = vsel %vm723, 1, 0
        %v788 = vsel %vm724, 1, 0
        %v789 = vsel %vm725, 1, 0
        %v790 = vsel %vm726, 1, 0
        %v791 = vsel %vm727, 1, 0
        %v792 = vsel %vm728, 1, 0
        %v793 = vsel %vm729, 1, 0
        %v794 = vsel %vm730, 1, 0
        %v795 = vsel %vm731, 1, 0
        %v796 = vsel %vm732, 1, 0
        %v797 = vsel %vm733, 1, 0
        %v798 = vsel %vm734, 1, 0
        %v799 = vsel %vm735, 1, 0
        %v800 = vsel %vm736, 1, 0
        %v801 = vsel %vm737, 1, 0
        %v802 = vsel %vm738, 1, 0
        %v803 = vsel %vm739, 1, 0
        %v804 = vsel %vm740, 1, 0
        %v805 = vsel %vm741, 1, 0
        %v806 = vsel %vm742, 1, 0
        %v807 = vsel %vm743, 1, 0
        %v808 = vsel %vm744, 1, 0
        %v809 = vsel %vm745, 1, 0
        %v810 = vsel %vm746, 1, 0
        %v811 = vsel %vm747, 1, 0
        %v812 = vsel %vm748, 1, 0
        %v813 = vsel %vm749, 1, 0
        %v814 = vsel %vm750, 1, 0
        %v815 = vsel %vm751, 1, 0
        %v816 = vsel %vm752, 1, 0
        %v817 = vsel %vm753, 1, 0
        %v818 = vsel %vm754, 1, 0
        %v819 = vsel %vm755, 1, 0
        %v820 = vsel %vm756, 1, 0
        %v821 = vcvt.s32.f32 %v757
        %v822 = vcvt.s32.f32 %v758
        %v823 = vcvt.s32.f32 %v759
        %v824 = vcvt.s32.f32 %v760
        %v825 = vcvt.s32.f32 %v761
        %v826 = vcvt.s32.f32 %v762
        %v827 = vcvt.s32.f32 %v763
        %v828 = vcvt.s32.f32 %v764
        %v829 = vcvt.s32.f32 %v765
        %v830 = vcvt.s32.f32 %v766
        %v831 = vcvt.s32.f32 %v767
        %v832 = vcvt.s32.f32 %v768
        %v833 = vcvt.s32.f32 %v769
        %v834 = vcvt.s32.f32 %v770
        %v835 = vcvt.s32.f32 %v771
        %v836 = vcvt.s32.f32 %v772
        %v837 = vcvt.s32.f32 %v773
        %v838 = vcvt.s32.f32 %v774
        %v839 = vcvt.s32.f32 %v775
        %v840 = vcvt.s32.f32 %v776
        %v841 = vcvt.s32.f32 %v777
        %v842 = vcvt.s32.f32 %v778
        %v843 = vcvt.s32.f32 %v779
        %v844 = vcvt.s32.f32 %v780
        %v845 = vcvt.s32.f32 %v781
        %v846 = vcvt.s32.f32 %v782
        %v847 = vcvt.s32.f32 %v783
        %v848 = vcvt.s32.f32 %v784
        %v849 = vcvt.s32.f32 %v785
        %v850 = vcvt.s32.f32 %v786
        %v851 = vcvt.s32.f32 %v787
        %v852 = vcvt.s32.f32 %v788
        %v853 = vcvt.s32.f32 %v789
        %v854 = vcvt.s32.f32 %v790
        %v855 = vcvt.s32.f32 %v791
        %v856 = vcvt.s32.f32 %v792
        %v857 = vcvt.s32.f32 %v793
        %v858 = vcvt.s32.f32 %v794
        %v859 = vcvt.s32.f32 %v795
        %v860 = vcvt.s32.f32 %v796
        %v861 = vcvt.s32.f32 %v797
        %v862 = vcvt.s32.f32 %v798
        %v863 = vcvt.s32.f32 %v799
        %v864 = vcvt.s32.f32 %v800
        %v865 = vcvt.s32.f32 %v801
        %v866 = vcvt.s32.f32 %v802
        %v867 = vcvt.s32.f32 %v803
        %v868 = vcvt.s32.f32 %v804
        %v869 = vcvt.s32.f32 %v805
        %v870 = vcvt.s32.f32 %v806
        %v871 = vcvt.s32.f32 %v807
        %v872 = vcvt.s32.f32 %v808
        %v873 = vcvt.s32.f32 %v809
        %v874 = vcvt.s32.f32 %v810
        %v875 = vcvt.s32.f32 %v811
        %v876 = vcvt.s32.f32 %v812
        %v877 = vcvt.s32.f32 %v813
        %v878 = vcvt.s32.f32 %v814
        %v879 = vcvt.s32.f32 %v815
        %v880 = vcvt.s32.f32 %v816
        %v881 = vcvt.s32.f32 %v817
        %v882 = vcvt.s32.f32 %v818
        %v883 = vcvt.s32.f32 %v819
        %v884 = vcvt.s32.f32 %v820
        %v885 = vpack.c.bf16 %v823, %v821
        %v886 = vpack.c.bf16 %v824, %v822
        %v887 = vpack.c.bf16 %v827, %v825
        %v888 = vpack.c.bf16 %v828, %v826
        %v889 = vpack.c.bf16 %v831, %v829
        %v890 = vpack.c.bf16 %v832, %v830
        %v891 = vpack.c.bf16 %v835, %v833
        %v892 = vpack.c.bf16 %v836, %v834
        %v893 = vpack.c.bf16 %v839, %v837
        %v894 = vpack.c.bf16 %v840, %v838
        %v895 = vpack.c.bf16 %v843, %v841
        %v896 = vpack.c.bf16 %v844, %v842
        %v897 = vpack.c.bf16 %v847, %v845
        %v898 = vpack.c.bf16 %v848, %v846
        %v899 = vpack.c.bf16 %v851, %v849
        %v900 = vpack.c.bf16 %v852, %v850
        %v901 = vpack.c.bf16 %v855, %v853
        %v902 = vpack.c.bf16 %v856, %v854
        %v903 = vpack.c.bf16 %v859, %v857
        %v904 = vpack.c.bf16 %v860, %v858
        %v905 = vpack.c.bf16 %v863, %v861
        %v906 = vpack.c.bf16 %v864, %v862
        %v907 = vpack.c.bf16 %v867, %v865
        %v908 = vpack.c.bf16 %v868, %v866
        %v909 = vpack.c.bf16 %v871, %v869
        %v910 = vpack.c.bf16 %v872, %v870
        %v911 = vpack.c.bf16 %v875, %v873
        %v912 = vpack.c.bf16 %v876, %v874
        %v913 = vpack.c.bf16 %v879, %v877
        %v914 = vpack.c.bf16 %v880, %v878
        %v915 = vpack.c.bf16 %v883, %v881
        %v916 = vpack.c.bf16 %v884, %v882
        %917 = vset.pattern.permute.xlu0 2
        %918 = vperm.xlu0 %917, %v242
        %v919 = vpop.permute.xlu0 %918
        %920 = vset.pattern.permute.xlu0 2
        %921 = vperm.xlu0 %920, %v243
        %v922 = vpop.permute.xlu0 %921
        %923 = vset.pattern.permute.xlu0 2
        %924 = vperm.xlu0 %923, %v244
        %v925 = vpop.permute.xlu0 %924
        %926 = vset.pattern.permute.xlu0 2
        %927 = vperm.xlu0 %926, %v245
        %v928 = vpop.permute.xlu0 %927
        %929 = vset.pattern.permute.xlu0 2
        %930 = vperm.xlu0 %929, %v246
        %v931 = vpop.permute.xlu0 %930
        %932 = vset.pattern.permute.xlu0 2
        %933 = vperm.xlu0 %932, %v247
        %v934 = vpop.permute.xlu0 %933
        %935 = vset.pattern.permute.xlu0 2
        %936 = vperm.xlu0 %935, %v248
        %v937 = vpop.permute.xlu0 %936
        %938 = vset.pattern.permute.xlu0 2
        %939 = vperm.xlu0 %938, %v249
        %v940 = vpop.permute.xlu0 %939
        %941 = vset.pattern.permute.xlu0 2
        %942 = vperm.xlu0 %941, %v250
        %v943 = vpop.permute.xlu0 %942
        %944 = vset.pattern.permute.xlu0 2
        %945 = vperm.xlu0 %944, %v251
        %v946 = vpop.permute.xlu0 %945
        %947 = vset.pattern.permute.xlu0 2
        %948 = vperm.xlu0 %947, %v252
        %v949 = vpop.permute.xlu0 %948
        %950 = vset.pattern.permute.xlu0 2
        %951 = vperm.xlu0 %950, %v253
        %v952 = vpop.permute.xlu0 %951
        %953 = vset.pattern.permute.xlu0 2
        %954 = vperm.xlu0 %953, %v254
        %v955 = vpop.permute.xlu0 %954
        %956 = vset.pattern.permute.xlu0 2
        %957 = vperm.xlu0 %956, %v255
        %v958 = vpop.permute.xlu0 %957
        %959 = vset.pattern.permute.xlu0 2
        %960 = vperm.xlu0 %959, %v256
        %v961 = vpop.permute.xlu0 %960
        %962 = vset.pattern.permute.xlu0 2
        %963 = vperm.xlu0 %962, %v257
        %v964 = vpop.permute.xlu0 %963
        %965 = vset.pattern.permute.xlu0 2
        %966 = vperm.xlu0 %965, %v258
        %v967 = vpop.permute.xlu0 %966
        %968 = vset.pattern.permute.xlu0 2
        %969 = vperm.xlu0 %968, %v259
        %v970 = vpop.permute.xlu0 %969
        %971 = vset.pattern.permute.xlu0 2
        %972 = vperm.xlu0 %971, %v260
        %v973 = vpop.permute.xlu0 %972
        %974 = vset.pattern.permute.xlu0 2
        %975 = vperm.xlu0 %974, %v261
        %v976 = vpop.permute.xlu0 %975
        %977 = vset.pattern.permute.xlu0 2
        %978 = vperm.xlu0 %977, %v262
        %v979 = vpop.permute.xlu0 %978
        %980 = vset.pattern.permute.xlu0 2
        %981 = vperm.xlu0 %980, %v263
        %v982 = vpop.permute.xlu0 %981
        %983 = vset.pattern.permute.xlu0 2
        %984 = vperm.xlu0 %983, %v264
        %v985 = vpop.permute.xlu0 %984
        %986 = vset.pattern.permute.xlu0 2
        %987 = vperm.xlu0 %986, %v265
        %v988 = vpop.permute.xlu0 %987
        %989 = vset.pattern.permute.xlu0 2
        %990 = vperm.xlu0 %989, %v266
        %v991 = vpop.permute.xlu0 %990
        %992 = vset.pattern.permute.xlu0 2
        %993 = vperm.xlu0 %992, %v267
        %v994 = vpop.permute.xlu0 %993
        %995 = vset.pattern.permute.xlu0 2
        %996 = vperm.xlu0 %995, %v268
        %v997 = vpop.permute.xlu0 %996
        %998 = vset.pattern.permute.xlu0 2
        %999 = vperm.xlu0 %998, %v269
        %v1000 = vpop.permute.xlu0 %999
        %1001 = vset.pattern.permute.xlu0 2
        %1002 = vperm.xlu0 %1001, %v270
        %v1003 = vpop.permute.xlu0 %1002
        %1004 = vset.pattern.permute.xlu0 2
        %1005 = vperm.xlu0 %1004, %v271
        %v1006 = vpop.permute.xlu0 %1005
        %1007 = vset.pattern.permute.xlu0 2
        %1008 = vperm.xlu0 %1007, %v272
        %v1009 = vpop.permute.xlu0 %1008
        %1010 = vset.pattern.permute.xlu0 2
        %1011 = vperm.xlu0 %1010, %v273
        %v1012 = vpop.permute.xlu0 %1011
        %vm1013 = vcmp.eq.s32.totalorder %v275, %v919
        %vm1014 = vcmp.eq.s32.totalorder %v276, %v919
        %vm1015 = vcmp.eq.s32.totalorder %v275, %v922
        %vm1016 = vcmp.eq.s32.totalorder %v276, %v922
        %vm1017 = vcmp.eq.s32.totalorder %v275, %v925
        %vm1018 = vcmp.eq.s32.totalorder %v276, %v925
        %vm1019 = vcmp.eq.s32.totalorder %v275, %v928
        %vm1020 = vcmp.eq.s32.totalorder %v276, %v928
        %vm1021 = vcmp.eq.s32.totalorder %v275, %v931
        %vm1022 = vcmp.eq.s32.totalorder %v276, %v931
        %vm1023 = vcmp.eq.s32.totalorder %v275, %v934
        %vm1024 = vcmp.eq.s32.totalorder %v276, %v934
        %vm1025 = vcmp.eq.s32.totalorder %v275, %v937
        %vm1026 = vcmp.eq.s32.totalorder %v276, %v937
        %vm1027 = vcmp.eq.s32.totalorder %v275, %v940
        %vm1028 = vcmp.eq.s32.totalorder %v276, %v940
        %vm1029 = vcmp.eq.s32.totalorder %v275, %v943
        %vm1030 = vcmp.eq.s32.totalorder %v276, %v943
        %vm1031 = vcmp.eq.s32.totalorder %v275, %v946
        %vm1032 = vcmp.eq.s32.totalorder %v276, %v946
        %vm1033 = vcmp.eq.s32.totalorder %v275, %v949
        %vm1034 = vcmp.eq.s32.totalorder %v276, %v949
        %vm1035 = vcmp.eq.s32.totalorder %v275, %v952
        %vm1036 = vcmp.eq.s32.totalorder %v276, %v952
        %vm1037 = vcmp.eq.s32.totalorder %v275, %v955
        %vm1038 = vcmp.eq.s32.totalorder %v276, %v955
        %vm1039 = vcmp.eq.s32.totalorder %v275, %v958
        %vm1040 = vcmp.eq.s32.totalorder %v276, %v958
        %vm1041 = vcmp.eq.s32.totalorder %v275, %v961
        %vm1042 = vcmp.eq.s32.totalorder %v276, %v961
        %vm1043 = vcmp.eq.s32.totalorder %v275, %v964
        %vm1044 = vcmp.eq.s32.totalorder %v276, %v964
        %vm1045 = vcmp.eq.s32.totalorder %v275, %v967
        %vm1046 = vcmp.eq.s32.totalorder %v276, %v967
        %vm1047 = vcmp.eq.s32.totalorder %v275, %v970
        %vm1048 = vcmp.eq.s32.totalorder %v276, %v970
        %vm1049 = vcmp.eq.s32.totalorder %v275, %v973
        %vm1050 = vcmp.eq.s32.totalorder %v276, %v973
        %vm1051 = vcmp.eq.s32.totalorder %v275, %v976
        %vm1052 = vcmp.eq.s32.totalorder %v276, %v976
        %vm1053 = vcmp.eq.s32.totalorder %v275, %v979
        %vm1054 = vcmp.eq.s32.totalorder %v276, %v979
        %vm1055 = vcmp.eq.s32.totalorder %v275, %v982
        %vm1056 = vcmp.eq.s32.totalorder %v276, %v982
        %vm1057 = vcmp.eq.s32.totalorder %v275, %v985
        %vm1058 = vcmp.eq.s32.totalorder %v276, %v985
        %vm1059 = vcmp.eq.s32.totalorder %v275, %v988
        %vm1060 = vcmp.eq.s32.totalorder %v276, %v988
        %vm1061 = vcmp.eq.s32.totalorder %v275, %v991
        %vm1062 = vcmp.eq.s32.totalorder %v276, %v991
        %vm1063 = vcmp.eq.s32.totalorder %v275, %v994
        %vm1064 = vcmp.eq.s32.totalorder %v276, %v994
        %vm1065 = vcmp.eq.s32.totalorder %v275, %v997
        %vm1066 = vcmp.eq.s32.totalorder %v276, %v997
        %vm1067 = vcmp.eq.s32.totalorder %v275, %v1000
        %vm1068 = vcmp.eq.s32.totalorder %v276, %v1000
        %vm1069 = vcmp.eq.s32.totalorder %v275, %v1003
        %vm1070 = vcmp.eq.s32.totalorder %v276, %v1003
        %vm1071 = vcmp.eq.s32.totalorder %v275, %v1006
        %vm1072 = vcmp.eq.s32.totalorder %v276, %v1006
        %vm1073 = vcmp.eq.s32.totalorder %v275, %v1009
        %vm1074 = vcmp.eq.s32.totalorder %v276, %v1009
        %vm1075 = vcmp.eq.s32.totalorder %v275, %v1012
        %vm1076 = vcmp.eq.s32.totalorder %v276, %v1012
        %v1077 = vsel %vm1013, 1, 0
        %v1078 = vsel %vm1014, 1, 0
        %v1079 = vsel %vm1015, 1, 0
        %v1080 = vsel %vm1016, 1, 0
        %v1081 = vsel %vm1017, 1, 0
        %v1082 = vsel %vm1018, 1, 0
        %v1083 = vsel %vm1019, 1, 0
        %v1084 = vsel %vm1020, 1, 0
        %v1085 = vsel %vm1021, 1, 0
        %v1086 = vsel %vm1022, 1, 0
        %v1087 = vsel %vm1023, 1, 0
        %v1088 = vsel %vm1024, 1, 0
        %v1089 = vsel %vm1025, 1, 0
        %v1090 = vsel %vm1026, 1, 0
        %v1091 = vsel %vm1027, 1, 0
        %v1092 = vsel %vm1028, 1, 0
        %v1093 = vsel %vm1029, 1, 0
        %v1094 = vsel %vm1030, 1, 0
        %v1095 = vsel %vm1031, 1, 0
        %v1096 = vsel %vm1032, 1, 0
        %v1097 = vsel %vm1033, 1, 0
        %v1098 = vsel %vm1034, 1, 0
        %v1099 = vsel %vm1035, 1, 0
        %v1100 = vsel %vm1036, 1, 0
        %v1101 = vsel %vm1037, 1, 0
        %v1102 = vsel %vm1038, 1, 0
        %v1103 = vsel %vm1039, 1, 0
        %v1104 = vsel %vm1040, 1, 0
        %v1105 = vsel %vm1041, 1, 0
        %v1106 = vsel %vm1042, 1, 0
        %v1107 = vsel %vm1043, 1, 0
        %v1108 = vsel %vm1044, 1, 0
        %v1109 = vsel %vm1045, 1, 0
        %v1110 = vsel %vm1046, 1, 0
        %v1111 = vsel %vm1047, 1, 0
        %v1112 = vsel %vm1048, 1, 0
        %v1113 = vsel %vm1049, 1, 0
        %v1114 = vsel %vm1050, 1, 0
        %v1115 = vsel %vm1051, 1, 0
        %v1116 = vsel %vm1052, 1, 0
        %v1117 = vsel %vm1053, 1, 0
        %v1118 = vsel %vm1054, 1, 0
        %v1119 = vsel %vm1055, 1, 0
        %v1120 = vsel %vm1056, 1, 0
        %v1121 = vsel %vm1057, 1, 0
        %v1122 = vsel %vm1058, 1, 0
        %v1123 = vsel %vm1059, 1, 0
        %v1124 = vsel %vm1060, 1, 0
        %v1125 = vsel %vm1061, 1, 0
        %v1126 = vsel %vm1062, 1, 0
        %v1127 = vsel %vm1063, 1, 0
        %v1128 = vsel %vm1064, 1, 0
        %v1129 = vsel %vm1065, 1, 0
        %v1130 = vsel %vm1066, 1, 0
        %v1131 = vsel %vm1067, 1, 0
        %v1132 = vsel %vm1068, 1, 0
        %v1133 = vsel %vm1069, 1, 0
        %v1134 = vsel %vm1070, 1, 0
        %v1135 = vsel %vm1071, 1, 0
        %v1136 = vsel %vm1072, 1, 0
        %v1137 = vsel %vm1073, 1, 0
        %v1138 = vsel %vm1074, 1, 0
        %v1139 = vsel %vm1075, 1, 0
        %v1140 = vsel %vm1076, 1, 0
        %v1141 = vcvt.s32.f32 %v1077
        %v1142 = vcvt.s32.f32 %v1078
        %v1143 = vcvt.s32.f32 %v1079
        %v1144 = vcvt.s32.f32 %v1080
        %v1145 = vcvt.s32.f32 %v1081
        %v1146 = vcvt.s32.f32 %v1082
        %v1147 = vcvt.s32.f32 %v1083
        %v1148 = vcvt.s32.f32 %v1084
        %v1149 = vcvt.s32.f32 %v1085
        %v1150 = vcvt.s32.f32 %v1086
        %v1151 = vcvt.s32.f32 %v1087
        %v1152 = vcvt.s32.f32 %v1088
        %v1153 = vcvt.s32.f32 %v1089
        %v1154 = vcvt.s32.f32 %v1090
        %v1155 = vcvt.s32.f32 %v1091
        %v1156 = vcvt.s32.f32 %v1092
        %v1157 = vcvt.s32.f32 %v1093
        %v1158 = vcvt.s32.f32 %v1094
        %v1159 = vcvt.s32.f32 %v1095
        %v1160 = vcvt.s32.f32 %v1096
        %v1161 = vcvt.s32.f32 %v1097
        %v1162 = vcvt.s32.f32 %v1098
        %v1163 = vcvt.s32.f32 %v1099
        %v1164 = vcvt.s32.f32 %v1100
        %v1165 = vcvt.s32.f32 %v1101
        %v1166 = vcvt.s32.f32 %v1102
        %v1167 = vcvt.s32.f32 %v1103
        %v1168 = vcvt.s32.f32 %v1104
        %v1169 = vcvt.s32.f32 %v1105
        %v1170 = vcvt.s32.f32 %v1106
        %v1171 = vcvt.s32.f32 %v1107
        %v1172 = vcvt.s32.f32 %v1108
        %v1173 = vcvt.s32.f32 %v1109
        %v1174 = vcvt.s32.f32 %v1110
        %v1175 = vcvt.s32.f32 %v1111
        %v1176 = vcvt.s32.f32 %v1112
        %v1177 = vcvt.s32.f32 %v1113
        %v1178 = vcvt.s32.f32 %v1114
        %v1179 = vcvt.s32.f32 %v1115
        %v1180 = vcvt.s32.f32 %v1116
        %v1181 = vcvt.s32.f32 %v1117
        %v1182 = vcvt.s32.f32 %v1118
        %v1183 = vcvt.s32.f32 %v1119
        %v1184 = vcvt.s32.f32 %v1120
        %v1185 = vcvt.s32.f32 %v1121
        %v1186 = vcvt.s32.f32 %v1122
        %v1187 = vcvt.s32.f32 %v1123
        %v1188 = vcvt.s32.f32 %v1124
        %v1189 = vcvt.s32.f32 %v1125
        %v1190 = vcvt.s32.f32 %v1126
        %v1191 = vcvt.s32.f32 %v1127
        %v1192 = vcvt.s32.f32 %v1128
        %v1193 = vcvt.s32.f32 %v1129
        %v1194 = vcvt.s32.f32 %v1130
        %v1195 = vcvt.s32.f32 %v1131
        %v1196 = vcvt.s32.f32 %v1132
        %v1197 = vcvt.s32.f32 %v1133
        %v1198 = vcvt.s32.f32 %v1134
        %v1199 = vcvt.s32.f32 %v1135
        %v1200 = vcvt.s32.f32 %v1136
        %v1201 = vcvt.s32.f32 %v1137
        %v1202 = vcvt.s32.f32 %v1138
        %v1203 = vcvt.s32.f32 %v1139
        %v1204 = vcvt.s32.f32 %v1140
        %v1205 = vpack.c.bf16 %v1143, %v1141
        %v1206 = vpack.c.bf16 %v1144, %v1142
        %v1207 = vpack.c.bf16 %v1147, %v1145
        %v1208 = vpack.c.bf16 %v1148, %v1146
        %v1209 = vpack.c.bf16 %v1151, %v1149
        %v1210 = vpack.c.bf16 %v1152, %v1150
        %v1211 = vpack.c.bf16 %v1155, %v1153
        %v1212 = vpack.c.bf16 %v1156, %v1154
        %v1213 = vpack.c.bf16 %v1159, %v1157
        %v1214 = vpack.c.bf16 %v1160, %v1158
        %v1215 = vpack.c.bf16 %v1163, %v1161
        %v1216 = vpack.c.bf16 %v1164, %v1162
        %v1217 = vpack.c.bf16 %v1167, %v1165
        %v1218 = vpack.c.bf16 %v1168, %v1166
        %v1219 = vpack.c.bf16 %v1171, %v1169
        %v1220 = vpack.c.bf16 %v1172, %v1170
        %v1221 = vpack.c.bf16 %v1175, %v1173
        %v1222 = vpack.c.bf16 %v1176, %v1174
        %v1223 = vpack.c.bf16 %v1179, %v1177
        %v1224 = vpack.c.bf16 %v1180, %v1178
        %v1225 = vpack.c.bf16 %v1183, %v1181
        %v1226 = vpack.c.bf16 %v1184, %v1182
        %v1227 = vpack.c.bf16 %v1187, %v1185
        %v1228 = vpack.c.bf16 %v1188, %v1186
        %v1229 = vpack.c.bf16 %v1191, %v1189
        %v1230 = vpack.c.bf16 %v1192, %v1190
        %v1231 = vpack.c.bf16 %v1195, %v1193
        %v1232 = vpack.c.bf16 %v1196, %v1194
        %v1233 = vpack.c.bf16 %v1199, %v1197
        %v1234 = vpack.c.bf16 %v1200, %v1198
        %v1235 = vpack.c.bf16 %v1203, %v1201
        %v1236 = vpack.c.bf16 %v1204, %v1202
        %1237 = vset.pattern.permute.xlu0 3
        %1238 = vperm.xlu0 %1237, %v242
        %v1239 = vpop.permute.xlu0 %1238
        %1240 = vset.pattern.permute.xlu0 3
        %1241 = vperm.xlu0 %1240, %v243
        %v1242 = vpop.permute.xlu0 %1241
        %1243 = vset.pattern.permute.xlu0 3
        %1244 = vperm.xlu0 %1243, %v244
        %v1245 = vpop.permute.xlu0 %1244
        %1246 = vset.pattern.permute.xlu0 3
        %1247 = vperm.xlu0 %1246, %v245
        %v1248 = vpop.permute.xlu0 %1247
        %1249 = vset.pattern.permute.xlu0 3
        %1250 = vperm.xlu0 %1249, %v246
        %v1251 = vpop.permute.xlu0 %1250
        %1252 = vset.pattern.permute.xlu0 3
        %1253 = vperm.xlu0 %1252, %v247
        %v1254 = vpop.permute.xlu0 %1253
        %1255 = vset.pattern.permute.xlu0 3
        %1256 = vperm.xlu0 %1255, %v248
        %v1257 = vpop.permute.xlu0 %1256
        %1258 = vset.pattern.permute.xlu0 3
        %1259 = vperm.xlu0 %1258, %v249
        %v1260 = vpop.permute.xlu0 %1259
        %1261 = vset.pattern.permute.xlu0 3
        %1262 = vperm.xlu0 %1261, %v250
        %v1263 = vpop.permute.xlu0 %1262
        %1264 = vset.pattern.permute.xlu0 3
        %1265 = vperm.xlu0 %1264, %v251
        %v1266 = vpop.permute.xlu0 %1265
        %1267 = vset.pattern.permute.xlu0 3
        %1268 = vperm.xlu0 %1267, %v252
        %v1269 = vpop.permute.xlu0 %1268
        %1270 = vset.pattern.permute.xlu0 3
        %1271 = vperm.xlu0 %1270, %v253
        %v1272 = vpop.permute.xlu0 %1271
        %1273 = vset.pattern.permute.xlu0 3
        %1274 = vperm.xlu0 %1273, %v254
        %v1275 = vpop.permute.xlu0 %1274
        %1276 = vset.pattern.permute.xlu0 3
        %1277 = vperm.xlu0 %1276, %v255
        %v1278 = vpop.permute.xlu0 %1277
        %1279 = vset.pattern.permute.xlu0 3
        %1280 = vperm.xlu0 %1279, %v256
        %v1281 = vpop.permute.xlu0 %1280
        %1282 = vset.pattern.permute.xlu0 3
        %1283 = vperm.xlu0 %1282, %v257
        %v1284 = vpop.permute.xlu0 %1283
        %1285 = vset.pattern.permute.xlu0 3
        %1286 = vperm.xlu0 %1285, %v258
        %v1287 = vpop.permute.xlu0 %1286
        %1288 = vset.pattern.permute.xlu0 3
        %1289 = vperm.xlu0 %1288, %v259
        %v1290 = vpop.permute.xlu0 %1289
        %1291 = vset.pattern.permute.xlu0 3
        %1292 = vperm.xlu0 %1291, %v260
        %v1293 = vpop.permute.xlu0 %1292
        %1294 = vset.pattern.permute.xlu0 3
        %1295 = vperm.xlu0 %1294, %v261
        %v1296 = vpop.permute.xlu0 %1295
        %1297 = vset.pattern.permute.xlu0 3
        %1298 = vperm.xlu0 %1297, %v262
        %v1299 = vpop.permute.xlu0 %1298
        %1300 = vset.pattern.permute.xlu0 3
        %1301 = vperm.xlu0 %1300, %v263
        %v1302 = vpop.permute.xlu0 %1301
        %1303 = vset.pattern.permute.xlu0 3
        %1304 = vperm.xlu0 %1303, %v264
        %v1305 = vpop.permute.xlu0 %1304
        %1306 = vset.pattern.permute.xlu0 3
        %1307 = vperm.xlu0 %1306, %v265
        %v1308 = vpop.permute.xlu0 %1307
        %1309 = vset.pattern.permute.xlu0 3
        %1310 = vperm.xlu0 %1309, %v266
        %v1311 = vpop.permute.xlu0 %1310
        %1312 = vset.pattern.permute.xlu0 3
        %1313 = vperm.xlu0 %1312, %v267
        %v1314 = vpop.permute.xlu0 %1313
        %1315 = vset.pattern.permute.xlu0 3
        %1316 = vperm.xlu0 %1315, %v268
        %v1317 = vpop.permute.xlu0 %1316
        %1318 = vset.pattern.permute.xlu0 3
        %1319 = vperm.xlu0 %1318, %v269
        %v1320 = vpop.permute.xlu0 %1319
        %1321 = vset.pattern.permute.xlu0 3
        %1322 = vperm.xlu0 %1321, %v270
        %v1323 = vpop.permute.xlu0 %1322
        %1324 = vset.pattern.permute.xlu0 3
        %1325 = vperm.xlu0 %1324, %v271
        %v1326 = vpop.permute.xlu0 %1325
        %1327 = vset.pattern.permute.xlu0 3
        %1328 = vperm.xlu0 %1327, %v272
        %v1329 = vpop.permute.xlu0 %1328
        %1330 = vset.pattern.permute.xlu0 3
        %1331 = vperm.xlu0 %1330, %v273
        %v1332 = vpop.permute.xlu0 %1331
        %vm1333 = vcmp.eq.s32.totalorder %v275, %v1239
        %vm1334 = vcmp.eq.s32.totalorder %v276, %v1239
        %vm1335 = vcmp.eq.s32.totalorder %v275, %v1242
        %vm1336 = vcmp.eq.s32.totalorder %v276, %v1242
        %vm1337 = vcmp.eq.s32.totalorder %v275, %v1245
        %vm1338 = vcmp.eq.s32.totalorder %v276, %v1245
        %vm1339 = vcmp.eq.s32.totalorder %v275, %v1248
        %vm1340 = vcmp.eq.s32.totalorder %v276, %v1248
        %vm1341 = vcmp.eq.s32.totalorder %v275, %v1251
        %vm1342 = vcmp.eq.s32.totalorder %v276, %v1251
        %vm1343 = vcmp.eq.s32.totalorder %v275, %v1254
        %vm1344 = vcmp.eq.s32.totalorder %v276, %v1254
        %vm1345 = vcmp.eq.s32.totalorder %v275, %v1257
        %vm1346 = vcmp.eq.s32.totalorder %v276, %v1257
        %vm1347 = vcmp.eq.s32.totalorder %v275, %v1260
        %vm1348 = vcmp.eq.s32.totalorder %v276, %v1260
        %vm1349 = vcmp.eq.s32.totalorder %v275, %v1263
        %vm1350 = vcmp.eq.s32.totalorder %v276, %v1263
        %vm1351 = vcmp.eq.s32.totalorder %v275, %v1266
        %vm1352 = vcmp.eq.s32.totalorder %v276, %v1266
        %vm1353 = vcmp.eq.s32.totalorder %v275, %v1269
        %vm1354 = vcmp.eq.s32.totalorder %v276, %v1269
        %vm1355 = vcmp.eq.s32.totalorder %v275, %v1272
        %vm1356 = vcmp.eq.s32.totalorder %v276, %v1272
        %vm1357 = vcmp.eq.s32.totalorder %v275, %v1275
        %vm1358 = vcmp.eq.s32.totalorder %v276, %v1275
        %vm1359 = vcmp.eq.s32.totalorder %v275, %v1278
        %vm1360 = vcmp.eq.s32.totalorder %v276, %v1278
        %vm1361 = vcmp.eq.s32.totalorder %v275, %v1281
        %vm1362 = vcmp.eq.s32.totalorder %v276, %v1281
        %vm1363 = vcmp.eq.s32.totalorder %v275, %v1284
        %vm1364 = vcmp.eq.s32.totalorder %v276, %v1284
        %vm1365 = vcmp.eq.s32.totalorder %v275, %v1287
        %vm1366 = vcmp.eq.s32.totalorder %v276, %v1287
        %vm1367 = vcmp.eq.s32.totalorder %v275, %v1290
        %vm1368 = vcmp.eq.s32.totalorder %v276, %v1290
        %vm1369 = vcmp.eq.s32.totalorder %v275, %v1293
        %vm1370 = vcmp.eq.s32.totalorder %v276, %v1293
        %vm1371 = vcmp.eq.s32.totalorder %v275, %v1296
        %vm1372 = vcmp.eq.s32.totalorder %v276, %v1296
        %vm1373 = vcmp.eq.s32.totalorder %v275, %v1299
        %vm1374 = vcmp.eq.s32.totalorder %v276, %v1299
        %vm1375 = vcmp.eq.s32.totalorder %v275, %v1302
        %vm1376 = vcmp.eq.s32.totalorder %v276, %v1302
        %vm1377 = vcmp.eq.s32.totalorder %v275, %v1305
        %vm1378 = vcmp.eq.s32.totalorder %v276, %v1305
        %vm1379 = vcmp.eq.s32.totalorder %v275, %v1308
        %vm1380 = vcmp.eq.s32.totalorder %v276, %v1308
        %vm1381 = vcmp.eq.s32.totalorder %v275, %v1311
        %vm1382 = vcmp.eq.s32.totalorder %v276, %v1311
        %vm1383 = vcmp.eq.s32.totalorder %v275, %v1314
        %vm1384 = vcmp.eq.s32.totalorder %v276, %v1314
        %vm1385 = vcmp.eq.s32.totalorder %v275, %v1317
        %vm1386 = vcmp.eq.s32.totalorder %v276, %v1317
        %vm1387 = vcmp.eq.s32.totalorder %v275, %v1320
        %vm1388 = vcmp.eq.s32.totalorder %v276, %v1320
        %vm1389 = vcmp.eq.s32.totalorder %v275, %v1323
        %vm1390 = vcmp.eq.s32.totalorder %v276, %v1323
        %vm1391 = vcmp.eq.s32.totalorder %v275, %v1326
        %vm1392 = vcmp.eq.s32.totalorder %v276, %v1326
        %vm1393 = vcmp.eq.s32.totalorder %v275, %v1329
        %vm1394 = vcmp.eq.s32.totalorder %v276, %v1329
        %vm1395 = vcmp.eq.s32.totalorder %v275, %v1332
        %vm1396 = vcmp.eq.s32.totalorder %v276, %v1332
        %v1397 = vsel %vm1333, 1, 0
        %v1398 = vsel %vm1334, 1, 0
        %v1399 = vsel %vm1335, 1, 0
        %v1400 = vsel %vm1336, 1, 0
        %v1401 = vsel %vm1337, 1, 0
        %v1402 = vsel %vm1338, 1, 0
        %v1403 = vsel %vm1339, 1, 0
        %v1404 = vsel %vm1340, 1, 0
        %v1405 = vsel %vm1341, 1, 0
        %v1406 = vsel %vm1342, 1, 0
        %v1407 = vsel %vm1343, 1, 0
        %v1408 = vsel %vm1344, 1, 0
        %v1409 = vsel %vm1345, 1, 0
        %v1410 = vsel %vm1346, 1, 0
        %v1411 = vsel %vm1347, 1, 0
        %v1412 = vsel %vm1348, 1, 0
        %v1413 = vsel %vm1349, 1, 0
        %v1414 = vsel %vm1350, 1, 0
        %v1415 = vsel %vm1351, 1, 0
        %v1416 = vsel %vm1352, 1, 0
        %v1417 = vsel %vm1353, 1, 0
        %v1418 = vsel %vm1354, 1, 0
        %v1419 = vsel %vm1355, 1, 0
        %v1420 = vsel %vm1356, 1, 0
        %v1421 = vsel %vm1357, 1, 0
        %v1422 = vsel %vm1358, 1, 0
        %v1423 = vsel %vm1359, 1, 0
        %v1424 = vsel %vm1360, 1, 0
        %v1425 = vsel %vm1361, 1, 0
        %v1426 = vsel %vm1362, 1, 0
        %v1427 = vsel %vm1363, 1, 0
        %v1428 = vsel %vm1364, 1, 0
        %v1429 = vsel %vm1365, 1, 0
        %v1430 = vsel %vm1366, 1, 0
        %v1431 = vsel %vm1367, 1, 0
        %v1432 = vsel %vm1368, 1, 0
        %v1433 = vsel %vm1369, 1, 0
        %v1434 = vsel %vm1370, 1, 0
        %v1435 = vsel %vm1371, 1, 0
        %v1436 = vsel %vm1372, 1, 0
        %v1437 = vsel %vm1373, 1, 0
        %v1438 = vsel %vm1374, 1, 0
        %v1439 = vsel %vm1375, 1, 0
        %v1440 = vsel %vm1376, 1, 0
        %v1441 = vsel %vm1377, 1, 0
        %v1442 = vsel %vm1378, 1, 0
        %v1443 = vsel %vm1379, 1, 0
        %v1444 = vsel %vm1380, 1, 0
        %v1445 = vsel %vm1381, 1, 0
        %v1446 = vsel %vm1382, 1, 0
        %v1447 = vsel %vm1383, 1, 0
        %v1448 = vsel %vm1384, 1, 0
        %v1449 = vsel %vm1385, 1, 0
        %v1450 = vsel %vm1386, 1, 0
        %v1451 = vsel %vm1387, 1, 0
        %v1452 = vsel %vm1388, 1, 0
        %v1453 = vsel %vm1389, 1, 0
        %v1454 = vsel %vm1390, 1, 0
        %v1455 = vsel %vm1391, 1, 0
        %v1456 = vsel %vm1392, 1, 0
        %v1457 = vsel %vm1393, 1, 0
        %v1458 = vsel %vm1394, 1, 0
        %v1459 = vsel %vm1395, 1, 0
        %v1460 = vsel %vm1396, 1, 0
        %v1461 = vcvt.s32.f32 %v1397
        %v1462 = vcvt.s32.f32 %v1398
        %v1463 = vcvt.s32.f32 %v1399
        %v1464 = vcvt.s32.f32 %v1400
        %v1465 = vcvt.s32.f32 %v1401
        %v1466 = vcvt.s32.f32 %v1402
        %v1467 = vcvt.s32.f32 %v1403
        %v1468 = vcvt.s32.f32 %v1404
        %v1469 = vcvt.s32.f32 %v1405
        %v1470 = vcvt.s32.f32 %v1406
        %v1471 = vcvt.s32.f32 %v1407
        %v1472 = vcvt.s32.f32 %v1408
        %v1473 = vcvt.s32.f32 %v1409
        %v1474 = vcvt.s32.f32 %v1410
        %v1475 = vcvt.s32.f32 %v1411
        %v1476 = vcvt.s32.f32 %v1412
        %v1477 = vcvt.s32.f32 %v1413
        %v1478 = vcvt.s32.f32 %v1414
        %v1479 = vcvt.s32.f32 %v1415
        %v1480 = vcvt.s32.f32 %v1416
        %v1481 = vcvt.s32.f32 %v1417
        %v1482 = vcvt.s32.f32 %v1418
        %v1483 = vcvt.s32.f32 %v1419
        %v1484 = vcvt.s32.f32 %v1420
        %v1485 = vcvt.s32.f32 %v1421
        %v1486 = vcvt.s32.f32 %v1422
        %v1487 = vcvt.s32.f32 %v1423
        %v1488 = vcvt.s32.f32 %v1424
        %v1489 = vcvt.s32.f32 %v1425
        %v1490 = vcvt.s32.f32 %v1426
        %v1491 = vcvt.s32.f32 %v1427
        %v1492 = vcvt.s32.f32 %v1428
        %v1493 = vcvt.s32.f32 %v1429
        %v1494 = vcvt.s32.f32 %v1430
        %v1495 = vcvt.s32.f32 %v1431
        %v1496 = vcvt.s32.f32 %v1432
        %v1497 = vcvt.s32.f32 %v1433
        %v1498 = vcvt.s32.f32 %v1434
        %v1499 = vcvt.s32.f32 %v1435
        %v1500 = vcvt.s32.f32 %v1436
        %v1501 = vcvt.s32.f32 %v1437
        %v1502 = vcvt.s32.f32 %v1438
        %v1503 = vcvt.s32.f32 %v1439
        %v1504 = vcvt.s32.f32 %v1440
        %v1505 = vcvt.s32.f32 %v1441
        %v1506 = vcvt.s32.f32 %v1442
        %v1507 = vcvt.s32.f32 %v1443
        %v1508 = vcvt.s32.f32 %v1444
        %v1509 = vcvt.s32.f32 %v1445
        %v1510 = vcvt.s32.f32 %v1446
        %v1511 = vcvt.s32.f32 %v1447
        %v1512 = vcvt.s32.f32 %v1448
        %v1513 = vcvt.s32.f32 %v1449
        %v1514 = vcvt.s32.f32 %v1450
        %v1515 = vcvt.s32.f32 %v1451
        %v1516 = vcvt.s32.f32 %v1452
        %v1517 = vcvt.s32.f32 %v1453
        %v1518 = vcvt.s32.f32 %v1454
        %v1519 = vcvt.s32.f32 %v1455
        %v1520 = vcvt.s32.f32 %v1456
        %v1521 = vcvt.s32.f32 %v1457
        %v1522 = vcvt.s32.f32 %v1458
        %v1523 = vcvt.s32.f32 %v1459
        %v1524 = vcvt.s32.f32 %v1460
        %v1525 = vpack.c.bf16 %v1463, %v1461
        %v1526 = vpack.c.bf16 %v1464, %v1462
        %v1527 = vpack.c.bf16 %v1467, %v1465
        %v1528 = vpack.c.bf16 %v1468, %v1466
        %v1529 = vpack.c.bf16 %v1471, %v1469
        %v1530 = vpack.c.bf16 %v1472, %v1470
        %v1531 = vpack.c.bf16 %v1475, %v1473
        %v1532 = vpack.c.bf16 %v1476, %v1474
        %v1533 = vpack.c.bf16 %v1479, %v1477
        %v1534 = vpack.c.bf16 %v1480, %v1478
        %v1535 = vpack.c.bf16 %v1483, %v1481
        %v1536 = vpack.c.bf16 %v1484, %v1482
        %v1537 = vpack.c.bf16 %v1487, %v1485
        %v1538 = vpack.c.bf16 %v1488, %v1486
        %v1539 = vpack.c.bf16 %v1491, %v1489
        %v1540 = vpack.c.bf16 %v1492, %v1490
        %v1541 = vpack.c.bf16 %v1495, %v1493
        %v1542 = vpack.c.bf16 %v1496, %v1494
        %v1543 = vpack.c.bf16 %v1499, %v1497
        %v1544 = vpack.c.bf16 %v1500, %v1498
        %v1545 = vpack.c.bf16 %v1503, %v1501
        %v1546 = vpack.c.bf16 %v1504, %v1502
        %v1547 = vpack.c.bf16 %v1507, %v1505
        %v1548 = vpack.c.bf16 %v1508, %v1506
        %v1549 = vpack.c.bf16 %v1511, %v1509
        %v1550 = vpack.c.bf16 %v1512, %v1510
        %v1551 = vpack.c.bf16 %v1515, %v1513
        %v1552 = vpack.c.bf16 %v1516, %v1514
        %v1553 = vpack.c.bf16 %v1519, %v1517
        %v1554 = vpack.c.bf16 %v1520, %v1518
        %v1555 = vpack.c.bf16 %v1523, %v1521
        %v1556 = vpack.c.bf16 %v1524, %v1522
        %1557 = vset.pattern.permute.xlu0 4
        %1558 = vperm.xlu0 %1557, %v242
        %v1559 = vpop.permute.xlu0 %1558
        %1560 = vset.pattern.permute.xlu0 4
        %1561 = vperm.xlu0 %1560, %v243
        %v1562 = vpop.permute.xlu0 %1561
        %1563 = vset.pattern.permute.xlu0 4
        %1564 = vperm.xlu0 %1563, %v244
        %v1565 = vpop.permute.xlu0 %1564
        %1566 = vset.pattern.permute.xlu0 4
        %1567 = vperm.xlu0 %1566, %v245
        %v1568 = vpop.permute.xlu0 %1567
        %1569 = vset.pattern.permute.xlu0 4
        %1570 = vperm.xlu0 %1569, %v246
        %v1571 = vpop.permute.xlu0 %1570
        %1572 = vset.pattern.permute.xlu0 4
        %1573 = vperm.xlu0 %1572, %v247
        %v1574 = vpop.permute.xlu0 %1573
        %1575 = vset.pattern.permute.xlu0 4
        %1576 = vperm.xlu0 %1575, %v248
        %v1577 = vpop.permute.xlu0 %1576
        %1578 = vset.pattern.permute.xlu0 4
        %1579 = vperm.xlu0 %1578, %v249
        %v1580 = vpop.permute.xlu0 %1579
        %1581 = vset.pattern.permute.xlu0 4
        %1582 = vperm.xlu0 %1581, %v250
        %v1583 = vpop.permute.xlu0 %1582
        %1584 = vset.pattern.permute.xlu0 4
        %1585 = vperm.xlu0 %1584, %v251
        %v1586 = vpop.permute.xlu0 %1585
        %1587 = vset.pattern.permute.xlu0 4
        %1588 = vperm.xlu0 %1587, %v252
        %v1589 = vpop.permute.xlu0 %1588
        %1590 = vset.pattern.permute.xlu0 4
        %1591 = vperm.xlu0 %1590, %v253
        %v1592 = vpop.permute.xlu0 %1591
        %1593 = vset.pattern.permute.xlu0 4
        %1594 = vperm.xlu0 %1593, %v254
        %v1595 = vpop.permute.xlu0 %1594
        %1596 = vset.pattern.permute.xlu0 4
        %1597 = vperm.xlu0 %1596, %v255
        %v1598 = vpop.permute.xlu0 %1597
        %1599 = vset.pattern.permute.xlu0 4
        %1600 = vperm.xlu0 %1599, %v256
        %v1601 = vpop.permute.xlu0 %1600
        %1602 = vset.pattern.permute.xlu0 4
        %1603 = vperm.xlu0 %1602, %v257
        %v1604 = vpop.permute.xlu0 %1603
        %1605 = vset.pattern.permute.xlu0 4
        %1606 = vperm.xlu0 %1605, %v258
        %v1607 = vpop.permute.xlu0 %1606
        %1608 = vset.pattern.permute.xlu0 4
        %1609 = vperm.xlu0 %1608, %v259
        %v1610 = vpop.permute.xlu0 %1609
        %1611 = vset.pattern.permute.xlu0 4
        %1612 = vperm.xlu0 %1611, %v260
        %v1613 = vpop.permute.xlu0 %1612
        %1614 = vset.pattern.permute.xlu0 4
        %1615 = vperm.xlu0 %1614, %v261
        %v1616 = vpop.permute.xlu0 %1615
        %1617 = vset.pattern.permute.xlu0 4
        %1618 = vperm.xlu0 %1617, %v262
        %v1619 = vpop.permute.xlu0 %1618
        %1620 = vset.pattern.permute.xlu0 4
        %1621 = vperm.xlu0 %1620, %v263
        %v1622 = vpop.permute.xlu0 %1621
        %1623 = vset.pattern.permute.xlu0 4
        %1624 = vperm.xlu0 %1623, %v264
        %v1625 = vpop.permute.xlu0 %1624
        %1626 = vset.pattern.permute.xlu0 4
        %1627 = vperm.xlu0 %1626, %v265
        %v1628 = vpop.permute.xlu0 %1627
        %1629 = vset.pattern.permute.xlu0 4
        %1630 = vperm.xlu0 %1629, %v266
        %v1631 = vpop.permute.xlu0 %1630
        %1632 = vset.pattern.permute.xlu0 4
        %1633 = vperm.xlu0 %1632, %v267
        %v1634 = vpop.permute.xlu0 %1633
        %1635 = vset.pattern.permute.xlu0 4
        %1636 = vperm.xlu0 %1635, %v268
        %v1637 = vpop.permute.xlu0 %1636
        %1638 = vset.pattern.permute.xlu0 4
        %1639 = vperm.xlu0 %1638, %v269
        %v1640 = vpop.permute.xlu0 %1639
        %1641 = vset.pattern.permute.xlu0 4
        %1642 = vperm.xlu0 %1641, %v270
        %v1643 = vpop.permute.xlu0 %1642
        %1644 = vset.pattern.permute.xlu0 4
        %1645 = vperm.xlu0 %1644, %v271
        %v1646 = vpop.permute.xlu0 %1645
        %1647 = vset.pattern.permute.xlu0 4
        %1648 = vperm.xlu0 %1647, %v272
        %v1649 = vpop.permute.xlu0 %1648
        %1650 = vset.pattern.permute.xlu0 4
        %1651 = vperm.xlu0 %1650, %v273
        %v1652 = vpop.permute.xlu0 %1651
        %vm1653 = vcmp.eq.s32.totalorder %v275, %v1559
        %vm1654 = vcmp.eq.s32.totalorder %v276, %v1559
        %vm1655 = vcmp.eq.s32.totalorder %v275, %v1562
        %vm1656 = vcmp.eq.s32.totalorder %v276, %v1562
        %vm1657 = vcmp.eq.s32.totalorder %v275, %v1565
        %vm1658 = vcmp.eq.s32.totalorder %v276, %v1565
        %vm1659 = vcmp.eq.s32.totalorder %v275, %v1568
        %vm1660 = vcmp.eq.s32.totalorder %v276, %v1568
        %vm1661 = vcmp.eq.s32.totalorder %v275, %v1571
        %vm1662 = vcmp.eq.s32.totalorder %v276, %v1571
        %vm1663 = vcmp.eq.s32.totalorder %v275, %v1574
        %vm1664 = vcmp.eq.s32.totalorder %v276, %v1574
        %vm1665 = vcmp.eq.s32.totalorder %v275, %v1577
        %vm1666 = vcmp.eq.s32.totalorder %v276, %v1577
        %vm1667 = vcmp.eq.s32.totalorder %v275, %v1580
        %vm1668 = vcmp.eq.s32.totalorder %v276, %v1580
        %vm1669 = vcmp.eq.s32.totalorder %v275, %v1583
        %vm1670 = vcmp.eq.s32.totalorder %v276, %v1583
        %vm1671 = vcmp.eq.s32.totalorder %v275, %v1586
        %vm1672 = vcmp.eq.s32.totalorder %v276, %v1586
        %vm1673 = vcmp.eq.s32.totalorder %v275, %v1589
        %vm1674 = vcmp.eq.s32.totalorder %v276, %v1589
        %vm1675 = vcmp.eq.s32.totalorder %v275, %v1592
        %vm1676 = vcmp.eq.s32.totalorder %v276, %v1592
        %vm1677 = vcmp.eq.s32.totalorder %v275, %v1595
        %vm1678 = vcmp.eq.s32.totalorder %v276, %v1595
        %vm1679 = vcmp.eq.s32.totalorder %v275, %v1598
        %vm1680 = vcmp.eq.s32.totalorder %v276, %v1598
        %vm1681 = vcmp.eq.s32.totalorder %v275, %v1601
        %vm1682 = vcmp.eq.s32.totalorder %v276, %v1601
        %vm1683 = vcmp.eq.s32.totalorder %v275, %v1604
        %vm1684 = vcmp.eq.s32.totalorder %v276, %v1604
        %vm1685 = vcmp.eq.s32.totalorder %v275, %v1607
        %vm1686 = vcmp.eq.s32.totalorder %v276, %v1607
        %vm1687 = vcmp.eq.s32.totalorder %v275, %v1610
        %vm1688 = vcmp.eq.s32.totalorder %v276, %v1610
        %vm1689 = vcmp.eq.s32.totalorder %v275, %v1613
        %vm1690 = vcmp.eq.s32.totalorder %v276, %v1613
        %vm1691 = vcmp.eq.s32.totalorder %v275, %v1616
        %vm1692 = vcmp.eq.s32.totalorder %v276, %v1616
        %vm1693 = vcmp.eq.s32.totalorder %v275, %v1619
        %vm1694 = vcmp.eq.s32.totalorder %v276, %v1619
        %vm1695 = vcmp.eq.s32.totalorder %v275, %v1622
        %vm1696 = vcmp.eq.s32.totalorder %v276, %v1622
        %vm1697 = vcmp.eq.s32.totalorder %v275, %v1625
        %vm1698 = vcmp.eq.s32.totalorder %v276, %v1625
        %vm1699 = vcmp.eq.s32.totalorder %v275, %v1628
        %vm1700 = vcmp.eq.s32.totalorder %v276, %v1628
        %vm1701 = vcmp.eq.s32.totalorder %v275, %v1631
        %vm1702 = vcmp.eq.s32.totalorder %v276, %v1631
        %vm1703 = vcmp.eq.s32.totalorder %v275, %v1634
        %vm1704 = vcmp.eq.s32.totalorder %v276, %v1634
        %vm1705 = vcmp.eq.s32.totalorder %v275, %v1637
        %vm1706 = vcmp.eq.s32.totalorder %v276, %v1637
        %vm1707 = vcmp.eq.s32.totalorder %v275, %v1640
        %vm1708 = vcmp.eq.s32.totalorder %v276, %v1640
        %vm1709 = vcmp.eq.s32.totalorder %v275, %v1643
        %vm1710 = vcmp.eq.s32.totalorder %v276, %v1643
        %vm1711 = vcmp.eq.s32.totalorder %v275, %v1646
        %vm1712 = vcmp.eq.s32.totalorder %v276, %v1646
        %vm1713 = vcmp.eq.s32.totalorder %v275, %v1649
        %vm1714 = vcmp.eq.s32.totalorder %v276, %v1649
        %vm1715 = vcmp.eq.s32.totalorder %v275, %v1652
        %vm1716 = vcmp.eq.s32.totalorder %v276, %v1652
        %v1717 = vsel %vm1653, 1, 0
        %v1718 = vsel %vm1654, 1, 0
        %v1719 = vsel %vm1655, 1, 0
        %v1720 = vsel %vm1656, 1, 0
        %v1721 = vsel %vm1657, 1, 0
        %v1722 = vsel %vm1658, 1, 0
        %v1723 = vsel %vm1659, 1, 0
        %v1724 = vsel %vm1660, 1, 0
        %v1725 = vsel %vm1661, 1, 0
        %v1726 = vsel %vm1662, 1, 0
        %v1727 = vsel %vm1663, 1, 0
        %v1728 = vsel %vm1664, 1, 0
        %v1729 = vsel %vm1665, 1, 0
        %v1730 = vsel %vm1666, 1, 0
        %v1731 = vsel %vm1667, 1, 0
        %v1732 = vsel %vm1668, 1, 0
        %v1733 = vsel %vm1669, 1, 0
        %v1734 = vsel %vm1670, 1, 0
        %v1735 = vsel %vm1671, 1, 0
        %v1736 = vsel %vm1672, 1, 0
        %v1737 = vsel %vm1673, 1, 0
        %v1738 = vsel %vm1674, 1, 0
        %v1739 = vsel %vm1675, 1, 0
        %v1740 = vsel %vm1676, 1, 0
        %v1741 = vsel %vm1677, 1, 0
        %v1742 = vsel %vm1678, 1, 0
        %v1743 = vsel %vm1679, 1, 0
        %v1744 = vsel %vm1680, 1, 0
        %v1745 = vsel %vm1681, 1, 0
        %v1746 = vsel %vm1682, 1, 0
        %v1747 = vsel %vm1683, 1, 0
        %v1748 = vsel %vm1684, 1, 0
        %v1749 = vsel %vm1685, 1, 0
        %v1750 = vsel %vm1686, 1, 0
        %v1751 = vsel %vm1687, 1, 0
        %v1752 = vsel %vm1688, 1, 0
        %v1753 = vsel %vm1689, 1, 0
        %v1754 = vsel %vm1690, 1, 0
        %v1755 = vsel %vm1691, 1, 0
        %v1756 = vsel %vm1692, 1, 0
        %v1757 = vsel %vm1693, 1, 0
        %v1758 = vsel %vm1694, 1, 0
        %v1759 = vsel %vm1695, 1, 0
        %v1760 = vsel %vm1696, 1, 0
        %v1761 = vsel %vm1697, 1, 0
        %v1762 = vsel %vm1698, 1, 0
        %v1763 = vsel %vm1699, 1, 0
        %v1764 = vsel %vm1700, 1, 0
        %v1765 = vsel %vm1701, 1, 0
        %v1766 = vsel %vm1702, 1, 0
        %v1767 = vsel %vm1703, 1, 0
        %v1768 = vsel %vm1704, 1, 0
        %v1769 = vsel %vm1705, 1, 0
        %v1770 = vsel %vm1706, 1, 0
        %v1771 = vsel %vm1707, 1, 0
        %v1772 = vsel %vm1708, 1, 0
        %v1773 = vsel %vm1709, 1, 0
        %v1774 = vsel %vm1710, 1, 0
        %v1775 = vsel %vm1711, 1, 0
        %v1776 = vsel %vm1712, 1, 0
        %v1777 = vsel %vm1713, 1, 0
        %v1778 = vsel %vm1714, 1, 0
        %v1779 = vsel %vm1715, 1, 0
        %v1780 = vsel %vm1716, 1, 0
        %v1781 = vcvt.s32.f32 %v1717
        %v1782 = vcvt.s32.f32 %v1718
        %v1783 = vcvt.s32.f32 %v1719
        %v1784 = vcvt.s32.f32 %v1720
        %v1785 = vcvt.s32.f32 %v1721
        %v1786 = vcvt.s32.f32 %v1722
        %v1787 = vcvt.s32.f32 %v1723
        %v1788 = vcvt.s32.f32 %v1724
        %v1789 = vcvt.s32.f32 %v1725
        %v1790 = vcvt.s32.f32 %v1726
        %v1791 = vcvt.s32.f32 %v1727
        %v1792 = vcvt.s32.f32 %v1728
        %v1793 = vcvt.s32.f32 %v1729
        %v1794 = vcvt.s32.f32 %v1730
        %v1795 = vcvt.s32.f32 %v1731
        %v1796 = vcvt.s32.f32 %v1732
        %v1797 = vcvt.s32.f32 %v1733
        %v1798 = vcvt.s32.f32 %v1734
        %v1799 = vcvt.s32.f32 %v1735
        %v1800 = vcvt.s32.f32 %v1736
        %v1801 = vcvt.s32.f32 %v1737
        %v1802 = vcvt.s32.f32 %v1738
        %v1803 = vcvt.s32.f32 %v1739
        %v1804 = vcvt.s32.f32 %v1740
        %v1805 = vcvt.s32.f32 %v1741
        %v1806 = vcvt.s32.f32 %v1742
        %v1807 = vcvt.s32.f32 %v1743
        %v1808 = vcvt.s32.f32 %v1744
        %v1809 = vcvt.s32.f32 %v1745
        %v1810 = vcvt.s32.f32 %v1746
        %v1811 = vcvt.s32.f32 %v1747
        %v1812 = vcvt.s32.f32 %v1748
        %v1813 = vcvt.s32.f32 %v1749
        %v1814 = vcvt.s32.f32 %v1750
        %v1815 = vcvt.s32.f32 %v1751
        %v1816 = vcvt.s32.f32 %v1752
        %v1817 = vcvt.s32.f32 %v1753
        %v1818 = vcvt.s32.f32 %v1754
        %v1819 = vcvt.s32.f32 %v1755
        %v1820 = vcvt.s32.f32 %v1756
        %v1821 = vcvt.s32.f32 %v1757
        %v1822 = vcvt.s32.f32 %v1758
        %v1823 = vcvt.s32.f32 %v1759
        %v1824 = vcvt.s32.f32 %v1760
        %v1825 = vcvt.s32.f32 %v1761
        %v1826 = vcvt.s32.f32 %v1762
        %v1827 = vcvt.s32.f32 %v1763
        %v1828 = vcvt.s32.f32 %v1764
        %v1829 = vcvt.s32.f32 %v1765
        %v1830 = vcvt.s32.f32 %v1766
        %v1831 = vcvt.s32.f32 %v1767
        %v1832 = vcvt.s32.f32 %v1768
        %v1833 = vcvt.s32.f32 %v1769
        %v1834 = vcvt.s32.f32 %v1770
        %v1835 = vcvt.s32.f32 %v1771
        %v1836 = vcvt.s32.f32 %v1772
        %v1837 = vcvt.s32.f32 %v1773
        %v1838 = vcvt.s32.f32 %v1774
        %v1839 = vcvt.s32.f32 %v1775
        %v1840 = vcvt.s32.f32 %v1776
        %v1841 = vcvt.s32.f32 %v1777
        %v1842 = vcvt.s32.f32 %v1778
        %v1843 = vcvt.s32.f32 %v1779
        %v1844 = vcvt.s32.f32 %v1780
        %v1845 = vpack.c.bf16 %v1783, %v1781
        %v1846 = vpack.c.bf16 %v1784, %v1782
        %v1847 = vpack.c.bf16 %v1787, %v1785
        %v1848 = vpack.c.bf16 %v1788, %v1786
        %v1849 = vpack.c.bf16 %v1791, %v1789
        %v1850 = vpack.c.bf16 %v1792, %v1790
        %v1851 = vpack.c.bf16 %v1795, %v1793
        %v1852 = vpack.c.bf16 %v1796, %v1794
        %v1853 = vpack.c.bf16 %v1799, %v1797
        %v1854 = vpack.c.bf16 %v1800, %v1798
        %v1855 = vpack.c.bf16 %v1803, %v1801
        %v1856 = vpack.c.bf16 %v1804, %v1802
        %v1857 = vpack.c.bf16 %v1807, %v1805
        %v1858 = vpack.c.bf16 %v1808, %v1806
        %v1859 = vpack.c.bf16 %v1811, %v1809
        %v1860 = vpack.c.bf16 %v1812, %v1810
        %v1861 = vpack.c.bf16 %v1815, %v1813
        %v1862 = vpack.c.bf16 %v1816, %v1814
        %v1863 = vpack.c.bf16 %v1819, %v1817
        %v1864 = vpack.c.bf16 %v1820, %v1818
        %v1865 = vpack.c.bf16 %v1823, %v1821
        %v1866 = vpack.c.bf16 %v1824, %v1822
        %v1867 = vpack.c.bf16 %v1827, %v1825
        %v1868 = vpack.c.bf16 %v1828, %v1826
        %v1869 = vpack.c.bf16 %v1831, %v1829
        %v1870 = vpack.c.bf16 %v1832, %v1830
        %v1871 = vpack.c.bf16 %v1835, %v1833
        %v1872 = vpack.c.bf16 %v1836, %v1834
        %v1873 = vpack.c.bf16 %v1839, %v1837
        %v1874 = vpack.c.bf16 %v1840, %v1838
        %v1875 = vpack.c.bf16 %v1843, %v1841
        %v1876 = vpack.c.bf16 %v1844, %v1842
        %1877 = vset.pattern.permute.xlu0 5
        %1878 = vperm.xlu0 %1877, %v242
        %v1879 = vpop.permute.xlu0 %1878
        %1880 = vset.pattern.permute.xlu0 5
        %1881 = vperm.xlu0 %1880, %v243
        %v1882 = vpop.permute.xlu0 %1881
        %1883 = vset.pattern.permute.xlu0 5
        %1884 = vperm.xlu0 %1883, %v244
        %v1885 = vpop.permute.xlu0 %1884
        %1886 = vset.pattern.permute.xlu0 5
        %1887 = vperm.xlu0 %1886, %v245
        %v1888 = vpop.permute.xlu0 %1887
        %1889 = vset.pattern.permute.xlu0 5
        %1890 = vperm.xlu0 %1889, %v246
        %v1891 = vpop.permute.xlu0 %1890
        %1892 = vset.pattern.permute.xlu0 5
        %1893 = vperm.xlu0 %1892, %v247
        %v1894 = vpop.permute.xlu0 %1893
        %1895 = vset.pattern.permute.xlu0 5
        %1896 = vperm.xlu0 %1895, %v248
        %v1897 = vpop.permute.xlu0 %1896
        %1898 = vset.pattern.permute.xlu0 5
        %1899 = vperm.xlu0 %1898, %v249
        %v1900 = vpop.permute.xlu0 %1899
        %1901 = vset.pattern.permute.xlu0 5
        %1902 = vperm.xlu0 %1901, %v250
        %v1903 = vpop.permute.xlu0 %1902
        %1904 = vset.pattern.permute.xlu0 5
        %1905 = vperm.xlu0 %1904, %v251
        %v1906 = vpop.permute.xlu0 %1905
        %1907 = vset.pattern.permute.xlu0 5
        %1908 = vperm.xlu0 %1907, %v252
        %v1909 = vpop.permute.xlu0 %1908
        %1910 = vset.pattern.permute.xlu0 5
        %1911 = vperm.xlu0 %1910, %v253
        %v1912 = vpop.permute.xlu0 %1911
        %1913 = vset.pattern.permute.xlu0 5
        %1914 = vperm.xlu0 %1913, %v254
        %v1915 = vpop.permute.xlu0 %1914
        %1916 = vset.pattern.permute.xlu0 5
        %1917 = vperm.xlu0 %1916, %v255
        %v1918 = vpop.permute.xlu0 %1917
        %1919 = vset.pattern.permute.xlu0 5
        %1920 = vperm.xlu0 %1919, %v256
        %v1921 = vpop.permute.xlu0 %1920
        %1922 = vset.pattern.permute.xlu0 5
        %1923 = vperm.xlu0 %1922, %v257
        %v1924 = vpop.permute.xlu0 %1923
        %1925 = vset.pattern.permute.xlu0 5
        %1926 = vperm.xlu0 %1925, %v258
        %v1927 = vpop.permute.xlu0 %1926
        %1928 = vset.pattern.permute.xlu0 5
        %1929 = vperm.xlu0 %1928, %v259
        %v1930 = vpop.permute.xlu0 %1929
        %1931 = vset.pattern.permute.xlu0 5
        %1932 = vperm.xlu0 %1931, %v260
        %v1933 = vpop.permute.xlu0 %1932
        %1934 = vset.pattern.permute.xlu0 5
        %1935 = vperm.xlu0 %1934, %v261
        %v1936 = vpop.permute.xlu0 %1935
        %1937 = vset.pattern.permute.xlu0 5
        %1938 = vperm.xlu0 %1937, %v262
        %v1939 = vpop.permute.xlu0 %1938
        %1940 = vset.pattern.permute.xlu0 5
        %1941 = vperm.xlu0 %1940, %v263
        %v1942 = vpop.permute.xlu0 %1941
        %1943 = vset.pattern.permute.xlu0 5
        %1944 = vperm.xlu0 %1943, %v264
        %v1945 = vpop.permute.xlu0 %1944
        %1946 = vset.pattern.permute.xlu0 5
        %1947 = vperm.xlu0 %1946, %v265
        %v1948 = vpop.permute.xlu0 %1947
        %1949 = vset.pattern.permute.xlu0 5
        %1950 = vperm.xlu0 %1949, %v266
        %v1951 = vpop.permute.xlu0 %1950
        %1952 = vset.pattern.permute.xlu0 5
        %1953 = vperm.xlu0 %1952, %v267
        %v1954 = vpop.permute.xlu0 %1953
        %1955 = vset.pattern.permute.xlu0 5
        %1956 = vperm.xlu0 %1955, %v268
        %v1957 = vpop.permute.xlu0 %1956
        %1958 = vset.pattern.permute.xlu0 5
        %1959 = vperm.xlu0 %1958, %v269
        %v1960 = vpop.permute.xlu0 %1959
        %1961 = vset.pattern.permute.xlu0 5
        %1962 = vperm.xlu0 %1961, %v270
        %v1963 = vpop.permute.xlu0 %1962
        %1964 = vset.pattern.permute.xlu0 5
        %1965 = vperm.xlu0 %1964, %v271
        %v1966 = vpop.permute.xlu0 %1965
        %1967 = vset.pattern.permute.xlu0 5
        %1968 = vperm.xlu0 %1967, %v272
        %v1969 = vpop.permute.xlu0 %1968
        %1970 = vset.pattern.permute.xlu0 5
        %1971 = vperm.xlu0 %1970, %v273
        %v1972 = vpop.permute.xlu0 %1971
        %vm1973 = vcmp.eq.s32.totalorder %v275, %v1879
        %vm1974 = vcmp.eq.s32.totalorder %v276, %v1879
        %vm1975 = vcmp.eq.s32.totalorder %v275, %v1882
        %vm1976 = vcmp.eq.s32.totalorder %v276, %v1882
        %vm1977 = vcmp.eq.s32.totalorder %v275, %v1885
        %vm1978 = vcmp.eq.s32.totalorder %v276, %v1885
        %vm1979 = vcmp.eq.s32.totalorder %v275, %v1888
        %vm1980 = vcmp.eq.s32.totalorder %v276, %v1888
        %vm1981 = vcmp.eq.s32.totalorder %v275, %v1891
        %vm1982 = vcmp.eq.s32.totalorder %v276, %v1891
        %vm1983 = vcmp.eq.s32.totalorder %v275, %v1894
        %vm1984 = vcmp.eq.s32.totalorder %v276, %v1894
        %vm1985 = vcmp.eq.s32.totalorder %v275, %v1897
        %vm1986 = vcmp.eq.s32.totalorder %v276, %v1897
        %vm1987 = vcmp.eq.s32.totalorder %v275, %v1900
        %vm1988 = vcmp.eq.s32.totalorder %v276, %v1900
        %vm1989 = vcmp.eq.s32.totalorder %v275, %v1903
        %vm1990 = vcmp.eq.s32.totalorder %v276, %v1903
        %vm1991 = vcmp.eq.s32.totalorder %v275, %v1906
        %vm1992 = vcmp.eq.s32.totalorder %v276, %v1906
        %vm1993 = vcmp.eq.s32.totalorder %v275, %v1909
        %vm1994 = vcmp.eq.s32.totalorder %v276, %v1909
        %vm1995 = vcmp.eq.s32.totalorder %v275, %v1912
        %vm1996 = vcmp.eq.s32.totalorder %v276, %v1912
        %vm1997 = vcmp.eq.s32.totalorder %v275, %v1915
        %vm1998 = vcmp.eq.s32.totalorder %v276, %v1915
        %vm1999 = vcmp.eq.s32.totalorder %v275, %v1918
        %vm2000 = vcmp.eq.s32.totalorder %v276, %v1918
        %vm2001 = vcmp.eq.s32.totalorder %v275, %v1921
        %vm2002 = vcmp.eq.s32.totalorder %v276, %v1921
        %vm2003 = vcmp.eq.s32.totalorder %v275, %v1924
        %vm2004 = vcmp.eq.s32.totalorder %v276, %v1924
        %vm2005 = vcmp.eq.s32.totalorder %v275, %v1927
        %vm2006 = vcmp.eq.s32.totalorder %v276, %v1927
        %vm2007 = vcmp.eq.s32.totalorder %v275, %v1930
        %vm2008 = vcmp.eq.s32.totalorder %v276, %v1930
        %vm2009 = vcmp.eq.s32.totalorder %v275, %v1933
        %vm2010 = vcmp.eq.s32.totalorder %v276, %v1933
        %vm2011 = vcmp.eq.s32.totalorder %v275, %v1936
        %vm2012 = vcmp.eq.s32.totalorder %v276, %v1936
        %vm2013 = vcmp.eq.s32.totalorder %v275, %v1939
        %vm2014 = vcmp.eq.s32.totalorder %v276, %v1939
        %vm2015 = vcmp.eq.s32.totalorder %v275, %v1942
        %vm2016 = vcmp.eq.s32.totalorder %v276, %v1942
        %vm2017 = vcmp.eq.s32.totalorder %v275, %v1945
        %vm2018 = vcmp.eq.s32.totalorder %v276, %v1945
        %vm2019 = vcmp.eq.s32.totalorder %v275, %v1948
        %vm2020 = vcmp.eq.s32.totalorder %v276, %v1948
        %vm2021 = vcmp.eq.s32.totalorder %v275, %v1951
        %vm2022 = vcmp.eq.s32.totalorder %v276, %v1951
        %vm2023 = vcmp.eq.s32.totalorder %v275, %v1954
        %vm2024 = vcmp.eq.s32.totalorder %v276, %v1954
        %vm2025 = vcmp.eq.s32.totalorder %v275, %v1957
        %vm2026 = vcmp.eq.s32.totalorder %v276, %v1957
        %vm2027 = vcmp.eq.s32.totalorder %v275, %v1960
        %vm2028 = vcmp.eq.s32.totalorder %v276, %v1960
        %vm2029 = vcmp.eq.s32.totalorder %v275, %v1963
        %vm2030 = vcmp.eq.s32.totalorder %v276, %v1963
        %vm2031 = vcmp.eq.s32.totalorder %v275, %v1966
        %vm2032 = vcmp.eq.s32.totalorder %v276, %v1966
        %vm2033 = vcmp.eq.s32.totalorder %v275, %v1969
        %vm2034 = vcmp.eq.s32.totalorder %v276, %v1969
        %vm2035 = vcmp.eq.s32.totalorder %v275, %v1972
        %vm2036 = vcmp.eq.s32.totalorder %v276, %v1972
        %v2037 = vsel %vm1973, 1, 0
        %v2038 = vsel %vm1974, 1, 0
        %v2039 = vsel %vm1975, 1, 0
        %v2040 = vsel %vm1976, 1, 0
        %v2041 = vsel %vm1977, 1, 0
        %v2042 = vsel %vm1978, 1, 0
        %v2043 = vsel %vm1979, 1, 0
        %v2044 = vsel %vm1980, 1, 0
        %v2045 = vsel %vm1981, 1, 0
        %v2046 = vsel %vm1982, 1, 0
        %v2047 = vsel %vm1983, 1, 0
        %v2048 = vsel %vm1984, 1, 0
        %v2049 = vsel %vm1985, 1, 0
        %v2050 = vsel %vm1986, 1, 0
        %v2051 = vsel %vm1987, 1, 0
        %v2052 = vsel %vm1988, 1, 0
        %v2053 = vsel %vm1989, 1, 0
        %v2054 = vsel %vm1990, 1, 0
        %v2055 = vsel %vm1991, 1, 0
        %v2056 = vsel %vm1992, 1, 0
        %v2057 = vsel %vm1993, 1, 0
        %v2058 = vsel %vm1994, 1, 0
        %v2059 = vsel %vm1995, 1, 0
        %v2060 = vsel %vm1996, 1, 0
        %v2061 = vsel %vm1997, 1, 0
        %v2062 = vsel %vm1998, 1, 0
        %v2063 = vsel %vm1999, 1, 0
        %v2064 = vsel %vm2000, 1, 0
        %v2065 = vsel %vm2001, 1, 0
        %v2066 = vsel %vm2002, 1, 0
        %v2067 = vsel %vm2003, 1, 0
        %v2068 = vsel %vm2004, 1, 0
        %v2069 = vsel %vm2005, 1, 0
        %v2070 = vsel %vm2006, 1, 0
        %v2071 = vsel %vm2007, 1, 0
        %v2072 = vsel %vm2008, 1, 0
        %v2073 = vsel %vm2009, 1, 0
        %v2074 = vsel %vm2010, 1, 0
        %v2075 = vsel %vm2011, 1, 0
        %v2076 = vsel %vm2012, 1, 0
        %v2077 = vsel %vm2013, 1, 0
        %v2078 = vsel %vm2014, 1, 0
        %v2079 = vsel %vm2015, 1, 0
        %v2080 = vsel %vm2016, 1, 0
        %v2081 = vsel %vm2017, 1, 0
        %v2082 = vsel %vm2018, 1, 0
        %v2083 = vsel %vm2019, 1, 0
        %v2084 = vsel %vm2020, 1, 0
        %v2085 = vsel %vm2021, 1, 0
        %v2086 = vsel %vm2022, 1, 0
        %v2087 = vsel %vm2023, 1, 0
        %v2088 = vsel %vm2024, 1, 0
        %v2089 = vsel %vm2025, 1, 0
        %v2090 = vsel %vm2026, 1, 0
        %v2091 = vsel %vm2027, 1, 0
        %v2092 = vsel %vm2028, 1, 0
        %v2093 = vsel %vm2029, 1, 0
        %v2094 = vsel %vm2030, 1, 0
        %v2095 = vsel %vm2031, 1, 0
        %v2096 = vsel %vm2032, 1, 0
        %v2097 = vsel %vm2033, 1, 0
        %v2098 = vsel %vm2034, 1, 0
        %v2099 = vsel %vm2035, 1, 0
        %v2100 = vsel %vm2036, 1, 0
        %v2101 = vcvt.s32.f32 %v2037
        %v2102 = vcvt.s32.f32 %v2038
        %v2103 = vcvt.s32.f32 %v2039
        %v2104 = vcvt.s32.f32 %v2040
        %v2105 = vcvt.s32.f32 %v2041
        %v2106 = vcvt.s32.f32 %v2042
        %v2107 = vcvt.s32.f32 %v2043
        %v2108 = vcvt.s32.f32 %v2044
        %v2109 = vcvt.s32.f32 %v2045
        %v2110 = vcvt.s32.f32 %v2046
        %v2111 = vcvt.s32.f32 %v2047
        %v2112 = vcvt.s32.f32 %v2048
        %v2113 = vcvt.s32.f32 %v2049
        %v2114 = vcvt.s32.f32 %v2050
        %v2115 = vcvt.s32.f32 %v2051
        %v2116 = vcvt.s32.f32 %v2052
        %v2117 = vcvt.s32.f32 %v2053
        %v2118 = vcvt.s32.f32 %v2054
        %v2119 = vcvt.s32.f32 %v2055
        %v2120 = vcvt.s32.f32 %v2056
        %v2121 = vcvt.s32.f32 %v2057
        %v2122 = vcvt.s32.f32 %v2058
        %v2123 = vcvt.s32.f32 %v2059
        %v2124 = vcvt.s32.f32 %v2060
        %v2125 = vcvt.s32.f32 %v2061
        %v2126 = vcvt.s32.f32 %v2062
        %v2127 = vcvt.s32.f32 %v2063
        %v2128 = vcvt.s32.f32 %v2064
        %v2129 = vcvt.s32.f32 %v2065
        %v2130 = vcvt.s32.f32 %v2066
        %v2131 = vcvt.s32.f32 %v2067
        %v2132 = vcvt.s32.f32 %v2068
        %v2133 = vcvt.s32.f32 %v2069
        %v2134 = vcvt.s32.f32 %v2070
        %v2135 = vcvt.s32.f32 %v2071
        %v2136 = vcvt.s32.f32 %v2072
        %v2137 = vcvt.s32.f32 %v2073
        %v2138 = vcvt.s32.f32 %v2074
        %v2139 = vcvt.s32.f32 %v2075
        %v2140 = vcvt.s32.f32 %v2076
        %v2141 = vcvt.s32.f32 %v2077
        %v2142 = vcvt.s32.f32 %v2078
        %v2143 = vcvt.s32.f32 %v2079
        %v2144 = vcvt.s32.f32 %v2080
        %v2145 = vcvt.s32.f32 %v2081
        %v2146 = vcvt.s32.f32 %v2082
        %v2147 = vcvt.s32.f32 %v2083
        %v2148 = vcvt.s32.f32 %v2084
        %v2149 = vcvt.s32.f32 %v2085
        %v2150 = vcvt.s32.f32 %v2086
        %v2151 = vcvt.s32.f32 %v2087
        %v2152 = vcvt.s32.f32 %v2088
        %v2153 = vcvt.s32.f32 %v2089
        %v2154 = vcvt.s32.f32 %v2090
        %v2155 = vcvt.s32.f32 %v2091
        %v2156 = vcvt.s32.f32 %v2092
        %v2157 = vcvt.s32.f32 %v2093
        %v2158 = vcvt.s32.f32 %v2094
        %v2159 = vcvt.s32.f32 %v2095
        %v2160 = vcvt.s32.f32 %v2096
        %v2161 = vcvt.s32.f32 %v2097
        %v2162 = vcvt.s32.f32 %v2098
        %v2163 = vcvt.s32.f32 %v2099
        %v2164 = vcvt.s32.f32 %v2100
        %v2165 = vpack.c.bf16 %v2103, %v2101
        %v2166 = vpack.c.bf16 %v2104, %v2102
        %v2167 = vpack.c.bf16 %v2107, %v2105
        %v2168 = vpack.c.bf16 %v2108, %v2106
        %v2169 = vpack.c.bf16 %v2111, %v2109
        %v2170 = vpack.c.bf16 %v2112, %v2110
        %v2171 = vpack.c.bf16 %v2115, %v2113
        %v2172 = vpack.c.bf16 %v2116, %v2114
        %v2173 = vpack.c.bf16 %v2119, %v2117
        %v2174 = vpack.c.bf16 %v2120, %v2118
        %v2175 = vpack.c.bf16 %v2123, %v2121
        %v2176 = vpack.c.bf16 %v2124, %v2122
        %v2177 = vpack.c.bf16 %v2127, %v2125
        %v2178 = vpack.c.bf16 %v2128, %v2126
        %v2179 = vpack.c.bf16 %v2131, %v2129
        %v2180 = vpack.c.bf16 %v2132, %v2130
        %v2181 = vpack.c.bf16 %v2135, %v2133
        %v2182 = vpack.c.bf16 %v2136, %v2134
        %v2183 = vpack.c.bf16 %v2139, %v2137
        %v2184 = vpack.c.bf16 %v2140, %v2138
        %v2185 = vpack.c.bf16 %v2143, %v2141
        %v2186 = vpack.c.bf16 %v2144, %v2142
        %v2187 = vpack.c.bf16 %v2147, %v2145
        %v2188 = vpack.c.bf16 %v2148, %v2146
        %v2189 = vpack.c.bf16 %v2151, %v2149
        %v2190 = vpack.c.bf16 %v2152, %v2150
        %v2191 = vpack.c.bf16 %v2155, %v2153
        %v2192 = vpack.c.bf16 %v2156, %v2154
        %v2193 = vpack.c.bf16 %v2159, %v2157
        %v2194 = vpack.c.bf16 %v2160, %v2158
        %v2195 = vpack.c.bf16 %v2163, %v2161
        %v2196 = vpack.c.bf16 %v2164, %v2162
        %2197 = vset.pattern.permute.xlu0 6
        %2198 = vperm.xlu0 %2197, %v242
        %v2199 = vpop.permute.xlu0 %2198
        %2200 = vset.pattern.permute.xlu0 6
        %2201 = vperm.xlu0 %2200, %v243
        %v2202 = vpop.permute.xlu0 %2201
        %2203 = vset.pattern.permute.xlu0 6
        %2204 = vperm.xlu0 %2203, %v244
        %v2205 = vpop.permute.xlu0 %2204
        %2206 = vset.pattern.permute.xlu0 6
        %2207 = vperm.xlu0 %2206, %v245
        %v2208 = vpop.permute.xlu0 %2207
        %2209 = vset.pattern.permute.xlu0 6
        %2210 = vperm.xlu0 %2209, %v246
        %v2211 = vpop.permute.xlu0 %2210
        %2212 = vset.pattern.permute.xlu0 6
        %2213 = vperm.xlu0 %2212, %v247
        %v2214 = vpop.permute.xlu0 %2213
        %2215 = vset.pattern.permute.xlu0 6
        %2216 = vperm.xlu0 %2215, %v248
        %v2217 = vpop.permute.xlu0 %2216
        %2218 = vset.pattern.permute.xlu0 6
        %2219 = vperm.xlu0 %2218, %v249
        %v2220 = vpop.permute.xlu0 %2219
        %2221 = vset.pattern.permute.xlu0 6
        %2222 = vperm.xlu0 %2221, %v250
        %v2223 = vpop.permute.xlu0 %2222
        %2224 = vset.pattern.permute.xlu0 6
        %2225 = vperm.xlu0 %2224, %v251
        %v2226 = vpop.permute.xlu0 %2225
        %2227 = vset.pattern.permute.xlu0 6
        %2228 = vperm.xlu0 %2227, %v252
        %v2229 = vpop.permute.xlu0 %2228
        %2230 = vset.pattern.permute.xlu0 6
        %2231 = vperm.xlu0 %2230, %v253
        %v2232 = vpop.permute.xlu0 %2231
        %2233 = vset.pattern.permute.xlu0 6
        %2234 = vperm.xlu0 %2233, %v254
        %v2235 = vpop.permute.xlu0 %2234
        %2236 = vset.pattern.permute.xlu0 6
        %2237 = vperm.xlu0 %2236, %v255
        %v2238 = vpop.permute.xlu0 %2237
        %2239 = vset.pattern.permute.xlu0 6
        %2240 = vperm.xlu0 %2239, %v256
        %v2241 = vpop.permute.xlu0 %2240
        %2242 = vset.pattern.permute.xlu0 6
        %2243 = vperm.xlu0 %2242, %v257
        %v2244 = vpop.permute.xlu0 %2243
        %2245 = vset.pattern.permute.xlu0 6
        %2246 = vperm.xlu0 %2245, %v258
        %v2247 = vpop.permute.xlu0 %2246
        %2248 = vset.pattern.permute.xlu0 6
        %2249 = vperm.xlu0 %2248, %v259
        %v2250 = vpop.permute.xlu0 %2249
        %2251 = vset.pattern.permute.xlu0 6
        %2252 = vperm.xlu0 %2251, %v260
        %v2253 = vpop.permute.xlu0 %2252
        %2254 = vset.pattern.permute.xlu0 6
        %2255 = vperm.xlu0 %2254, %v261
        %v2256 = vpop.permute.xlu0 %2255
        %2257 = vset.pattern.permute.xlu0 6
        %2258 = vperm.xlu0 %2257, %v262
        %v2259 = vpop.permute.xlu0 %2258
        %2260 = vset.pattern.permute.xlu0 6
        %2261 = vperm.xlu0 %2260, %v263
        %v2262 = vpop.permute.xlu0 %2261
        %2263 = vset.pattern.permute.xlu0 6
        %2264 = vperm.xlu0 %2263, %v264
        %v2265 = vpop.permute.xlu0 %2264
        %2266 = vset.pattern.permute.xlu0 6
        %2267 = vperm.xlu0 %2266, %v265
        %v2268 = vpop.permute.xlu0 %2267
        %2269 = vset.pattern.permute.xlu0 6
        %2270 = vperm.xlu0 %2269, %v266
        %v2271 = vpop.permute.xlu0 %2270
        %2272 = vset.pattern.permute.xlu0 6
        %2273 = vperm.xlu0 %2272, %v267
        %v2274 = vpop.permute.xlu0 %2273
        %2275 = vset.pattern.permute.xlu0 6
        %2276 = vperm.xlu0 %2275, %v268
        %v2277 = vpop.permute.xlu0 %2276
        %2278 = vset.pattern.permute.xlu0 6
        %2279 = vperm.xlu0 %2278, %v269
        %v2280 = vpop.permute.xlu0 %2279
        %2281 = vset.pattern.permute.xlu0 6
        %2282 = vperm.xlu0 %2281, %v270
        %v2283 = vpop.permute.xlu0 %2282
        %2284 = vset.pattern.permute.xlu0 6
        %2285 = vperm.xlu0 %2284, %v271
        %v2286 = vpop.permute.xlu0 %2285
        %2287 = vset.pattern.permute.xlu0 6
        %2288 = vperm.xlu0 %2287, %v272
        %v2289 = vpop.permute.xlu0 %2288
        %2290 = vset.pattern.permute.xlu0 6
        %2291 = vperm.xlu0 %2290, %v273
        %v2292 = vpop.permute.xlu0 %2291
        %vm2293 = vcmp.eq.s32.totalorder %v275, %v2199
        %vm2294 = vcmp.eq.s32.totalorder %v276, %v2199
        %vm2295 = vcmp.eq.s32.totalorder %v275, %v2202
        %vm2296 = vcmp.eq.s32.totalorder %v276, %v2202
        %vm2297 = vcmp.eq.s32.totalorder %v275, %v2205
        %vm2298 = vcmp.eq.s32.totalorder %v276, %v2205
        %vm2299 = vcmp.eq.s32.totalorder %v275, %v2208
        %vm2300 = vcmp.eq.s32.totalorder %v276, %v2208
        %vm2301 = vcmp.eq.s32.totalorder %v275, %v2211
        %vm2302 = vcmp.eq.s32.totalorder %v276, %v2211
        %vm2303 = vcmp.eq.s32.totalorder %v275, %v2214
        %vm2304 = vcmp.eq.s32.totalorder %v276, %v2214
        %vm2305 = vcmp.eq.s32.totalorder %v275, %v2217
        %vm2306 = vcmp.eq.s32.totalorder %v276, %v2217
        %vm2307 = vcmp.eq.s32.totalorder %v275, %v2220
        %vm2308 = vcmp.eq.s32.totalorder %v276, %v2220
        %vm2309 = vcmp.eq.s32.totalorder %v275, %v2223
        %vm2310 = vcmp.eq.s32.totalorder %v276, %v2223
        %vm2311 = vcmp.eq.s32.totalorder %v275, %v2226
        %vm2312 = vcmp.eq.s32.totalorder %v276, %v2226
        %vm2313 = vcmp.eq.s32.totalorder %v275, %v2229
        %vm2314 = vcmp.eq.s32.totalorder %v276, %v2229
        %vm2315 = vcmp.eq.s32.totalorder %v275, %v2232
        %vm2316 = vcmp.eq.s32.totalorder %v276, %v2232
        %vm2317 = vcmp.eq.s32.totalorder %v275, %v2235
        %vm2318 = vcmp.eq.s32.totalorder %v276, %v2235
        %vm2319 = vcmp.eq.s32.totalorder %v275, %v2238
        %vm2320 = vcmp.eq.s32.totalorder %v276, %v2238
        %vm2321 = vcmp.eq.s32.totalorder %v275, %v2241
        %vm2322 = vcmp.eq.s32.totalorder %v276, %v2241
        %vm2323 = vcmp.eq.s32.totalorder %v275, %v2244
        %vm2324 = vcmp.eq.s32.totalorder %v276, %v2244
        %vm2325 = vcmp.eq.s32.totalorder %v275, %v2247
        %vm2326 = vcmp.eq.s32.totalorder %v276, %v2247
        %vm2327 = vcmp.eq.s32.totalorder %v275, %v2250
        %vm2328 = vcmp.eq.s32.totalorder %v276, %v2250
        %vm2329 = vcmp.eq.s32.totalorder %v275, %v2253
        %vm2330 = vcmp.eq.s32.totalorder %v276, %v2253
        %vm2331 = vcmp.eq.s32.totalorder %v275, %v2256
        %vm2332 = vcmp.eq.s32.totalorder %v276, %v2256
        %vm2333 = vcmp.eq.s32.totalorder %v275, %v2259
        %vm2334 = vcmp.eq.s32.totalorder %v276, %v2259
        %vm2335 = vcmp.eq.s32.totalorder %v275, %v2262
        %vm2336 = vcmp.eq.s32.totalorder %v276, %v2262
        %vm2337 = vcmp.eq.s32.totalorder %v275, %v2265
        %vm2338 = vcmp.eq.s32.totalorder %v276, %v2265
        %vm2339 = vcmp.eq.s32.totalorder %v275, %v2268
        %vm2340 = vcmp.eq.s32.totalorder %v276, %v2268
        %vm2341 = vcmp.eq.s32.totalorder %v275, %v2271
        %vm2342 = vcmp.eq.s32.totalorder %v276, %v2271
        %vm2343 = vcmp.eq.s32.totalorder %v275, %v2274
        %vm2344 = vcmp.eq.s32.totalorder %v276, %v2274
        %vm2345 = vcmp.eq.s32.totalorder %v275, %v2277
        %vm2346 = vcmp.eq.s32.totalorder %v276, %v2277
        %vm2347 = vcmp.eq.s32.totalorder %v275, %v2280
        %vm2348 = vcmp.eq.s32.totalorder %v276, %v2280
        %vm2349 = vcmp.eq.s32.totalorder %v275, %v2283
        %vm2350 = vcmp.eq.s32.totalorder %v276, %v2283
        %vm2351 = vcmp.eq.s32.totalorder %v275, %v2286
        %vm2352 = vcmp.eq.s32.totalorder %v276, %v2286
        %vm2353 = vcmp.eq.s32.totalorder %v275, %v2289
        %vm2354 = vcmp.eq.s32.totalorder %v276, %v2289
        %vm2355 = vcmp.eq.s32.totalorder %v275, %v2292
        %vm2356 = vcmp.eq.s32.totalorder %v276, %v2292
        %v2357 = vsel %vm2293, 1, 0
        %v2358 = vsel %vm2294, 1, 0
        %v2359 = vsel %vm2295, 1, 0
        %v2360 = vsel %vm2296, 1, 0
        %v2361 = vsel %vm2297, 1, 0
        %v2362 = vsel %vm2298, 1, 0
        %v2363 = vsel %vm2299, 1, 0
        %v2364 = vsel %vm2300, 1, 0
        %v2365 = vsel %vm2301, 1, 0
        %v2366 = vsel %vm2302, 1, 0
        %v2367 = vsel %vm2303, 1, 0
        %v2368 = vsel %vm2304, 1, 0
        %v2369 = vsel %vm2305, 1, 0
        %v2370 = vsel %vm2306, 1, 0
        %v2371 = vsel %vm2307, 1, 0
        %v2372 = vsel %vm2308, 1, 0
        %v2373 = vsel %vm2309, 1, 0
        %v2374 = vsel %vm2310, 1, 0
        %v2375 = vsel %vm2311, 1, 0
        %v2376 = vsel %vm2312, 1, 0
        %v2377 = vsel %vm2313, 1, 0
        %v2378 = vsel %vm2314, 1, 0
        %v2379 = vsel %vm2315, 1, 0
        %v2380 = vsel %vm2316, 1, 0
        %v2381 = vsel %vm2317, 1, 0
        %v2382 = vsel %vm2318, 1, 0
        %v2383 = vsel %vm2319, 1, 0
        %v2384 = vsel %vm2320, 1, 0
        %v2385 = vsel %vm2321, 1, 0
        %v2386 = vsel %vm2322, 1, 0
        %v2387 = vsel %vm2323, 1, 0
        %v2388 = vsel %vm2324, 1, 0
        %v2389 = vsel %vm2325, 1, 0
        %v2390 = vsel %vm2326, 1, 0
        %v2391 = vsel %vm2327, 1, 0
        %v2392 = vsel %vm2328, 1, 0
        %v2393 = vsel %vm2329, 1, 0
        %v2394 = vsel %vm2330, 1, 0
        %v2395 = vsel %vm2331, 1, 0
        %v2396 = vsel %vm2332, 1, 0
        %v2397 = vsel %vm2333, 1, 0
        %v2398 = vsel %vm2334, 1, 0
        %v2399 = vsel %vm2335, 1, 0
        %v2400 = vsel %vm2336, 1, 0
        %v2401 = vsel %vm2337, 1, 0
        %v2402 = vsel %vm2338, 1, 0
        %v2403 = vsel %vm2339, 1, 0
        %v2404 = vsel %vm2340, 1, 0
        %v2405 = vsel %vm2341, 1, 0
        %v2406 = vsel %vm2342, 1, 0
        %v2407 = vsel %vm2343, 1, 0
        %v2408 = vsel %vm2344, 1, 0
        %v2409 = vsel %vm2345, 1, 0
        %v2410 = vsel %vm2346, 1, 0
        %v2411 = vsel %vm2347, 1, 0
        %v2412 = vsel %vm2348, 1, 0
        %v2413 = vsel %vm2349, 1, 0
        %v2414 = vsel %vm2350, 1, 0
        %v2415 = vsel %vm2351, 1, 0
        %v2416 = vsel %vm2352, 1, 0
        %v2417 = vsel %vm2353, 1, 0
        %v2418 = vsel %vm2354, 1, 0
        %v2419 = vsel %vm2355, 1, 0
        %v2420 = vsel %vm2356, 1, 0
        %v2421 = vcvt.s32.f32 %v2357
        %v2422 = vcvt.s32.f32 %v2358
        %v2423 = vcvt.s32.f32 %v2359
        %v2424 = vcvt.s32.f32 %v2360
        %v2425 = vcvt.s32.f32 %v2361
        %v2426 = vcvt.s32.f32 %v2362
        %v2427 = vcvt.s32.f32 %v2363
        %v2428 = vcvt.s32.f32 %v2364
        %v2429 = vcvt.s32.f32 %v2365
        %v2430 = vcvt.s32.f32 %v2366
        %v2431 = vcvt.s32.f32 %v2367
        %v2432 = vcvt.s32.f32 %v2368
        %v2433 = vcvt.s32.f32 %v2369
        %v2434 = vcvt.s32.f32 %v2370
        %v2435 = vcvt.s32.f32 %v2371
        %v2436 = vcvt.s32.f32 %v2372
        %v2437 = vcvt.s32.f32 %v2373
        %v2438 = vcvt.s32.f32 %v2374
        %v2439 = vcvt.s32.f32 %v2375
        %v2440 = vcvt.s32.f32 %v2376
        %v2441 = vcvt.s32.f32 %v2377
        %v2442 = vcvt.s32.f32 %v2378
        %v2443 = vcvt.s32.f32 %v2379
        %v2444 = vcvt.s32.f32 %v2380
        %v2445 = vcvt.s32.f32 %v2381
        %v2446 = vcvt.s32.f32 %v2382
        %v2447 = vcvt.s32.f32 %v2383
        %v2448 = vcvt.s32.f32 %v2384
        %v2449 = vcvt.s32.f32 %v2385
        %v2450 = vcvt.s32.f32 %v2386
        %v2451 = vcvt.s32.f32 %v2387
        %v2452 = vcvt.s32.f32 %v2388
        %v2453 = vcvt.s32.f32 %v2389
        %v2454 = vcvt.s32.f32 %v2390
        %v2455 = vcvt.s32.f32 %v2391
        %v2456 = vcvt.s32.f32 %v2392
        %v2457 = vcvt.s32.f32 %v2393
        %v2458 = vcvt.s32.f32 %v2394
        %v2459 = vcvt.s32.f32 %v2395
        %v2460 = vcvt.s32.f32 %v2396
        %v2461 = vcvt.s32.f32 %v2397
        %v2462 = vcvt.s32.f32 %v2398
        %v2463 = vcvt.s32.f32 %v2399
        %v2464 = vcvt.s32.f32 %v2400
        %v2465 = vcvt.s32.f32 %v2401
        %v2466 = vcvt.s32.f32 %v2402
        %v2467 = vcvt.s32.f32 %v2403
        %v2468 = vcvt.s32.f32 %v2404
        %v2469 = vcvt.s32.f32 %v2405
        %v2470 = vcvt.s32.f32 %v2406
        %v2471 = vcvt.s32.f32 %v2407
        %v2472 = vcvt.s32.f32 %v2408
        %v2473 = vcvt.s32.f32 %v2409
        %v2474 = vcvt.s32.f32 %v2410
        %v2475 = vcvt.s32.f32 %v2411
        %v2476 = vcvt.s32.f32 %v2412
        %v2477 = vcvt.s32.f32 %v2413
        %v2478 = vcvt.s32.f32 %v2414
        %v2479 = vcvt.s32.f32 %v2415
        %v2480 = vcvt.s32.f32 %v2416
        %v2481 = vcvt.s32.f32 %v2417
        %v2482 = vcvt.s32.f32 %v2418
        %v2483 = vcvt.s32.f32 %v2419
        %v2484 = vcvt.s32.f32 %v2420
        %v2485 = vpack.c.bf16 %v2423, %v2421
        %v2486 = vpack.c.bf16 %v2424, %v2422
        %v2487 = vpack.c.bf16 %v2427, %v2425
        %v2488 = vpack.c.bf16 %v2428, %v2426
        %v2489 = vpack.c.bf16 %v2431, %v2429
        %v2490 = vpack.c.bf16 %v2432, %v2430
        %v2491 = vpack.c.bf16 %v2435, %v2433
        %v2492 = vpack.c.bf16 %v2436, %v2434
        %v2493 = vpack.c.bf16 %v2439, %v2437
        %v2494 = vpack.c.bf16 %v2440, %v2438
        %v2495 = vpack.c.bf16 %v2443, %v2441
        %v2496 = vpack.c.bf16 %v2444, %v2442
        %v2497 = vpack.c.bf16 %v2447, %v2445
        %v2498 = vpack.c.bf16 %v2448, %v2446
        %v2499 = vpack.c.bf16 %v2451, %v2449
        %v2500 = vpack.c.bf16 %v2452, %v2450
        %v2501 = vpack.c.bf16 %v2455, %v2453
        %v2502 = vpack.c.bf16 %v2456, %v2454
        %v2503 = vpack.c.bf16 %v2459, %v2457
        %v2504 = vpack.c.bf16 %v2460, %v2458
        %v2505 = vpack.c.bf16 %v2463, %v2461
        %v2506 = vpack.c.bf16 %v2464, %v2462
        %v2507 = vpack.c.bf16 %v2467, %v2465
        %v2508 = vpack.c.bf16 %v2468, %v2466
        %v2509 = vpack.c.bf16 %v2471, %v2469
        %v2510 = vpack.c.bf16 %v2472, %v2470
        %v2511 = vpack.c.bf16 %v2475, %v2473
        %v2512 = vpack.c.bf16 %v2476, %v2474
        %v2513 = vpack.c.bf16 %v2479, %v2477
        %v2514 = vpack.c.bf16 %v2480, %v2478
        %v2515 = vpack.c.bf16 %v2483, %v2481
        %v2516 = vpack.c.bf16 %v2484, %v2482
        %2517 = vset.pattern.permute.xlu0 7
        %2518 = vperm.xlu0 %2517, %v242
        %v2519 = vpop.permute.xlu0 %2518
        %2520 = vset.pattern.permute.xlu0 7
        %2521 = vperm.xlu0 %2520, %v243
        %v2522 = vpop.permute.xlu0 %2521
        %2523 = vset.pattern.permute.xlu0 7
        %2524 = vperm.xlu0 %2523, %v244
        %v2525 = vpop.permute.xlu0 %2524
        %2526 = vset.pattern.permute.xlu0 7
        %2527 = vperm.xlu0 %2526, %v245
        %v2528 = vpop.permute.xlu0 %2527
        %2529 = vset.pattern.permute.xlu0 7
        %2530 = vperm.xlu0 %2529, %v246
        %v2531 = vpop.permute.xlu0 %2530
        %2532 = vset.pattern.permute.xlu0 7
        %2533 = vperm.xlu0 %2532, %v247
        %v2534 = vpop.permute.xlu0 %2533
        %2535 = vset.pattern.permute.xlu0 7
        %2536 = vperm.xlu0 %2535, %v248
        %v2537 = vpop.permute.xlu0 %2536
        %2538 = vset.pattern.permute.xlu0 7
        %2539 = vperm.xlu0 %2538, %v249
        %v2540 = vpop.permute.xlu0 %2539
        %2541 = vset.pattern.permute.xlu0 7
        %2542 = vperm.xlu0 %2541, %v250
        %v2543 = vpop.permute.xlu0 %2542
        %2544 = vset.pattern.permute.xlu0 7
        %2545 = vperm.xlu0 %2544, %v251
        %v2546 = vpop.permute.xlu0 %2545
        %2547 = vset.pattern.permute.xlu0 7
        %2548 = vperm.xlu0 %2547, %v252
        %v2549 = vpop.permute.xlu0 %2548
        %2550 = vset.pattern.permute.xlu0 7
        %2551 = vperm.xlu0 %2550, %v253
        %v2552 = vpop.permute.xlu0 %2551
        %2553 = vset.pattern.permute.xlu0 7
        %2554 = vperm.xlu0 %2553, %v254
        %v2555 = vpop.permute.xlu0 %2554
        %2556 = vset.pattern.permute.xlu0 7
        %2557 = vperm.xlu0 %2556, %v255
        %v2558 = vpop.permute.xlu0 %2557
        %2559 = vset.pattern.permute.xlu0 7
        %2560 = vperm.xlu0 %2559, %v256
        %v2561 = vpop.permute.xlu0 %2560
        %2562 = vset.pattern.permute.xlu0 7
        %2563 = vperm.xlu0 %2562, %v257
        %v2564 = vpop.permute.xlu0 %2563
        %2565 = vset.pattern.permute.xlu0 7
        %2566 = vperm.xlu0 %2565, %v258
        %v2567 = vpop.permute.xlu0 %2566
        %2568 = vset.pattern.permute.xlu0 7
        %2569 = vperm.xlu0 %2568, %v259
        %v2570 = vpop.permute.xlu0 %2569
        %2571 = vset.pattern.permute.xlu0 7
        %2572 = vperm.xlu0 %2571, %v260
        %v2573 = vpop.permute.xlu0 %2572
        %2574 = vset.pattern.permute.xlu0 7
        %2575 = vperm.xlu0 %2574, %v261
        %v2576 = vpop.permute.xlu0 %2575
        %2577 = vset.pattern.permute.xlu0 7
        %2578 = vperm.xlu0 %2577, %v262
        %v2579 = vpop.permute.xlu0 %2578
        %2580 = vset.pattern.permute.xlu0 7
        %2581 = vperm.xlu0 %2580, %v263
        %v2582 = vpop.permute.xlu0 %2581
        %2583 = vset.pattern.permute.xlu0 7
        %2584 = vperm.xlu0 %2583, %v264
        %v2585 = vpop.permute.xlu0 %2584
        %2586 = vset.pattern.permute.xlu0 7
        %2587 = vperm.xlu0 %2586, %v265
        %v2588 = vpop.permute.xlu0 %2587
        %2589 = vset.pattern.permute.xlu0 7
        %2590 = vperm.xlu0 %2589, %v266
        %v2591 = vpop.permute.xlu0 %2590
        %2592 = vset.pattern.permute.xlu0 7
        %2593 = vperm.xlu0 %2592, %v267
        %v2594 = vpop.permute.xlu0 %2593
        %2595 = vset.pattern.permute.xlu0 7
        %2596 = vperm.xlu0 %2595, %v268
        %v2597 = vpop.permute.xlu0 %2596
        %2598 = vset.pattern.permute.xlu0 7
        %2599 = vperm.xlu0 %2598, %v269
        %v2600 = vpop.permute.xlu0 %2599
        %2601 = vset.pattern.permute.xlu0 7
        %2602 = vperm.xlu0 %2601, %v270
        %v2603 = vpop.permute.xlu0 %2602
        %2604 = vset.pattern.permute.xlu0 7
        %2605 = vperm.xlu0 %2604, %v271
        %v2606 = vpop.permute.xlu0 %2605
        %2607 = vset.pattern.permute.xlu0 7
        %2608 = vperm.xlu0 %2607, %v272
        %v2609 = vpop.permute.xlu0 %2608
        %2610 = vset.pattern.permute.xlu0 7
        %2611 = vperm.xlu0 %2610, %v273
        %v2612 = vpop.permute.xlu0 %2611
        %vm2613 = vcmp.eq.s32.totalorder %v275, %v2519
        %vm2614 = vcmp.eq.s32.totalorder %v276, %v2519
        %vm2615 = vcmp.eq.s32.totalorder %v275, %v2522
        %vm2616 = vcmp.eq.s32.totalorder %v276, %v2522
        %vm2617 = vcmp.eq.s32.totalorder %v275, %v2525
        %vm2618 = vcmp.eq.s32.totalorder %v276, %v2525
        %vm2619 = vcmp.eq.s32.totalorder %v275, %v2528
        %vm2620 = vcmp.eq.s32.totalorder %v276, %v2528
        %vm2621 = vcmp.eq.s32.totalorder %v275, %v2531
        %vm2622 = vcmp.eq.s32.totalorder %v276, %v2531
        %vm2623 = vcmp.eq.s32.totalorder %v275, %v2534
        %vm2624 = vcmp.eq.s32.totalorder %v276, %v2534
        %vm2625 = vcmp.eq.s32.totalorder %v275, %v2537
        %vm2626 = vcmp.eq.s32.totalorder %v276, %v2537
        %vm2627 = vcmp.eq.s32.totalorder %v275, %v2540
        %vm2628 = vcmp.eq.s32.totalorder %v276, %v2540
        %vm2629 = vcmp.eq.s32.totalorder %v275, %v2543
        %vm2630 = vcmp.eq.s32.totalorder %v276, %v2543
        %vm2631 = vcmp.eq.s32.totalorder %v275, %v2546
        %vm2632 = vcmp.eq.s32.totalorder %v276, %v2546
        %vm2633 = vcmp.eq.s32.totalorder %v275, %v2549
        %vm2634 = vcmp.eq.s32.totalorder %v276, %v2549
        %vm2635 = vcmp.eq.s32.totalorder %v275, %v2552
        %vm2636 = vcmp.eq.s32.totalorder %v276, %v2552
        %vm2637 = vcmp.eq.s32.totalorder %v275, %v2555
        %vm2638 = vcmp.eq.s32.totalorder %v276, %v2555
        %vm2639 = vcmp.eq.s32.totalorder %v275, %v2558
        %vm2640 = vcmp.eq.s32.totalorder %v276, %v2558
        %vm2641 = vcmp.eq.s32.totalorder %v275, %v2561
        %vm2642 = vcmp.eq.s32.totalorder %v276, %v2561
        %vm2643 = vcmp.eq.s32.totalorder %v275, %v2564
        %vm2644 = vcmp.eq.s32.totalorder %v276, %v2564
        %vm2645 = vcmp.eq.s32.totalorder %v275, %v2567
        %vm2646 = vcmp.eq.s32.totalorder %v276, %v2567
        %vm2647 = vcmp.eq.s32.totalorder %v275, %v2570
        %vm2648 = vcmp.eq.s32.totalorder %v276, %v2570
        %vm2649 = vcmp.eq.s32.totalorder %v275, %v2573
        %vm2650 = vcmp.eq.s32.totalorder %v276, %v2573
        %vm2651 = vcmp.eq.s32.totalorder %v275, %v2576
        %vm2652 = vcmp.eq.s32.totalorder %v276, %v2576
        %vm2653 = vcmp.eq.s32.totalorder %v275, %v2579
        %vm2654 = vcmp.eq.s32.totalorder %v276, %v2579
        %vm2655 = vcmp.eq.s32.totalorder %v275, %v2582
        %vm2656 = vcmp.eq.s32.totalorder %v276, %v2582
        %vm2657 = vcmp.eq.s32.totalorder %v275, %v2585
        %vm2658 = vcmp.eq.s32.totalorder %v276, %v2585
        %vm2659 = vcmp.eq.s32.totalorder %v275, %v2588
        %vm2660 = vcmp.eq.s32.totalorder %v276, %v2588
        %vm2661 = vcmp.eq.s32.totalorder %v275, %v2591
        %vm2662 = vcmp.eq.s32.totalorder %v276, %v2591
        %vm2663 = vcmp.eq.s32.totalorder %v275, %v2594
        %vm2664 = vcmp.eq.s32.totalorder %v276, %v2594
        %vm2665 = vcmp.eq.s32.totalorder %v275, %v2597
        %vm2666 = vcmp.eq.s32.totalorder %v276, %v2597
        %vm2667 = vcmp.eq.s32.totalorder %v275, %v2600
        %vm2668 = vcmp.eq.s32.totalorder %v276, %v2600
        %vm2669 = vcmp.eq.s32.totalorder %v275, %v2603
        %vm2670 = vcmp.eq.s32.totalorder %v276, %v2603
        %vm2671 = vcmp.eq.s32.totalorder %v275, %v2606
        %vm2672 = vcmp.eq.s32.totalorder %v276, %v2606
        %vm2673 = vcmp.eq.s32.totalorder %v275, %v2609
        %vm2674 = vcmp.eq.s32.totalorder %v276, %v2609
        %vm2675 = vcmp.eq.s32.totalorder %v275, %v2612
        %vm2676 = vcmp.eq.s32.totalorder %v276, %v2612
        %v2677 = vsel %vm2613, 1, 0
        %v2678 = vsel %vm2614, 1, 0
        %v2679 = vsel %vm2615, 1, 0
        %v2680 = vsel %vm2616, 1, 0
        %v2681 = vsel %vm2617, 1, 0
        %v2682 = vsel %vm2618, 1, 0
        %v2683 = vsel %vm2619, 1, 0
        %v2684 = vsel %vm2620, 1, 0
        %v2685 = vsel %vm2621, 1, 0
        %v2686 = vsel %vm2622, 1, 0
        %v2687 = vsel %vm2623, 1, 0
        %v2688 = vsel %vm2624, 1, 0
        %v2689 = vsel %vm2625, 1, 0
        %v2690 = vsel %vm2626, 1, 0
        %v2691 = vsel %vm2627, 1, 0
        %v2692 = vsel %vm2628, 1, 0
        %v2693 = vsel %vm2629, 1, 0
        %v2694 = vsel %vm2630, 1, 0
        %v2695 = vsel %vm2631, 1, 0
        %v2696 = vsel %vm2632, 1, 0
        %v2697 = vsel %vm2633, 1, 0
        %v2698 = vsel %vm2634, 1, 0
        %v2699 = vsel %vm2635, 1, 0
        %v2700 = vsel %vm2636, 1, 0
        %v2701 = vsel %vm2637, 1, 0
        %v2702 = vsel %vm2638, 1, 0
        %v2703 = vsel %vm2639, 1, 0
        %v2704 = vsel %vm2640, 1, 0
        %v2705 = vsel %vm2641, 1, 0
        %v2706 = vsel %vm2642, 1, 0
        %v2707 = vsel %vm2643, 1, 0
        %v2708 = vsel %vm2644, 1, 0
        %v2709 = vsel %vm2645, 1, 0
        %v2710 = vsel %vm2646, 1, 0
        %v2711 = vsel %vm2647, 1, 0
        %v2712 = vsel %vm2648, 1, 0
        %v2713 = vsel %vm2649, 1, 0
        %v2714 = vsel %vm2650, 1, 0
        %v2715 = vsel %vm2651, 1, 0
        %v2716 = vsel %vm2652, 1, 0
        %v2717 = vsel %vm2653, 1, 0
        %v2718 = vsel %vm2654, 1, 0
        %v2719 = vsel %vm2655, 1, 0
        %v2720 = vsel %vm2656, 1, 0
        %v2721 = vsel %vm2657, 1, 0
        %v2722 = vsel %vm2658, 1, 0
        %v2723 = vsel %vm2659, 1, 0
        %v2724 = vsel %vm2660, 1, 0
        %v2725 = vsel %vm2661, 1, 0
        %v2726 = vsel %vm2662, 1, 0
        %v2727 = vsel %vm2663, 1, 0
        %v2728 = vsel %vm2664, 1, 0
        %v2729 = vsel %vm2665, 1, 0
        %v2730 = vsel %vm2666, 1, 0
        %v2731 = vsel %vm2667, 1, 0
        %v2732 = vsel %vm2668, 1, 0
        %v2733 = vsel %vm2669, 1, 0
        %v2734 = vsel %vm2670, 1, 0
        %v2735 = vsel %vm2671, 1, 0
        %v2736 = vsel %vm2672, 1, 0
        %v2737 = vsel %vm2673, 1, 0
        %v2738 = vsel %vm2674, 1, 0
        %v2739 = vsel %vm2675, 1, 0
        %v2740 = vsel %vm2676, 1, 0
        %v2741 = vcvt.s32.f32 %v2677
        %v2742 = vcvt.s32.f32 %v2678
        %v2743 = vcvt.s32.f32 %v2679
        %v2744 = vcvt.s32.f32 %v2680
        %v2745 = vcvt.s32.f32 %v2681
        %v2746 = vcvt.s32.f32 %v2682
        %v2747 = vcvt.s32.f32 %v2683
        %v2748 = vcvt.s32.f32 %v2684
        %v2749 = vcvt.s32.f32 %v2685
        %v2750 = vcvt.s32.f32 %v2686
        %v2751 = vcvt.s32.f32 %v2687
        %v2752 = vcvt.s32.f32 %v2688
        %v2753 = vcvt.s32.f32 %v2689
        %v2754 = vcvt.s32.f32 %v2690
        %v2755 = vcvt.s32.f32 %v2691
        %v2756 = vcvt.s32.f32 %v2692
        %v2757 = vcvt.s32.f32 %v2693
        %v2758 = vcvt.s32.f32 %v2694
        %v2759 = vcvt.s32.f32 %v2695
        %v2760 = vcvt.s32.f32 %v2696
        %v2761 = vcvt.s32.f32 %v2697
        %v2762 = vcvt.s32.f32 %v2698
        %v2763 = vcvt.s32.f32 %v2699
        %v2764 = vcvt.s32.f32 %v2700
        %v2765 = vcvt.s32.f32 %v2701
        %v2766 = vcvt.s32.f32 %v2702
        %v2767 = vcvt.s32.f32 %v2703
        %v2768 = vcvt.s32.f32 %v2704
        %v2769 = vcvt.s32.f32 %v2705
        %v2770 = vcvt.s32.f32 %v2706
        %v2771 = vcvt.s32.f32 %v2707
        %v2772 = vcvt.s32.f32 %v2708
        %v2773 = vcvt.s32.f32 %v2709
        %v2774 = vcvt.s32.f32 %v2710
        %v2775 = vcvt.s32.f32 %v2711
        %v2776 = vcvt.s32.f32 %v2712
        %v2777 = vcvt.s32.f32 %v2713
        %v2778 = vcvt.s32.f32 %v2714
        %v2779 = vcvt.s32.f32 %v2715
        %v2780 = vcvt.s32.f32 %v2716
        %v2781 = vcvt.s32.f32 %v2717
        %v2782 = vcvt.s32.f32 %v2718
        %v2783 = vcvt.s32.f32 %v2719
        %v2784 = vcvt.s32.f32 %v2720
        %v2785 = vcvt.s32.f32 %v2721
        %v2786 = vcvt.s32.f32 %v2722
        %v2787 = vcvt.s32.f32 %v2723
        %v2788 = vcvt.s32.f32 %v2724
        %v2789 = vcvt.s32.f32 %v2725
        %v2790 = vcvt.s32.f32 %v2726
        %v2791 = vcvt.s32.f32 %v2727
        %v2792 = vcvt.s32.f32 %v2728
        %v2793 = vcvt.s32.f32 %v2729
        %v2794 = vcvt.s32.f32 %v2730
        %v2795 = vcvt.s32.f32 %v2731
        %v2796 = vcvt.s32.f32 %v2732
        %v2797 = vcvt.s32.f32 %v2733
        %v2798 = vcvt.s32.f32 %v2734
        %v2799 = vcvt.s32.f32 %v2735
        %v2800 = vcvt.s32.f32 %v2736
        %v2801 = vcvt.s32.f32 %v2737
        %v2802 = vcvt.s32.f32 %v2738
        %v2803 = vcvt.s32.f32 %v2739
        %v2804 = vcvt.s32.f32 %v2740
        %v2805 = vpack.c.bf16 %v2743, %v2741
        %v2806 = vpack.c.bf16 %v2744, %v2742
        %v2807 = vpack.c.bf16 %v2747, %v2745
        %v2808 = vpack.c.bf16 %v2748, %v2746
        %v2809 = vpack.c.bf16 %v2751, %v2749
        %v2810 = vpack.c.bf16 %v2752, %v2750
        %v2811 = vpack.c.bf16 %v2755, %v2753
        %v2812 = vpack.c.bf16 %v2756, %v2754
        %v2813 = vpack.c.bf16 %v2759, %v2757
        %v2814 = vpack.c.bf16 %v2760, %v2758
        %v2815 = vpack.c.bf16 %v2763, %v2761
        %v2816 = vpack.c.bf16 %v2764, %v2762
        %v2817 = vpack.c.bf16 %v2767, %v2765
        %v2818 = vpack.c.bf16 %v2768, %v2766
        %v2819 = vpack.c.bf16 %v2771, %v2769
        %v2820 = vpack.c.bf16 %v2772, %v2770
        %v2821 = vpack.c.bf16 %v2775, %v2773
        %v2822 = vpack.c.bf16 %v2776, %v2774
        %v2823 = vpack.c.bf16 %v2779, %v2777
        %v2824 = vpack.c.bf16 %v2780, %v2778
        %v2825 = vpack.c.bf16 %v2783, %v2781
        %v2826 = vpack.c.bf16 %v2784, %v2782
        %v2827 = vpack.c.bf16 %v2787, %v2785
        %v2828 = vpack.c.bf16 %v2788, %v2786
        %v2829 = vpack.c.bf16 %v2791, %v2789
        %v2830 = vpack.c.bf16 %v2792, %v2790
        %v2831 = vpack.c.bf16 %v2795, %v2793
        %v2832 = vpack.c.bf16 %v2796, %v2794
        %v2833 = vpack.c.bf16 %v2799, %v2797
        %v2834 = vpack.c.bf16 %v2800, %v2798
        %v2835 = vpack.c.bf16 %v2803, %v2801
        %v2836 = vpack.c.bf16 %v2804, %v2802
        %v2837 = vld [vmem:[#allocation2] sm:$0xf]
        %v2838 = vld [vmem:[#allocation2 + $0x4] sm:$0xf]
        %v2839 = vld [vmem:[#allocation2 + $0x8] sm:$0xf]
        %v2840 = vld [vmem:[#allocation2 + $0xc] sm:$0xf]
        %v2841 = vld [vmem:[#allocation2 + $0x10] sm:$0xf]
        %v2842 = vld [vmem:[#allocation2 + $0x14] sm:$0xf]
        %v2843 = vld [vmem:[#allocation2 + $0x18] sm:$0xf]
        %v2844 = vld [vmem:[#allocation2 + $0x1c] sm:$0xf]
        %v2845 = vld [vmem:[#allocation2 + $0x20] sm:$0xf]
        %v2846 = vld [vmem:[#allocation2 + $0x24] sm:$0xf]
        %v2847 = vld [vmem:[#allocation2 + $0x28] sm:$0xf]
        %v2848 = vld [vmem:[#allocation2 + $0x2c] sm:$0xf]
        %v2849 = vld [vmem:[#allocation2 + $0x30] sm:$0xf]
        %v2850 = vld [vmem:[#allocation2 + $0x34] sm:$0xf]
        %v2851 = vld [vmem:[#allocation2 + $0x38] sm:$0xf]
        %v2852 = vld [vmem:[#allocation2 + $0x3c] sm:$0xf]
        %v2853 = vld [vmem:[#allocation2 + $0x40] sm:$0xf]
        %v2854 = vld [vmem:[#allocation2 + $0x44] sm:$0xf]
        %v2855 = vld [vmem:[#allocation2 + $0x48] sm:$0xf]
        %v2856 = vld [vmem:[#allocation2 + $0x4c] sm:$0xf]
        %v2857 = vld [vmem:[#allocation2 + $0x50] sm:$0xf]
        %v2858 = vld [vmem:[#allocation2 + $0x54] sm:$0xf]
        %v2859 = vld [vmem:[#allocation2 + $0x58] sm:$0xf]
        %v2860 = vld [vmem:[#allocation2 + $0x5c] sm:$0xf]
        %v2861 = vld [vmem:[#allocation2 + $0x60] sm:$0xf]
        %v2862 = vld [vmem:[#allocation2 + $0x64] sm:$0xf]
        %v2863 = vld [vmem:[#allocation2 + $0x68] sm:$0xf]
        %v2864 = vld [vmem:[#allocation2 + $0x6c] sm:$0xf]
        %v2865 = vld [vmem:[#allocation2 + $0x70] sm:$0xf]
        %v2866 = vld [vmem:[#allocation2 + $0x74] sm:$0xf]
        %v2867 = vld [vmem:[#allocation2 + $0x78] sm:$0xf]
        %v2868 = vld [vmem:[#allocation2 + $0x7c] sm:$0xf]
        %v2869 = vld [vmem:[#allocation2 + $0x80] sm:$0xf]
        %v2870 = vld [vmem:[#allocation2 + $0x84] sm:$0xf]
        %v2871 = vld [vmem:[#allocation2 + $0x88] sm:$0xf]
        %v2872 = vld [vmem:[#allocation2 + $0x8c] sm:$0xf]
        %v2873 = vld [vmem:[#allocation2 + $0x90] sm:$0xf]
        %v2874 = vld [vmem:[#allocation2 + $0x94] sm:$0xf]
        %v2875 = vld [vmem:[#allocation2 + $0x98] sm:$0xf]
        %v2876 = vld [vmem:[#allocation2 + $0x9c] sm:$0xf]
        %v2877 = vld [vmem:[#allocation2 + $0xa0] sm:$0xf]
        %v2878 = vld [vmem:[#allocation2 + $0xa4] sm:$0xf]
        %v2879 = vld [vmem:[#allocation2 + $0xa8] sm:$0xf]
        %v2880 = vld [vmem:[#allocation2 + $0xac] sm:$0xf]
        %v2881 = vld [vmem:[#allocation2 + $0xb0] sm:$0xf]
        %v2882 = vld [vmem:[#allocation2 + $0xb4] sm:$0xf]
        %v2883 = vld [vmem:[#allocation2 + $0xb8] sm:$0xf]
        %v2884 = vld [vmem:[#allocation2 + $0xbc] sm:$0xf]
        %v2885 = vld [vmem:[#allocation2 + $0xc0] sm:$0xf]
        %v2886 = vld [vmem:[#allocation2 + $0xc4] sm:$0xf]
        %v2887 = vld [vmem:[#allocation2 + $0xc8] sm:$0xf]
        %v2888 = vld [vmem:[#allocation2 + $0xcc] sm:$0xf]
        %v2889 = vld [vmem:[#allocation2 + $0xd0] sm:$0xf]
        %v2890 = vld [vmem:[#allocation2 + $0xd4] sm:$0xf]
        %v2891 = vld [vmem:[#allocation2 + $0xd8] sm:$0xf]
        %v2892 = vld [vmem:[#allocation2 + $0xdc] sm:$0xf]
        %v2893 = vld [vmem:[#allocation2 + $0xe0] sm:$0xf]
        %v2894 = vld [vmem:[#allocation2 + $0xe4] sm:$0xf]
        %v2895 = vld [vmem:[#allocation2 + $0xe8] sm:$0xf]
        %v2896 = vld [vmem:[#allocation2 + $0xec] sm:$0xf]
        %v2897 = vld [vmem:[#allocation2 + $0xf0] sm:$0xf]
        %v2898 = vld [vmem:[#allocation2 + $0xf4] sm:$0xf]
        %v2899 = vld [vmem:[#allocation2 + $0xf8] sm:$0xf]
        %v2900 = vld [vmem:[#allocation2 + $0xfc] sm:$0xf]
        %v2901 = vld [vmem:[#allocation2 + $0x100] sm:$0xf]
        %v2902 = vld [vmem:[#allocation2 + $0x104] sm:$0xf]
        %v2903 = vld [vmem:[#allocation2 + $0x108] sm:$0xf]
        %v2904 = vld [vmem:[#allocation2 + $0x10c] sm:$0xf]
        %v2905 = vld [vmem:[#allocation2 + $0x110] sm:$0xf]
        %v2906 = vld [vmem:[#allocation2 + $0x114] sm:$0xf]
        %v2907 = vld [vmem:[#allocation2 + $0x118] sm:$0xf]
        %v2908 = vld [vmem:[#allocation2 + $0x11c] sm:$0xf]
        %v2909 = vld [vmem:[#allocation2 + $0x120] sm:$0xf]
        %v2910 = vld [vmem:[#allocation2 + $0x124] sm:$0xf]
        %v2911 = vld [vmem:[#allocation2 + $0x128] sm:$0xf]
        %v2912 = vld [vmem:[#allocation2 + $0x12c] sm:$0xf]
        %v2913 = vld [vmem:[#allocation2 + $0x130] sm:$0xf]
        %v2914 = vld [vmem:[#allocation2 + $0x134] sm:$0xf]
        %v2915 = vld [vmem:[#allocation2 + $0x138] sm:$0xf]
        %v2916 = vld [vmem:[#allocation2 + $0x13c] sm:$0xf]
        %v2917 = vld [vmem:[#allocation2 + $0x140] sm:$0xf]
        %v2918 = vld [vmem:[#allocation2 + $0x144] sm:$0xf]
        %v2919 = vld [vmem:[#allocation2 + $0x148] sm:$0xf]
        %v2920 = vld [vmem:[#allocation2 + $0x14c] sm:$0xf]
        %v2921 = vld [vmem:[#allocation2 + $0x150] sm:$0xf]
        %v2922 = vld [vmem:[#allocation2 + $0x154] sm:$0xf]
        %v2923 = vld [vmem:[#allocation2 + $0x158] sm:$0xf]
        %v2924 = vld [vmem:[#allocation2 + $0x15c] sm:$0xf]
        %v2925 = vld [vmem:[#allocation2 + $0x160] sm:$0xf]
        %v2926 = vld [vmem:[#allocation2 + $0x164] sm:$0xf]
        %v2927 = vld [vmem:[#allocation2 + $0x168] sm:$0xf]
        %v2928 = vld [vmem:[#allocation2 + $0x16c] sm:$0xf]
        %v2929 = vld [vmem:[#allocation2 + $0x170] sm:$0xf]
        %v2930 = vld [vmem:[#allocation2 + $0x174] sm:$0xf]
        %v2931 = vld [vmem:[#allocation2 + $0x178] sm:$0xf]
        %v2932 = vld [vmem:[#allocation2 + $0x17c] sm:$0xf]
        %v2933 = vld [vmem:[#allocation2 + $0x180] sm:$0xf]
        %v2934 = vld [vmem:[#allocation2 + $0x184] sm:$0xf]
        %v2935 = vld [vmem:[#allocation2 + $0x188] sm:$0xf]
        %v2936 = vld [vmem:[#allocation2 + $0x18c] sm:$0xf]
        %v2937 = vld [vmem:[#allocation2 + $0x190] sm:$0xf]
        %v2938 = vld [vmem:[#allocation2 + $0x194] sm:$0xf]
        %v2939 = vld [vmem:[#allocation2 + $0x198] sm:$0xf]
        %v2940 = vld [vmem:[#allocation2 + $0x19c] sm:$0xf]
        %v2941 = vld [vmem:[#allocation2 + $0x1a0] sm:$0xf]
        %v2942 = vld [vmem:[#allocation2 + $0x1a4] sm:$0xf]
        %v2943 = vld [vmem:[#allocation2 + $0x1a8] sm:$0xf]
        %v2944 = vld [vmem:[#allocation2 + $0x1ac] sm:$0xf]
        %v2945 = vld [vmem:[#allocation2 + $0x1b0] sm:$0xf]
        %v2946 = vld [vmem:[#allocation2 + $0x1b4] sm:$0xf]
        %v2947 = vld [vmem:[#allocation2 + $0x1b8] sm:$0xf]
        %v2948 = vld [vmem:[#allocation2 + $0x1bc] sm:$0xf]
        %v2949 = vld [vmem:[#allocation2 + $0x1c0] sm:$0xf]
        %v2950 = vld [vmem:[#allocation2 + $0x1c4] sm:$0xf]
        %v2951 = vld [vmem:[#allocation2 + $0x1c8] sm:$0xf]
        %v2952 = vld [vmem:[#allocation2 + $0x1cc] sm:$0xf]
        %v2953 = vld [vmem:[#allocation2 + $0x1d0] sm:$0xf]
        %v2954 = vld [vmem:[#allocation2 + $0x1d4] sm:$0xf]
        %v2955 = vld [vmem:[#allocation2 + $0x1d8] sm:$0xf]
        %v2956 = vld [vmem:[#allocation2 + $0x1dc] sm:$0xf]
        %v2957 = vld [vmem:[#allocation2 + $0x1e0] sm:$0xf]
        %v2958 = vld [vmem:[#allocation2 + $0x1e4] sm:$0xf]
        %v2959 = vld [vmem:[#allocation2 + $0x1e8] sm:$0xf]
        %v2960 = vld [vmem:[#allocation2 + $0x1ec] sm:$0xf]
        %v2961 = vld [vmem:[#allocation2 + $0x1f0] sm:$0xf]
        %v2962 = vld [vmem:[#allocation2 + $0x1f4] sm:$0xf]
        %v2963 = vld [vmem:[#allocation2 + $0x1f8] sm:$0xf]
        %v2964 = vld [vmem:[#allocation2 + $0x1fc] sm:$0xf]
        %v2965 = vld [vmem:[#allocation2 + $0x200] sm:$0xf]
        %v2966 = vld [vmem:[#allocation2 + $0x204] sm:$0xf]
        %v2967 = vld [vmem:[#allocation2 + $0x208] sm:$0xf]
        %v2968 = vld [vmem:[#allocation2 + $0x20c] sm:$0xf]
        %v2969 = vld [vmem:[#allocation2 + $0x210] sm:$0xf]
        %v2970 = vld [vmem:[#allocation2 + $0x214] sm:$0xf]
        %v2971 = vld [vmem:[#allocation2 + $0x218] sm:$0xf]
        %v2972 = vld [vmem:[#allocation2 + $0x21c] sm:$0xf]
        %v2973 = vld [vmem:[#allocation2 + $0x220] sm:$0xf]
        %v2974 = vld [vmem:[#allocation2 + $0x224] sm:$0xf]
        %v2975 = vld [vmem:[#allocation2 + $0x228] sm:$0xf]
        %v2976 = vld [vmem:[#allocation2 + $0x22c] sm:$0xf]
        %v2977 = vld [vmem:[#allocation2 + $0x230] sm:$0xf]
        %v2978 = vld [vmem:[#allocation2 + $0x234] sm:$0xf]
        %v2979 = vld [vmem:[#allocation2 + $0x238] sm:$0xf]
        %v2980 = vld [vmem:[#allocation2 + $0x23c] sm:$0xf]
        %v2981 = vld [vmem:[#allocation2 + $0x240] sm:$0xf]
        %v2982 = vld [vmem:[#allocation2 + $0x244] sm:$0xf]
        %v2983 = vld [vmem:[#allocation2 + $0x248] sm:$0xf]
        %v2984 = vld [vmem:[#allocation2 + $0x24c] sm:$0xf]
        %v2985 = vld [vmem:[#allocation2 + $0x250] sm:$0xf]
        %v2986 = vld [vmem:[#allocation2 + $0x254] sm:$0xf]
        %v2987 = vld [vmem:[#allocation2 + $0x258] sm:$0xf]
        %v2988 = vld [vmem:[#allocation2 + $0x25c] sm:$0xf]
        %v2989 = vld [vmem:[#allocation2 + $0x260] sm:$0xf]
        %v2990 = vld [vmem:[#allocation2 + $0x264] sm:$0xf]
        %v2991 = vld [vmem:[#allocation2 + $0x268] sm:$0xf]
        %v2992 = vld [vmem:[#allocation2 + $0x26c] sm:$0xf]
        %v2993 = vld [vmem:[#allocation2 + $0x270] sm:$0xf]
        %v2994 = vld [vmem:[#allocation2 + $0x274] sm:$0xf]
        %v2995 = vld [vmem:[#allocation2 + $0x278] sm:$0xf]
        %v2996 = vld [vmem:[#allocation2 + $0x27c] sm:$0xf]
        %v2997 = vld [vmem:[#allocation2 + $0x280] sm:$0xf]
        %v2998 = vld [vmem:[#allocation2 + $0x284] sm:$0xf]
        %v2999 = vld [vmem:[#allocation2 + $0x288] sm:$0xf]
        %v3000 = vld [vmem:[#allocation2 + $0x28c] sm:$0xf]
        %v3001 = vld [vmem:[#allocation2 + $0x290] sm:$0xf]
        %v3002 = vld [vmem:[#allocation2 + $0x294] sm:$0xf]
        %v3003 = vld [vmem:[#allocation2 + $0x298] sm:$0xf]
        %v3004 = vld [vmem:[#allocation2 + $0x29c] sm:$0xf]
        %v3005 = vld [vmem:[#allocation2 + $0x2a0] sm:$0xf]
        %v3006 = vld [vmem:[#allocation2 + $0x2a4] sm:$0xf]
        %v3007 = vld [vmem:[#allocation2 + $0x2a8] sm:$0xf]
        %v3008 = vld [vmem:[#allocation2 + $0x2ac] sm:$0xf]
        %v3009 = vld [vmem:[#allocation2 + $0x2b0] sm:$0xf]
        %v3010 = vld [vmem:[#allocation2 + $0x2b4] sm:$0xf]
        %v3011 = vld [vmem:[#allocation2 + $0x2b8] sm:$0xf]
        %v3012 = vld [vmem:[#allocation2 + $0x2bc] sm:$0xf]
        %v3013 = vld [vmem:[#allocation2 + $0x2c0] sm:$0xf]
        %v3014 = vld [vmem:[#allocation2 + $0x2c4] sm:$0xf]
        %v3015 = vld [vmem:[#allocation2 + $0x2c8] sm:$0xf]
        %v3016 = vld [vmem:[#allocation2 + $0x2cc] sm:$0xf]
        %v3017 = vld [vmem:[#allocation2 + $0x2d0] sm:$0xf]
        %v3018 = vld [vmem:[#allocation2 + $0x2d4] sm:$0xf]
        %v3019 = vld [vmem:[#allocation2 + $0x2d8] sm:$0xf]
        %v3020 = vld [vmem:[#allocation2 + $0x2dc] sm:$0xf]
        %v3021 = vld [vmem:[#allocation2 + $0x2e0] sm:$0xf]
        %v3022 = vld [vmem:[#allocation2 + $0x2e4] sm:$0xf]
        %v3023 = vld [vmem:[#allocation2 + $0x2e8] sm:$0xf]
        %v3024 = vld [vmem:[#allocation2 + $0x2ec] sm:$0xf]
        %v3025 = vld [vmem:[#allocation2 + $0x2f0] sm:$0xf]
        %v3026 = vld [vmem:[#allocation2 + $0x2f4] sm:$0xf]
        %v3027 = vld [vmem:[#allocation2 + $0x2f8] sm:$0xf]
        %v3028 = vld [vmem:[#allocation2 + $0x2fc] sm:$0xf]
        %v3029 = vld [vmem:[#allocation2 + $0x300] sm:$0xf]
        %v3030 = vld [vmem:[#allocation2 + $0x304] sm:$0xf]
        %v3031 = vld [vmem:[#allocation2 + $0x308] sm:$0xf]
        %v3032 = vld [vmem:[#allocation2 + $0x30c] sm:$0xf]
        %v3033 = vld [vmem:[#allocation2 + $0x310] sm:$0xf]
        %v3034 = vld [vmem:[#allocation2 + $0x314] sm:$0xf]
        %v3035 = vld [vmem:[#allocation2 + $0x318] sm:$0xf]
        %v3036 = vld [vmem:[#allocation2 + $0x31c] sm:$0xf]
        %v3037 = vld [vmem:[#allocation2 + $0x320] sm:$0xf]
        %v3038 = vld [vmem:[#allocation2 + $0x324] sm:$0xf]
        %v3039 = vld [vmem:[#allocation2 + $0x328] sm:$0xf]
        %v3040 = vld [vmem:[#allocation2 + $0x32c] sm:$0xf]
        %v3041 = vld [vmem:[#allocation2 + $0x330] sm:$0xf]
        %v3042 = vld [vmem:[#allocation2 + $0x334] sm:$0xf]
        %v3043 = vld [vmem:[#allocation2 + $0x338] sm:$0xf]
        %v3044 = vld [vmem:[#allocation2 + $0x33c] sm:$0xf]
        %v3045 = vld [vmem:[#allocation2 + $0x340] sm:$0xf]
        %v3046 = vld [vmem:[#allocation2 + $0x344] sm:$0xf]
        %v3047 = vld [vmem:[#allocation2 + $0x348] sm:$0xf]
        %v3048 = vld [vmem:[#allocation2 + $0x34c] sm:$0xf]
        %v3049 = vld [vmem:[#allocation2 + $0x350] sm:$0xf]
        %v3050 = vld [vmem:[#allocation2 + $0x354] sm:$0xf]
        %v3051 = vld [vmem:[#allocation2 + $0x358] sm:$0xf]
        %v3052 = vld [vmem:[#allocation2 + $0x35c] sm:$0xf]
        %v3053 = vld [vmem:[#allocation2 + $0x360] sm:$0xf]
        %v3054 = vld [vmem:[#allocation2 + $0x364] sm:$0xf]
        %v3055 = vld [vmem:[#allocation2 + $0x368] sm:$0xf]
        %v3056 = vld [vmem:[#allocation2 + $0x36c] sm:$0xf]
        %v3057 = vld [vmem:[#allocation2 + $0x370] sm:$0xf]
        %v3058 = vld [vmem:[#allocation2 + $0x374] sm:$0xf]
        %v3059 = vld [vmem:[#allocation2 + $0x378] sm:$0xf]
        %v3060 = vld [vmem:[#allocation2 + $0x37c] sm:$0xf]
        %v3061 = vld [vmem:[#allocation2 + $0x380] sm:$0xf]
        %v3062 = vld [vmem:[#allocation2 + $0x384] sm:$0xf]
        %v3063 = vld [vmem:[#allocation2 + $0x388] sm:$0xf]
        %v3064 = vld [vmem:[#allocation2 + $0x38c] sm:$0xf]
        %v3065 = vld [vmem:[#allocation2 + $0x390] sm:$0xf]
        %v3066 = vld [vmem:[#allocation2 + $0x394] sm:$0xf]
        %v3067 = vld [vmem:[#allocation2 + $0x398] sm:$0xf]
        %v3068 = vld [vmem:[#allocation2 + $0x39c] sm:$0xf]
        %v3069 = vld [vmem:[#allocation2 + $0x3a0] sm:$0xf]
        %v3070 = vld [vmem:[#allocation2 + $0x3a4] sm:$0xf]
        %v3071 = vld [vmem:[#allocation2 + $0x3a8] sm:$0xf]
        %v3072 = vld [vmem:[#allocation2 + $0x3ac] sm:$0xf]
        %v3073 = vld [vmem:[#allocation2 + $0x3b0] sm:$0xf]
        %v3074 = vld [vmem:[#allocation2 + $0x3b4] sm:$0xf]
        %v3075 = vld [vmem:[#allocation2 + $0x3b8] sm:$0xf]
        %v3076 = vld [vmem:[#allocation2 + $0x3bc] sm:$0xf]
        %v3077 = vld [vmem:[#allocation2 + $0x3c0] sm:$0xf]
        %v3078 = vld [vmem:[#allocation2 + $0x3c4] sm:$0xf]
        %v3079 = vld [vmem:[#allocation2 + $0x3c8] sm:$0xf]
        %v3080 = vld [vmem:[#allocation2 + $0x3cc] sm:$0xf]
        %v3081 = vld [vmem:[#allocation2 + $0x3d0] sm:$0xf]
        %v3082 = vld [vmem:[#allocation2 + $0x3d4] sm:$0xf]
        %v3083 = vld [vmem:[#allocation2 + $0x3d8] sm:$0xf]
        %v3084 = vld [vmem:[#allocation2 + $0x3dc] sm:$0xf]
        %v3085 = vld [vmem:[#allocation2 + $0x3e0] sm:$0xf]
        %v3086 = vld [vmem:[#allocation2 + $0x3e4] sm:$0xf]
        %v3087 = vld [vmem:[#allocation2 + $0x3e8] sm:$0xf]
        %v3088 = vld [vmem:[#allocation2 + $0x3ec] sm:$0xf]
        %v3089 = vld [vmem:[#allocation2 + $0x3f0] sm:$0xf]
        %v3090 = vld [vmem:[#allocation2 + $0x3f4] sm:$0xf]
        %v3091 = vld [vmem:[#allocation2 + $0x3f8] sm:$0xf]
        %v3092 = vld [vmem:[#allocation2 + $0x3fc] sm:$0xf]
        %v3093 = vld [vmem:[%s2] sm:$0x1]
        %v3095 = vlaneseq
        %v3096 = vshrl.u32 %v3095, 7
        %v3097 = vsub.s32 0, %v3096
        %v3098 = vrot.slane %v3093, %v3097
        %v3356 = vunpack.c.l.b16 %v2837
        %v3357 = vunpack.c.l.b16 %v2838
        %v3358 = vunpack.c.l.b16 %v2839
        %v3359 = vunpack.c.l.b16 %v2840
        %v3360 = vunpack.c.l.b16 %v2841
        %v3361 = vunpack.c.l.b16 %v2842
        %v3362 = vunpack.c.l.b16 %v2843
        %v3363 = vunpack.c.l.b16 %v2844
        %v3364 = vunpack.c.l.b16 %v2845
        %v3365 = vunpack.c.l.b16 %v2846
        %v3366 = vunpack.c.l.b16 %v2847
        %v3367 = vunpack.c.l.b16 %v2848
        %v3368 = vunpack.c.l.b16 %v2849
        %v3369 = vunpack.c.l.b16 %v2850
        %v3370 = vunpack.c.l.b16 %v2851
        %v3371 = vunpack.c.l.b16 %v2852
        %v3372 = vunpack.c.l.b16 %v2853
        %v3373 = vunpack.c.l.b16 %v2854
        %v3374 = vunpack.c.l.b16 %v2855
        %v3375 = vunpack.c.l.b16 %v2856
        %v3376 = vunpack.c.l.b16 %v2857
        %v3377 = vunpack.c.l.b16 %v2858
        %v3378 = vunpack.c.l.b16 %v2859
        %v3379 = vunpack.c.l.b16 %v2860
        %v3380 = vunpack.c.l.b16 %v2861
        %v3381 = vunpack.c.l.b16 %v2862
        %v3382 = vunpack.c.l.b16 %v2863
        %v3383 = vunpack.c.l.b16 %v2864
        %v3384 = vunpack.c.l.b16 %v2865
        %v3385 = vunpack.c.l.b16 %v2866
        %v3386 = vunpack.c.l.b16 %v2867
        %v3387 = vunpack.c.l.b16 %v2868
        %v3388 = vunpack.c.l.b16 %v2869
        %v3389 = vunpack.c.l.b16 %v2870
        %v3390 = vunpack.c.l.b16 %v2871
        %v3391 = vunpack.c.l.b16 %v2872
        %v3392 = vunpack.c.l.b16 %v2873
        %v3393 = vunpack.c.l.b16 %v2874
        %v3394 = vunpack.c.l.b16 %v2875
        %v3395 = vunpack.c.l.b16 %v2876
        %v3396 = vunpack.c.l.b16 %v2877
        %v3397 = vunpack.c.l.b16 %v2878
        %v3398 = vunpack.c.l.b16 %v2879
        %v3399 = vunpack.c.l.b16 %v2880
        %v3400 = vunpack.c.l.b16 %v2881
        %v3401 = vunpack.c.l.b16 %v2882
        %v3402 = vunpack.c.l.b16 %v2883
        %v3403 = vunpack.c.l.b16 %v2884
        %v3404 = vunpack.c.l.b16 %v2885
        %v3405 = vunpack.c.l.b16 %v2886
        %v3406 = vunpack.c.l.b16 %v2887
        %v3407 = vunpack.c.l.b16 %v2888
        %v3408 = vunpack.c.l.b16 %v2889
        %v3409 = vunpack.c.l.b16 %v2890
        %v3410 = vunpack.c.l.b16 %v2891
        %v3411 = vunpack.c.l.b16 %v2892
        %v3412 = vunpack.c.l.b16 %v2893
        %v3413 = vunpack.c.l.b16 %v2894
        %v3414 = vunpack.c.l.b16 %v2895
        %v3415 = vunpack.c.l.b16 %v2896
        %v3416 = vunpack.c.l.b16 %v2897
        %v3417 = vunpack.c.l.b16 %v2898
        %v3418 = vunpack.c.l.b16 %v2899
        %v3419 = vunpack.c.l.b16 %v2900
        %v3420 = vunpack.c.l.b16 %v2901
        %v3421 = vunpack.c.l.b16 %v2902
        %v3422 = vunpack.c.l.b16 %v2903
        %v3423 = vunpack.c.l.b16 %v2904
        %v3424 = vunpack.c.l.b16 %v2905
        %v3425 = vunpack.c.l.b16 %v2906
        %v3426 = vunpack.c.l.b16 %v2907
        %v3427 = vunpack.c.l.b16 %v2908
        %v3428 = vunpack.c.l.b16 %v2909
        %v3429 = vunpack.c.l.b16 %v2910
        %v3430 = vunpack.c.l.b16 %v2911
        %v3431 = vunpack.c.l.b16 %v2912
        %v3432 = vunpack.c.l.b16 %v2913
        %v3433 = vunpack.c.l.b16 %v2914
        %v3434 = vunpack.c.l.b16 %v2915
        %v3435 = vunpack.c.l.b16 %v2916
        %v3436 = vunpack.c.l.b16 %v2917
        %v3437 = vunpack.c.l.b16 %v2918
        %v3438 = vunpack.c.l.b16 %v2919
        %v3439 = vunpack.c.l.b16 %v2920
        %v3440 = vunpack.c.l.b16 %v2921
        %v3441 = vunpack.c.l.b16 %v2922
        %v3442 = vunpack.c.l.b16 %v2923
        %v3443 = vunpack.c.l.b16 %v2924
        %v3444 = vunpack.c.l.b16 %v2925
        %v3445 = vunpack.c.l.b16 %v2926
        %v3446 = vunpack.c.l.b16 %v2927
        %v3447 = vunpack.c.l.b16 %v2928
        %v3448 = vunpack.c.l.b16 %v2929
        %v3449 = vunpack.c.l.b16 %v2930
        %v3450 = vunpack.c.l.b16 %v2931
        %v3451 = vunpack.c.l.b16 %v2932
        %v3452 = vunpack.c.l.b16 %v2933
        %v3453 = vunpack.c.l.b16 %v2934
        %v3454 = vunpack.c.l.b16 %v2935
        %v3455 = vunpack.c.l.b16 %v2936
        %v3456 = vunpack.c.l.b16 %v2937
        %v3457 = vunpack.c.l.b16 %v2938
        %v3458 = vunpack.c.l.b16 %v2939
        %v3459 = vunpack.c.l.b16 %v2940
        %v3460 = vunpack.c.l.b16 %v2941
        %v3461 = vunpack.c.l.b16 %v2942
        %v3462 = vunpack.c.l.b16 %v2943
        %v3463 = vunpack.c.l.b16 %v2944
        %v3464 = vunpack.c.l.b16 %v2945
        %v3465 = vunpack.c.l.b16 %v2946
        %v3466 = vunpack.c.l.b16 %v2947
        %v3467 = vunpack.c.l.b16 %v2948
        %v3468 = vunpack.c.l.b16 %v2949
        %v3469 = vunpack.c.l.b16 %v2950
        %v3470 = vunpack.c.l.b16 %v2951
        %v3471 = vunpack.c.l.b16 %v2952
        %v3472 = vunpack.c.l.b16 %v2953
        %v3473 = vunpack.c.l.b16 %v2954
        %v3474 = vunpack.c.l.b16 %v2955
        %v3475 = vunpack.c.l.b16 %v2956
        %v3476 = vunpack.c.l.b16 %v2957
        %v3477 = vunpack.c.l.b16 %v2958
        %v3478 = vunpack.c.l.b16 %v2959
        %v3479 = vunpack.c.l.b16 %v2960
        %v3480 = vunpack.c.l.b16 %v2961
        %v3481 = vunpack.c.l.b16 %v2962
        %v3482 = vunpack.c.l.b16 %v2963
        %v3483 = vunpack.c.l.b16 %v2964
        %v3484 = vunpack.c.l.b16 %v2965
        %v3485 = vunpack.c.l.b16 %v2966
        %v3486 = vunpack.c.l.b16 %v2967
        %v3487 = vunpack.c.l.b16 %v2968
        %v3488 = vunpack.c.l.b16 %v2969
        %v3489 = vunpack.c.l.b16 %v2970
        %v3490 = vunpack.c.l.b16 %v2971
        %v3491 = vunpack.c.l.b16 %v2972
        %v3492 = vunpack.c.l.b16 %v2973
        %v3493 = vunpack.c.l.b16 %v2974
        %v3494 = vunpack.c.l.b16 %v2975
        %v3495 = vunpack.c.l.b16 %v2976
        %v3496 = vunpack.c.l.b16 %v2977
        %v3497 = vunpack.c.l.b16 %v2978
        %v3498 = vunpack.c.l.b16 %v2979
        %v3499 = vunpack.c.l.b16 %v2980
        %v3500 = vunpack.c.l.b16 %v2981
        %v3501 = vunpack.c.l.b16 %v2982
        %v3502 = vunpack.c.l.b16 %v2983
        %v3503 = vunpack.c.l.b16 %v2984
        %v3504 = vunpack.c.l.b16 %v2985
        %v3505 = vunpack.c.l.b16 %v2986
        %v3506 = vunpack.c.l.b16 %v2987
        %v3507 = vunpack.c.l.b16 %v2988
        %v3508 = vunpack.c.l.b16 %v2989
        %v3509 = vunpack.c.l.b16 %v2990
        %v3510 = vunpack.c.l.b16 %v2991
        %v3511 = vunpack.c.l.b16 %v2992
        %v3512 = vunpack.c.l.b16 %v2993
        %v3513 = vunpack.c.l.b16 %v2994
        %v3514 = vunpack.c.l.b16 %v2995
        %v3515 = vunpack.c.l.b16 %v2996
        %v3516 = vunpack.c.l.b16 %v2997
        %v3517 = vunpack.c.l.b16 %v2998
        %v3518 = vunpack.c.l.b16 %v2999
        %v3519 = vunpack.c.l.b16 %v3000
        %v3520 = vunpack.c.l.b16 %v3001
        %v3521 = vunpack.c.l.b16 %v3002
        %v3522 = vunpack.c.l.b16 %v3003
        %v3523 = vunpack.c.l.b16 %v3004
        %v3524 = vunpack.c.l.b16 %v3005
        %v3525 = vunpack.c.l.b16 %v3006
        %v3526 = vunpack.c.l.b16 %v3007
        %v3527 = vunpack.c.l.b16 %v3008
        %v3528 = vunpack.c.l.b16 %v3009
        %v3529 = vunpack.c.l.b16 %v3010
        %v3530 = vunpack.c.l.b16 %v3011
        %v3531 = vunpack.c.l.b16 %v3012
        %v3532 = vunpack.c.l.b16 %v3013
        %v3533 = vunpack.c.l.b16 %v3014
        %v3534 = vunpack.c.l.b16 %v3015
        %v3535 = vunpack.c.l.b16 %v3016
        %v3536 = vunpack.c.l.b16 %v3017
        %v3537 = vunpack.c.l.b16 %v3018
        %v3538 = vunpack.c.l.b16 %v3019
        %v3539 = vunpack.c.l.b16 %v3020
        %v3540 = vunpack.c.l.b16 %v3021
        %v3541 = vunpack.c.l.b16 %v3022
        %v3542 = vunpack.c.l.b16 %v3023
        %v3543 = vunpack.c.l.b16 %v3024
        %v3544 = vunpack.c.l.b16 %v3025
        %v3545 = vunpack.c.l.b16 %v3026
        %v3546 = vunpack.c.l.b16 %v3027
        %v3547 = vunpack.c.l.b16 %v3028
        %v3548 = vunpack.c.l.b16 %v3029
        %v3549 = vunpack.c.l.b16 %v3030
        %v3550 = vunpack.c.l.b16 %v3031
        %v3551 = vunpack.c.l.b16 %v3032
        %v3552 = vunpack.c.l.b16 %v3033
        %v3553 = vunpack.c.l.b16 %v3034
        %v3554 = vunpack.c.l.b16 %v3035
        %v3555 = vunpack.c.l.b16 %v3036
        %v3556 = vunpack.c.l.b16 %v3037
        %v3557 = vunpack.c.l.b16 %v3038
        %v3558 = vunpack.c.l.b16 %v3039
        %v3559 = vunpack.c.l.b16 %v3040
        %v3560 = vunpack.c.l.b16 %v3041
        %v3561 = vunpack.c.l.b16 %v3042
        %v3562 = vunpack.c.l.b16 %v3043
        %v3563 = vunpack.c.l.b16 %v3044
        %v3564 = vunpack.c.l.b16 %v3045
        %v3565 = vunpack.c.l.b16 %v3046
        %v3566 = vunpack.c.l.b16 %v3047
        %v3567 = vunpack.c.l.b16 %v3048
        %v3568 = vunpack.c.l.b16 %v3049
        %v3569 = vunpack.c.l.b16 %v3050
        %v3570 = vunpack.c.l.b16 %v3051
        %v3571 = vunpack.c.l.b16 %v3052
        %v3572 = vunpack.c.l.b16 %v3053
        %v3573 = vunpack.c.l.b16 %v3054
        %v3574 = vunpack.c.l.b16 %v3055
        %v3575 = vunpack.c.l.b16 %v3056
        %v3576 = vunpack.c.l.b16 %v3057
        %v3577 = vunpack.c.l.b16 %v3058
        %v3578 = vunpack.c.l.b16 %v3059
        %v3579 = vunpack.c.l.b16 %v3060
        %v3580 = vunpack.c.l.b16 %v3061
        %v3581 = vunpack.c.l.b16 %v3062
        %v3582 = vunpack.c.l.b16 %v3063
        %v3583 = vunpack.c.l.b16 %v3064
        %v3584 = vunpack.c.l.b16 %v3065
        %v3585 = vunpack.c.l.b16 %v3066
        %v3586 = vunpack.c.l.b16 %v3067
        %v3587 = vunpack.c.l.b16 %v3068
        %v3588 = vunpack.c.l.b16 %v3069
        %v3589 = vunpack.c.l.b16 %v3070
        %v3590 = vunpack.c.l.b16 %v3071
        %v3591 = vunpack.c.l.b16 %v3072
        %v3592 = vunpack.c.l.b16 %v3073
        %v3593 = vunpack.c.l.b16 %v3074
        %v3594 = vunpack.c.l.b16 %v3075
        %v3595 = vunpack.c.l.b16 %v3076
        %v3596 = vunpack.c.l.b16 %v3077
        %v3597 = vunpack.c.l.b16 %v3078
        %v3598 = vunpack.c.l.b16 %v3079
        %v3599 = vunpack.c.l.b16 %v3080
        %v3600 = vunpack.c.l.b16 %v3081
        %v3601 = vunpack.c.l.b16 %v3082
        %v3602 = vunpack.c.l.b16 %v3083
        %v3603 = vunpack.c.l.b16 %v3084
        %v3604 = vunpack.c.l.b16 %v3085
        %v3605 = vunpack.c.l.b16 %v3086
        %v3606 = vunpack.c.l.b16 %v3087
        %v3607 = vunpack.c.l.b16 %v3088
        %v3608 = vunpack.c.l.b16 %v3089
        %v3609 = vunpack.c.l.b16 %v3090
        %v3610 = vunpack.c.l.b16 %v3091
        %v3611 = vunpack.c.l.b16 %v3092
        %v3612 = vpack.c.b16 %v3357, %v3356
        %v3613 = vpack.c.b16 %v3359, %v3358
        %v3614 = vpack.c.b16 %v3361, %v3360
        %v3615 = vpack.c.b16 %v3363, %v3362
        %v3616 = vpack.c.b16 %v3365, %v3364
        %v3617 = vpack.c.b16 %v3367, %v3366
        %v3618 = vpack.c.b16 %v3369, %v3368
        %v3619 = vpack.c.b16 %v3371, %v3370
        %v3620 = vpack.c.b16 %v3373, %v3372
        %v3621 = vpack.c.b16 %v3375, %v3374
        %v3622 = vpack.c.b16 %v3377, %v3376
        %v3623 = vpack.c.b16 %v3379, %v3378
        %v3624 = vpack.c.b16 %v3381, %v3380
        %v3625 = vpack.c.b16 %v3383, %v3382
        %v3626 = vpack.c.b16 %v3385, %v3384
        %v3627 = vpack.c.b16 %v3387, %v3386
        %v3628 = vpack.c.b16 %v3389, %v3388
        %v3629 = vpack.c.b16 %v3391, %v3390
        %v3630 = vpack.c.b16 %v3393, %v3392
        %v3631 = vpack.c.b16 %v3395, %v3394
        %v3632 = vpack.c.b16 %v3397, %v3396
        %v3633 = vpack.c.b16 %v3399, %v3398
        %v3634 = vpack.c.b16 %v3401, %v3400
        %v3635 = vpack.c.b16 %v3403, %v3402
        %v3636 = vpack.c.b16 %v3405, %v3404
        %v3637 = vpack.c.b16 %v3407, %v3406
        %v3638 = vpack.c.b16 %v3409, %v3408
        %v3639 = vpack.c.b16 %v3411, %v3410
        %v3640 = vpack.c.b16 %v3413, %v3412
        %v3641 = vpack.c.b16 %v3415, %v3414
        %v3642 = vpack.c.b16 %v3417, %v3416
        %v3643 = vpack.c.b16 %v3419, %v3418
        %v3644 = vpack.c.b16 %v3421, %v3420
        %v3645 = vpack.c.b16 %v3423, %v3422
        %v3646 = vpack.c.b16 %v3425, %v3424
        %v3647 = vpack.c.b16 %v3427, %v3426
        %v3648 = vpack.c.b16 %v3429, %v3428
        %v3649 = vpack.c.b16 %v3431, %v3430
        %v3650 = vpack.c.b16 %v3433, %v3432
        %v3651 = vpack.c.b16 %v3435, %v3434
        %v3652 = vpack.c.b16 %v3437, %v3436
        %v3653 = vpack.c.b16 %v3439, %v3438
        %v3654 = vpack.c.b16 %v3441, %v3440
        %v3655 = vpack.c.b16 %v3443, %v3442
        %v3656 = vpack.c.b16 %v3445, %v3444
        %v3657 = vpack.c.b16 %v3447, %v3446
        %v3658 = vpack.c.b16 %v3449, %v3448
        %v3659 = vpack.c.b16 %v3451, %v3450
        %v3660 = vpack.c.b16 %v3453, %v3452
        %v3661 = vpack.c.b16 %v3455, %v3454
        %v3662 = vpack.c.b16 %v3457, %v3456
        %v3663 = vpack.c.b16 %v3459, %v3458
        %v3664 = vpack.c.b16 %v3461, %v3460
        %v3665 = vpack.c.b16 %v3463, %v3462
        %v3666 = vpack.c.b16 %v3465, %v3464
        %v3667 = vpack.c.b16 %v3467, %v3466
        %v3668 = vpack.c.b16 %v3469, %v3468
        %v3669 = vpack.c.b16 %v3471, %v3470
        %v3670 = vpack.c.b16 %v3473, %v3472
        %v3671 = vpack.c.b16 %v3475, %v3474
        %v3672 = vpack.c.b16 %v3477, %v3476
        %v3673 = vpack.c.b16 %v3479, %v3478
        %v3674 = vpack.c.b16 %v3481, %v3480
        %v3675 = vpack.c.b16 %v3483, %v3482
        %v3676 = vpack.c.b16 %v3485, %v3484
        %v3677 = vpack.c.b16 %v3487, %v3486
        %v3678 = vpack.c.b16 %v3489, %v3488
        %v3679 = vpack.c.b16 %v3491, %v3490
        %v3680 = vpack.c.b16 %v3493, %v3492
        %v3681 = vpack.c.b16 %v3495, %v3494
        %v3682 = vpack.c.b16 %v3497, %v3496
        %v3683 = vpack.c.b16 %v3499, %v3498
        %v3684 = vpack.c.b16 %v3501, %v3500
        %v3685 = vpack.c.b16 %v3503, %v3502
        %v3686 = vpack.c.b16 %v3505, %v3504
        %v3687 = vpack.c.b16 %v3507, %v3506
        %v3688 = vpack.c.b16 %v3509, %v3508
        %v3689 = vpack.c.b16 %v3511, %v3510
        %v3690 = vpack.c.b16 %v3513, %v3512
        %v3691 = vpack.c.b16 %v3515, %v3514
        %v3692 = vpack.c.b16 %v3517, %v3516
        %v3693 = vpack.c.b16 %v3519, %v3518
        %v3694 = vpack.c.b16 %v3521, %v3520
        %v3695 = vpack.c.b16 %v3523, %v3522
        %v3696 = vpack.c.b16 %v3525, %v3524
        %v3697 = vpack.c.b16 %v3527, %v3526
        %v3698 = vpack.c.b16 %v3529, %v3528
        %v3699 = vpack.c.b16 %v3531, %v3530
        %v3700 = vpack.c.b16 %v3533, %v3532
        %v3701 = vpack.c.b16 %v3535, %v3534
        %v3702 = vpack.c.b16 %v3537, %v3536
        %v3703 = vpack.c.b16 %v3539, %v3538
        %v3704 = vpack.c.b16 %v3541, %v3540
        %v3705 = vpack.c.b16 %v3543, %v3542
        %v3706 = vpack.c.b16 %v3545, %v3544
        %v3707 = vpack.c.b16 %v3547, %v3546
        %v3708 = vpack.c.b16 %v3549, %v3548
        %v3709 = vpack.c.b16 %v3551, %v3550
        %v3710 = vpack.c.b16 %v3553, %v3552
        %v3711 = vpack.c.b16 %v3555, %v3554
        %v3712 = vpack.c.b16 %v3557, %v3556
        %v3713 = vpack.c.b16 %v3559, %v3558
        %v3714 = vpack.c.b16 %v3561, %v3560
        %v3715 = vpack.c.b16 %v3563, %v3562
        %v3716 = vpack.c.b16 %v3565, %v3564
        %v3717 = vpack.c.b16 %v3567, %v3566
        %v3718 = vpack.c.b16 %v3569, %v3568
        %v3719 = vpack.c.b16 %v3571, %v3570
        %v3720 = vpack.c.b16 %v3573, %v3572
        %v3721 = vpack.c.b16 %v3575, %v3574
        %v3722 = vpack.c.b16 %v3577, %v3576
        %v3723 = vpack.c.b16 %v3579, %v3578
        %v3724 = vpack.c.b16 %v3581, %v3580
        %v3725 = vpack.c.b16 %v3583, %v3582
        %v3726 = vpack.c.b16 %v3585, %v3584
        %v3727 = vpack.c.b16 %v3587, %v3586
        %v3728 = vpack.c.b16 %v3589, %v3588
        %v3729 = vpack.c.b16 %v3591, %v3590
        %v3730 = vpack.c.b16 %v3593, %v3592
        %v3731 = vpack.c.b16 %v3595, %v3594
        %v3732 = vpack.c.b16 %v3597, %v3596
        %v3733 = vpack.c.b16 %v3599, %v3598
        %v3734 = vpack.c.b16 %v3601, %v3600
        %v3735 = vpack.c.b16 %v3603, %v3602
        %v3736 = vpack.c.b16 %v3605, %v3604
        %v3737 = vpack.c.b16 %v3607, %v3606
        %v3738 = vpack.c.b16 %v3609, %v3608
        %v3739 = vpack.c.b16 %v3611, %v3610
        %3868 = vmatprep.subr.bf16.mxu0 0
        %3869 = vmatpush1.bf16.msra.mxu0 %v3619
        %3870 = vmatprep.subr.bf16.mxu0 0
        %3871 = vmatpush1.bf16.msra.mxu0 %v3618
        %3872 = vmatprep.subr.bf16.mxu0 0
        %3873 = vmatpush1.bf16.msra.mxu0 %v3617
        %3874 = vmatprep.subr.bf16.mxu0 0
        %3875 = vmatpush1.bf16.msra.mxu0 %v3616
        %3876 = vmatprep.subr.bf16.mxu0 0
        %3877 = vmatpush1.bf16.msra.mxu0 %v3615
        %3878 = vmatprep.subr.bf16.mxu0 0
        %3879 = vmatpush1.bf16.msra.mxu0 %v3614
        %3880 = vmatprep.subr.bf16.mxu0 0
        %3881 = vmatpush1.bf16.msra.mxu0 %v3613
        %3882 = vmatprep.subr.bf16.mxu0 0
        %3883 = vmatpush1.bf16.msra.mxu0 %v3612
        %3884 = vmatprep.subr.bf16.mxu0 0
        %3885 = vmatpush2.bf16.msra.mxu0 %v3627
        %3886 = vmatprep.subr.bf16.mxu0 0
        %3887 = vmatpush2.bf16.msra.mxu0 %v3626
        %3888 = vmatprep.subr.bf16.mxu0 0
        %3889 = vmatpush2.bf16.msra.mxu0 %v3625
        %3890 = vmatprep.subr.bf16.mxu0 0
        %3891 = vmatpush2.bf16.msra.mxu0 %v3624
        %3892 = vmatprep.subr.bf16.mxu0 0
        %3893 = vmatpush2.bf16.msra.mxu0 %v3623
        %3894 = vmatprep.subr.bf16.mxu0 0
        %3895 = vmatpush2.bf16.msra.mxu0 %v3622
        %3896 = vmatprep.subr.bf16.mxu0 0
        %3897 = vmatpush2.bf16.msra.mxu0 %v3621
        %3898 = vmatprep.subr.bf16.mxu0 0
        %3899 = vmatpush2.bf16.msra.mxu0 %v3620
        %3900 = vmatprep.mubr.bf16.mxu0 %v566
        %3901 = vmatmul.mubr.bf16.gmra.mxu0 %v565
        %v3902 = vpop.f32.mrf.mxu0
        %v3903 = vadd.f32 %v3098, %v3902
        %v3904 = vpop.f32.mrf.mxu0
        %v3905 = vpop.f32.mrf.mxu0
        %v3906 = vadd.f32 %v3098, %v3905
        %v3907 = vpop.f32.mrf.mxu0
        %3908 = vmatprep.mubr.bf16.mxu0 %v568
        %3909 = vmatmul.mubr.bf16.gmra.mxu0 %v567
        %v3910 = vpop.f32.mrf.mxu0
        %v3911 = vadd.f32 %v3098, %v3910
        %v3912 = vpop.f32.mrf.mxu0
        %v3913 = vpop.f32.mrf.mxu0
        %v3914 = vadd.f32 %v3098, %v3913
        %v3915 = vpop.f32.mrf.mxu0
        %3916 = vmatprep.mubr.bf16.mxu0 %v570
        %3917 = vmatmul.mubr.bf16.gmra.mxu0 %v569
        %v3918 = vpop.f32.mrf.mxu0
        %v3919 = vadd.f32 %v3098, %v3918
        %v3920 = vpop.f32.mrf.mxu0
        %v3921 = vpop.f32.mrf.mxu0
        %v3922 = vadd.f32 %v3098, %v3921
        %v3923 = vpop.f32.mrf.mxu0
        %3924 = vmatprep.mubr.bf16.mxu0 %v572
        %3925 = vmatmul.mubr.bf16.gmra.mxu0 %v571
        %v3926 = vpop.f32.mrf.mxu0
        %v3927 = vadd.f32 %v3098, %v3926
        %v3928 = vpop.f32.mrf.mxu0
        %v3929 = vpop.f32.mrf.mxu0
        %v3930 = vadd.f32 %v3098, %v3929
        %v3931 = vpop.f32.mrf.mxu0
        %3932 = vmatprep.mubr.bf16.mxu0 %v574
        %3933 = vmatmul.mubr.bf16.gmra.mxu0 %v573
        %v3934 = vpop.f32.mrf.mxu0
        %v3935 = vadd.f32 %v3098, %v3934
        %v3936 = vpop.f32.mrf.mxu0
        %v3937 = vpop.f32.mrf.mxu0
        %v3938 = vadd.f32 %v3098, %v3937
        %v3939 = vpop.f32.mrf.mxu0
        %3940 = vmatprep.mubr.bf16.mxu0 %v576
        %3941 = vmatmul.mubr.bf16.gmra.mxu0 %v575
        %v3942 = vpop.f32.mrf.mxu0
        %v3943 = vadd.f32 %v3098, %v3942
        %v3944 = vpop.f32.mrf.mxu0
        %v3945 = vpop.f32.mrf.mxu0
        %v3946 = vadd.f32 %v3098, %v3945
        %v3947 = vpop.f32.mrf.mxu0
        %3948 = vmatprep.mubr.bf16.mxu0 %v578
        %3949 = vmatmul.mubr.bf16.gmra.mxu0 %v577
        %v3950 = vpop.f32.mrf.mxu0
        %v3951 = vadd.f32 %v3098, %v3950
        %v3952 = vpop.f32.mrf.mxu0
        %v3953 = vpop.f32.mrf.mxu0
        %v3954 = vadd.f32 %v3098, %v3953
        %v3955 = vpop.f32.mrf.mxu0
        %3956 = vmatprep.mubr.bf16.mxu0 %v580
        %3957 = vmatmul.mubr.bf16.gmra.mxu0 %v579
        %v3958 = vpop.f32.mrf.mxu0
        %v3959 = vadd.f32 %v3098, %v3958
        %v3960 = vpop.f32.mrf.mxu0
        %v3961 = vpop.f32.mrf.mxu0
        %v3962 = vadd.f32 %v3098, %v3961
        %v3963 = vpop.f32.mrf.mxu0
        %3964 = vmatprep.mubr.bf16.mxu0 %v582
        %3965 = vmatmul.mubr.bf16.gmra.mxu0 %v581
        %v3966 = vpop.f32.mrf.mxu0
        %v3967 = vadd.f32 %v3098, %v3966
        %v3968 = vpop.f32.mrf.mxu0
        %v3969 = vpop.f32.mrf.mxu0
        %v3970 = vadd.f32 %v3098, %v3969
        %v3971 = vpop.f32.mrf.mxu0
        %3972 = vmatprep.mubr.bf16.mxu0 %v584
        %3973 = vmatmul.mubr.bf16.gmra.mxu0 %v583
        %v3974 = vpop.f32.mrf.mxu0
        %v3975 = vadd.f32 %v3098, %v3974
        %v3976 = vpop.f32.mrf.mxu0
        %v3977 = vpop.f32.mrf.mxu0
        %v3978 = vadd.f32 %v3098, %v3977
        %v3979 = vpop.f32.mrf.mxu0
        %3980 = vmatprep.mubr.bf16.mxu0 %v586
        %3981 = vmatmul.mubr.bf16.gmra.mxu0 %v585
        %v3982 = vpop.f32.mrf.mxu0
        %v3983 = vadd.f32 %v3098, %v3982
        %v3984 = vpop.f32.mrf.mxu0
        %v3985 = vpop.f32.mrf.mxu0
        %v3986 = vadd.f32 %v3098, %v3985
        %v3987 = vpop.f32.mrf.mxu0
        %3988 = vmatprep.mubr.bf16.mxu0 %v588
        %3989 = vmatmul.mubr.bf16.gmra.mxu0 %v587
        %v3990 = vpop.f32.mrf.mxu0
        %v3991 = vadd.f32 %v3098, %v3990
        %v3992 = vpop.f32.mrf.mxu0
        %v3993 = vpop.f32.mrf.mxu0
        %v3994 = vadd.f32 %v3098, %v3993
        %v3995 = vpop.f32.mrf.mxu0
        %3996 = vmatprep.mubr.bf16.mxu0 %v590
        %3997 = vmatmul.mubr.bf16.gmra.mxu0 %v589
        %v3998 = vpop.f32.mrf.mxu0
        %v3999 = vadd.f32 %v3098, %v3998
        %v4000 = vpop.f32.mrf.mxu0
        %v4001 = vpop.f32.mrf.mxu0
        %v4002 = vadd.f32 %v3098, %v4001
        %v4003 = vpop.f32.mrf.mxu0
        %4004 = vmatprep.mubr.bf16.mxu0 %v592
        %4005 = vmatmul.mubr.bf16.gmra.mxu0 %v591
        %v4006 = vpop.f32.mrf.mxu0
        %v4007 = vadd.f32 %v3098, %v4006
        %v4008 = vpop.f32.mrf.mxu0
        %v4009 = vpop.f32.mrf.mxu0
        %v4010 = vadd.f32 %v3098, %v4009
        %v4011 = vpop.f32.mrf.mxu0
        %4012 = vmatprep.mubr.bf16.mxu0 %v594
        %4013 = vmatmul.mubr.bf16.gmra.mxu0 %v593
        %v4014 = vpop.f32.mrf.mxu0
        %v4015 = vadd.f32 %v3098, %v4014
        %v4016 = vpop.f32.mrf.mxu0
        %v4017 = vpop.f32.mrf.mxu0
        %v4018 = vadd.f32 %v3098, %v4017
        %v4019 = vpop.f32.mrf.mxu0
        %4020 = vmatprep.mubr.bf16.mxu0 %v596
        %4021 = vmatmul.mubr.bf16.gmra.mxu0 %v595
        %v4022 = vpop.f32.mrf.mxu0
        %v4023 = vadd.f32 %v3098, %v4022
        %v4024 = vpop.f32.mrf.mxu0
        %v4025 = vpop.f32.mrf.mxu0
        %v4026 = vadd.f32 %v3098, %v4025
        %v4027 = vpop.f32.mrf.mxu0
        %4028 = vdwg.mxu0
        %4029 = vmatprep.subr.bf16.mxu0 0
        %4030 = vmatpush1.bf16.msra.mxu0 %v3635
        %4031 = vmatprep.subr.bf16.mxu0 0
        %4032 = vmatpush1.bf16.msra.mxu0 %v3634
        %4033 = vmatprep.subr.bf16.mxu0 0
        %4034 = vmatpush1.bf16.msra.mxu0 %v3633
        %4035 = vmatprep.subr.bf16.mxu0 0
        %4036 = vmatpush1.bf16.msra.mxu0 %v3632
        %4037 = vmatprep.subr.bf16.mxu0 0
        %4038 = vmatpush1.bf16.msra.mxu0 %v3631
        %4039 = vmatprep.subr.bf16.mxu0 0
        %4040 = vmatpush1.bf16.msra.mxu0 %v3630
        %4041 = vmatprep.subr.bf16.mxu0 0
        %4042 = vmatpush1.bf16.msra.mxu0 %v3629
        %4043 = vmatprep.subr.bf16.mxu0 0
        %4044 = vmatpush1.bf16.msra.mxu0 %v3628
        %4045 = vmatprep.subr.bf16.mxu0 0
        %4046 = vmatpush2.bf16.msra.mxu0 %v3643
        %4047 = vmatprep.subr.bf16.mxu0 0
        %4048 = vmatpush2.bf16.msra.mxu0 %v3642
        %4049 = vmatprep.subr.bf16.mxu0 0
        %4050 = vmatpush2.bf16.msra.mxu0 %v3641
        %4051 = vmatprep.subr.bf16.mxu0 0
        %4052 = vmatpush2.bf16.msra.mxu0 %v3640
        %4053 = vmatprep.subr.bf16.mxu0 0
        %4054 = vmatpush2.bf16.msra.mxu0 %v3639
        %4055 = vmatprep.subr.bf16.mxu0 0
        %4056 = vmatpush2.bf16.msra.mxu0 %v3638
        %4057 = vmatprep.subr.bf16.mxu0 0
        %4058 = vmatpush2.bf16.msra.mxu0 %v3637
        %4059 = vmatprep.subr.bf16.mxu0 0
        %4060 = vmatpush2.bf16.msra.mxu0 %v3636
        %4061 = vmatprep.mubr.bf16.mxu0 %v886
        %4062 = vmatmul.mubr.bf16.gmra.mxu0 %v885
        %v4063 = vpop.f32.mrf.mxu0
        %v4064 = vadd.f32 %v3903, %v4063
        %v4065 = vpop.f32.mrf.mxu0
        %v4066 = vpop.f32.mrf.mxu0
        %v4067 = vadd.f32 %v3906, %v4066
        %v4068 = vpop.f32.mrf.mxu0
        %4069 = vmatprep.mubr.bf16.mxu0 %v888
        %4070 = vmatmul.mubr.bf16.gmra.mxu0 %v887
        %v4071 = vpop.f32.mrf.mxu0
        %v4072 = vadd.f32 %v3911, %v4071
        %v4073 = vpop.f32.mrf.mxu0
        %v4074 = vpop.f32.mrf.mxu0
        %v4075 = vadd.f32 %v3914, %v4074
        %v4076 = vpop.f32.mrf.mxu0
        %4077 = vmatprep.mubr.bf16.mxu0 %v890
        %4078 = vmatmul.mubr.bf16.gmra.mxu0 %v889
        %v4079 = vpop.f32.mrf.mxu0
        %v4080 = vadd.f32 %v3919, %v4079
        %v4081 = vpop.f32.mrf.mxu0
        %v4082 = vpop.f32.mrf.mxu0
        %v4083 = vadd.f32 %v3922, %v4082
        %v4084 = vpop.f32.mrf.mxu0
        %4085 = vmatprep.mubr.bf16.mxu0 %v892
        %4086 = vmatmul.mubr.bf16.gmra.mxu0 %v891
        %v4087 = vpop.f32.mrf.mxu0
        %v4088 = vadd.f32 %v3927, %v4087
        %v4089 = vpop.f32.mrf.mxu0
        %v4090 = vpop.f32.mrf.mxu0
        %v4091 = vadd.f32 %v3930, %v4090
        %v4092 = vpop.f32.mrf.mxu0
        %4093 = vmatprep.mubr.bf16.mxu0 %v894
        %4094 = vmatmul.mubr.bf16.gmra.mxu0 %v893
        %v4095 = vpop.f32.mrf.mxu0
        %v4096 = vadd.f32 %v3935, %v4095
        %v4097 = vpop.f32.mrf.mxu0
        %v4098 = vpop.f32.mrf.mxu0
        %v4099 = vadd.f32 %v3938, %v4098
        %v4100 = vpop.f32.mrf.mxu0
        %4101 = vmatprep.mubr.bf16.mxu0 %v896
        %4102 = vmatmul.mubr.bf16.gmra.mxu0 %v895
        %v4103 = vpop.f32.mrf.mxu0
        %v4104 = vadd.f32 %v3943, %v4103
        %v4105 = vpop.f32.mrf.mxu0
        %v4106 = vpop.f32.mrf.mxu0
        %v4107 = vadd.f32 %v3946, %v4106
        %v4108 = vpop.f32.mrf.mxu0
        %4109 = vmatprep.mubr.bf16.mxu0 %v898
        %4110 = vmatmul.mubr.bf16.gmra.mxu0 %v897
        %v4111 = vpop.f32.mrf.mxu0
        %v4112 = vadd.f32 %v3951, %v4111
        %v4113 = vpop.f32.mrf.mxu0
        %v4114 = vpop.f32.mrf.mxu0
        %v4115 = vadd.f32 %v3954, %v4114
        %v4116 = vpop.f32.mrf.mxu0
        %4117 = vmatprep.mubr.bf16.mxu0 %v900
        %4118 = vmatmul.mubr.bf16.gmra.mxu0 %v899
        %v4119 = vpop.f32.mrf.mxu0
        %v4120 = vadd.f32 %v3959, %v4119
        %v4121 = vpop.f32.mrf.mxu0
        %v4122 = vpop.f32.mrf.mxu0
        %v4123 = vadd.f32 %v3962, %v4122
        %v4124 = vpop.f32.mrf.mxu0
        %4125 = vmatprep.mubr.bf16.mxu0 %v902
        %4126 = vmatmul.mubr.bf16.gmra.mxu0 %v901
        %v4127 = vpop.f32.mrf.mxu0
        %v4128 = vadd.f32 %v3967, %v4127
        %v4129 = vpop.f32.mrf.mxu0
        %v4130 = vpop.f32.mrf.mxu0
        %v4131 = vadd.f32 %v3970, %v4130
        %v4132 = vpop.f32.mrf.mxu0
        %4133 = vmatprep.mubr.bf16.mxu0 %v904
        %4134 = vmatmul.mubr.bf16.gmra.mxu0 %v903
        %v4135 = vpop.f32.mrf.mxu0
        %v4136 = vadd.f32 %v3975, %v4135
        %v4137 = vpop.f32.mrf.mxu0
        %v4138 = vpop.f32.mrf.mxu0
        %v4139 = vadd.f32 %v3978, %v4138
        %v4140 = vpop.f32.mrf.mxu0
        %4141 = vmatprep.mubr.bf16.mxu0 %v906
        %4142 = vmatmul.mubr.bf16.gmra.mxu0 %v905
        %v4143 = vpop.f32.mrf.mxu0
        %v4144 = vadd.f32 %v3983, %v4143
        %v4145 = vpop.f32.mrf.mxu0
        %v4146 = vpop.f32.mrf.mxu0
        %v4147 = vadd.f32 %v3986, %v4146
        %v4148 = vpop.f32.mrf.mxu0
        %4149 = vmatprep.mubr.bf16.mxu0 %v908
        %4150 = vmatmul.mubr.bf16.gmra.mxu0 %v907
        %v4151 = vpop.f32.mrf.mxu0
        %v4152 = vadd.f32 %v3991, %v4151
        %v4153 = vpop.f32.mrf.mxu0
        %v4154 = vpop.f32.mrf.mxu0
        %v4155 = vadd.f32 %v3994, %v4154
        %v4156 = vpop.f32.mrf.mxu0
        %4157 = vmatprep.mubr.bf16.mxu0 %v910
        %4158 = vmatmul.mubr.bf16.gmra.mxu0 %v909
        %v4159 = vpop.f32.mrf.mxu0
        %v4160 = vadd.f32 %v3999, %v4159
        %v4161 = vpop.f32.mrf.mxu0
        %v4162 = vpop.f32.mrf.mxu0
        %v4163 = vadd.f32 %v4002, %v4162
        %v4164 = vpop.f32.mrf.mxu0
        %4165 = vmatprep.mubr.bf16.mxu0 %v912
        %4166 = vmatmul.mubr.bf16.gmra.mxu0 %v911
        %v4167 = vpop.f32.mrf.mxu0
        %v4168 = vadd.f32 %v4007, %v4167
        %v4169 = vpop.f32.mrf.mxu0
        %v4170 = vpop.f32.mrf.mxu0
        %v4171 = vadd.f32 %v4010, %v4170
        %v4172 = vpop.f32.mrf.mxu0
        %4173 = vmatprep.mubr.bf16.mxu0 %v914
        %4174 = vmatmul.mubr.bf16.gmra.mxu0 %v913
        %v4175 = vpop.f32.mrf.mxu0
        %v4176 = vadd.f32 %v4015, %v4175
        %v4177 = vpop.f32.mrf.mxu0
        %v4178 = vpop.f32.mrf.mxu0
        %v4179 = vadd.f32 %v4018, %v4178
        %v4180 = vpop.f32.mrf.mxu0
        %4181 = vmatprep.mubr.bf16.mxu0 %v916
        %4182 = vmatmul.mubr.bf16.gmra.mxu0 %v915
        %v4183 = vpop.f32.mrf.mxu0
        %v4184 = vadd.f32 %v4023, %v4183
        %v4185 = vpop.f32.mrf.mxu0
        %v4186 = vpop.f32.mrf.mxu0
        %v4187 = vadd.f32 %v4026, %v4186
        %v4188 = vpop.f32.mrf.mxu0
        %4189 = vdwg.mxu0
        %4190 = vmatprep.subr.bf16.mxu0 0
        %4191 = vmatpush1.bf16.msra.mxu0 %v3651
        %4192 = vmatprep.subr.bf16.mxu0 0
        %4193 = vmatpush1.bf16.msra.mxu0 %v3650
        %4194 = vmatprep.subr.bf16.mxu0 0
        %4195 = vmatpush1.bf16.msra.mxu0 %v3649
        %4196 = vmatprep.subr.bf16.mxu0 0
        %4197 = vmatpush1.bf16.msra.mxu0 %v3648
        %4198 = vmatprep.subr.bf16.mxu0 0
        %4199 = vmatpush1.bf16.msra.mxu0 %v3647
        %4200 = vmatprep.subr.bf16.mxu0 0
        %4201 = vmatpush1.bf16.msra.mxu0 %v3646
        %4202 = vmatprep.subr.bf16.mxu0 0
        %4203 = vmatpush1.bf16.msra.mxu0 %v3645
        %4204 = vmatprep.subr.bf16.mxu0 0
        %4205 = vmatpush1.bf16.msra.mxu0 %v3644
        %4206 = vmatprep.subr.bf16.mxu0 0
        %4207 = vmatpush2.bf16.msra.mxu0 %v3659
        %4208 = vmatprep.subr.bf16.mxu0 0
        %4209 = vmatpush2.bf16.msra.mxu0 %v3658
        %4210 = vmatprep.subr.bf16.mxu0 0
        %4211 = vmatpush2.bf16.msra.mxu0 %v3657
        %4212 = vmatprep.subr.bf16.mxu0 0
        %4213 = vmatpush2.bf16.msra.mxu0 %v3656
        %4214 = vmatprep.subr.bf16.mxu0 0
        %4215 = vmatpush2.bf16.msra.mxu0 %v3655
        %4216 = vmatprep.subr.bf16.mxu0 0
        %4217 = vmatpush2.bf16.msra.mxu0 %v3654
        %4218 = vmatprep.subr.bf16.mxu0 0
        %4219 = vmatpush2.bf16.msra.mxu0 %v3653
        %4220 = vmatprep.subr.bf16.mxu0 0
        %4221 = vmatpush2.bf16.msra.mxu0 %v3652
        %4222 = vmatprep.mubr.bf16.mxu0 %v1206
        %4223 = vmatmul.mubr.bf16.gmra.mxu0 %v1205
        %v4224 = vpop.f32.mrf.mxu0
        %v4225 = vadd.f32 %v4064, %v4224
        %v4226 = vpop.f32.mrf.mxu0
        %v4227 = vpop.f32.mrf.mxu0
        %v4228 = vadd.f32 %v4067, %v4227
        %v4229 = vpop.f32.mrf.mxu0
        %4230 = vmatprep.mubr.bf16.mxu0 %v1208
        %4231 = vmatmul.mubr.bf16.gmra.mxu0 %v1207
        %v4232 = vpop.f32.mrf.mxu0
        %v4233 = vadd.f32 %v4072, %v4232
        %v4234 = vpop.f32.mrf.mxu0
        %v4235 = vpop.f32.mrf.mxu0
        %v4236 = vadd.f32 %v4075, %v4235
        %v4237 = vpop.f32.mrf.mxu0
        %4238 = vmatprep.mubr.bf16.mxu0 %v1210
        %4239 = vmatmul.mubr.bf16.gmra.mxu0 %v1209
        %v4240 = vpop.f32.mrf.mxu0
        %v4241 = vadd.f32 %v4080, %v4240
        %v4242 = vpop.f32.mrf.mxu0
        %v4243 = vpop.f32.mrf.mxu0
        %v4244 = vadd.f32 %v4083, %v4243
        %v4245 = vpop.f32.mrf.mxu0
        %4246 = vmatprep.mubr.bf16.mxu0 %v1212
        %4247 = vmatmul.mubr.bf16.gmra.mxu0 %v1211
        %v4248 = vpop.f32.mrf.mxu0
        %v4249 = vadd.f32 %v4088, %v4248
        %v4250 = vpop.f32.mrf.mxu0
        %v4251 = vpop.f32.mrf.mxu0
        %v4252 = vadd.f32 %v4091, %v4251
        %v4253 = vpop.f32.mrf.mxu0
        %4254 = vmatprep.mubr.bf16.mxu0 %v1214
        %4255 = vmatmul.mubr.bf16.gmra.mxu0 %v1213
        %v4256 = vpop.f32.mrf.mxu0
        %v4257 = vadd.f32 %v4096, %v4256
        %v4258 = vpop.f32.mrf.mxu0
        %v4259 = vpop.f32.mrf.mxu0
        %v4260 = vadd.f32 %v4099, %v4259
        %v4261 = vpop.f32.mrf.mxu0
        %4262 = vmatprep.mubr.bf16.mxu0 %v1216
        %4263 = vmatmul.mubr.bf16.gmra.mxu0 %v1215
        %v4264 = vpop.f32.mrf.mxu0
        %v4265 = vadd.f32 %v4104, %v4264
        %v4266 = vpop.f32.mrf.mxu0
        %v4267 = vpop.f32.mrf.mxu0
        %v4268 = vadd.f32 %v4107, %v4267
        %v4269 = vpop.f32.mrf.mxu0
        %4270 = vmatprep.mubr.bf16.mxu0 %v1218
        %4271 = vmatmul.mubr.bf16.gmra.mxu0 %v1217
        %v4272 = vpop.f32.mrf.mxu0
        %v4273 = vadd.f32 %v4112, %v4272
        %v4274 = vpop.f32.mrf.mxu0
        %v4275 = vpop.f32.mrf.mxu0
        %v4276 = vadd.f32 %v4115, %v4275
        %v4277 = vpop.f32.mrf.mxu0
        %4278 = vmatprep.mubr.bf16.mxu0 %v1220
        %4279 = vmatmul.mubr.bf16.gmra.mxu0 %v1219
        %v4280 = vpop.f32.mrf.mxu0
        %v4281 = vadd.f32 %v4120, %v4280
        %v4282 = vpop.f32.mrf.mxu0
        %v4283 = vpop.f32.mrf.mxu0
        %v4284 = vadd.f32 %v4123, %v4283
        %v4285 = vpop.f32.mrf.mxu0
        %4286 = vmatprep.mubr.bf16.mxu0 %v1222
        %4287 = vmatmul.mubr.bf16.gmra.mxu0 %v1221
        %v4288 = vpop.f32.mrf.mxu0
        %v4289 = vadd.f32 %v4128, %v4288
        %v4290 = vpop.f32.mrf.mxu0
        %v4291 = vpop.f32.mrf.mxu0
        %v4292 = vadd.f32 %v4131, %v4291
        %v4293 = vpop.f32.mrf.mxu0
        %4294 = vmatprep.mubr.bf16.mxu0 %v1224
        %4295 = vmatmul.mubr.bf16.gmra.mxu0 %v1223
        %v4296 = vpop.f32.mrf.mxu0
        %v4297 = vadd.f32 %v4136, %v4296
        %v4298 = vpop.f32.mrf.mxu0
        %v4299 = vpop.f32.mrf.mxu0
        %v4300 = vadd.f32 %v4139, %v4299
        %v4301 = vpop.f32.mrf.mxu0
        %4302 = vmatprep.mubr.bf16.mxu0 %v1226
        %4303 = vmatmul.mubr.bf16.gmra.mxu0 %v1225
        %v4304 = vpop.f32.mrf.mxu0
        %v4305 = vadd.f32 %v4144, %v4304
        %v4306 = vpop.f32.mrf.mxu0
        %v4307 = vpop.f32.mrf.mxu0
        %v4308 = vadd.f32 %v4147, %v4307
        %v4309 = vpop.f32.mrf.mxu0
        %4310 = vmatprep.mubr.bf16.mxu0 %v1228
        %4311 = vmatmul.mubr.bf16.gmra.mxu0 %v1227
        %v4312 = vpop.f32.mrf.mxu0
        %v4313 = vadd.f32 %v4152, %v4312
        %v4314 = vpop.f32.mrf.mxu0
        %v4315 = vpop.f32.mrf.mxu0
        %v4316 = vadd.f32 %v4155, %v4315
        %v4317 = vpop.f32.mrf.mxu0
        %4318 = vmatprep.mubr.bf16.mxu0 %v1230
        %4319 = vmatmul.mubr.bf16.gmra.mxu0 %v1229
        %v4320 = vpop.f32.mrf.mxu0
        %v4321 = vadd.f32 %v4160, %v4320
        %v4322 = vpop.f32.mrf.mxu0
        %v4323 = vpop.f32.mrf.mxu0
        %v4324 = vadd.f32 %v4163, %v4323
        %v4325 = vpop.f32.mrf.mxu0
        %4326 = vmatprep.mubr.bf16.mxu0 %v1232
        %4327 = vmatmul.mubr.bf16.gmra.mxu0 %v1231
        %v4328 = vpop.f32.mrf.mxu0
        %v4329 = vadd.f32 %v4168, %v4328
        %v4330 = vpop.f32.mrf.mxu0
        %v4331 = vpop.f32.mrf.mxu0
        %v4332 = vadd.f32 %v4171, %v4331
        %v4333 = vpop.f32.mrf.mxu0
        %4334 = vmatprep.mubr.bf16.mxu0 %v1234
        %4335 = vmatmul.mubr.bf16.gmra.mxu0 %v1233
        %v4336 = vpop.f32.mrf.mxu0
        %v4337 = vadd.f32 %v4176, %v4336
        %v4338 = vpop.f32.mrf.mxu0
        %v4339 = vpop.f32.mrf.mxu0
        %v4340 = vadd.f32 %v4179, %v4339
        %v4341 = vpop.f32.mrf.mxu0
        %4342 = vmatprep.mubr.bf16.mxu0 %v1236
        %4343 = vmatmul.mubr.bf16.gmra.mxu0 %v1235
        %v4344 = vpop.f32.mrf.mxu0
        %v4345 = vadd.f32 %v4184, %v4344
        %v4346 = vpop.f32.mrf.mxu0
        %v4347 = vpop.f32.mrf.mxu0
        %v4348 = vadd.f32 %v4187, %v4347
        %v4349 = vpop.f32.mrf.mxu0
        %4350 = vdwg.mxu0
        %4351 = vmatprep.subr.bf16.mxu0 0
        %4352 = vmatpush1.bf16.msra.mxu0 %v3667
        %4353 = vmatprep.subr.bf16.mxu0 0
        %4354 = vmatpush1.bf16.msra.mxu0 %v3666
        %4355 = vmatprep.subr.bf16.mxu0 0
        %4356 = vmatpush1.bf16.msra.mxu0 %v3665
        %4357 = vmatprep.subr.bf16.mxu0 0
        %4358 = vmatpush1.bf16.msra.mxu0 %v3664
        %4359 = vmatprep.subr.bf16.mxu0 0
        %4360 = vmatpush1.bf16.msra.mxu0 %v3663
        %4361 = vmatprep.subr.bf16.mxu0 0
        %4362 = vmatpush1.bf16.msra.mxu0 %v3662
        %4363 = vmatprep.subr.bf16.mxu0 0
        %4364 = vmatpush1.bf16.msra.mxu0 %v3661
        %4365 = vmatprep.subr.bf16.mxu0 0
        %4366 = vmatpush1.bf16.msra.mxu0 %v3660
        %4367 = vmatprep.subr.bf16.mxu0 0
        %4368 = vmatpush2.bf16.msra.mxu0 %v3675
        %4369 = vmatprep.subr.bf16.mxu0 0
        %4370 = vmatpush2.bf16.msra.mxu0 %v3674
        %4371 = vmatprep.subr.bf16.mxu0 0
        %4372 = vmatpush2.bf16.msra.mxu0 %v3673
        %4373 = vmatprep.subr.bf16.mxu0 0
        %4374 = vmatpush2.bf16.msra.mxu0 %v3672
        %4375 = vmatprep.subr.bf16.mxu0 0
        %4376 = vmatpush2.bf16.msra.mxu0 %v3671
        %4377 = vmatprep.subr.bf16.mxu0 0
        %4378 = vmatpush2.bf16.msra.mxu0 %v3670
        %4379 = vmatprep.subr.bf16.mxu0 0
        %4380 = vmatpush2.bf16.msra.mxu0 %v3669
        %4381 = vmatprep.subr.bf16.mxu0 0
        %4382 = vmatpush2.bf16.msra.mxu0 %v3668
        %4383 = vmatprep.mubr.bf16.mxu0 %v1526
        %4384 = vmatmul.mubr.bf16.gmra.mxu0 %v1525
        %v4385 = vpop.f32.mrf.mxu0
        %v4386 = vadd.f32 %v4225, %v4385
        %v4387 = vpop.f32.mrf.mxu0
        %v4388 = vpop.f32.mrf.mxu0
        %v4389 = vadd.f32 %v4228, %v4388
        %v4390 = vpop.f32.mrf.mxu0
        %4391 = vmatprep.mubr.bf16.mxu0 %v1528
        %4392 = vmatmul.mubr.bf16.gmra.mxu0 %v1527
        %v4393 = vpop.f32.mrf.mxu0
        %v4394 = vadd.f32 %v4233, %v4393
        %v4395 = vpop.f32.mrf.mxu0
        %v4396 = vpop.f32.mrf.mxu0
        %v4397 = vadd.f32 %v4236, %v4396
        %v4398 = vpop.f32.mrf.mxu0
        %4399 = vmatprep.mubr.bf16.mxu0 %v1530
        %4400 = vmatmul.mubr.bf16.gmra.mxu0 %v1529
        %v4401 = vpop.f32.mrf.mxu0
        %v4402 = vadd.f32 %v4241, %v4401
        %v4403 = vpop.f32.mrf.mxu0
        %v4404 = vpop.f32.mrf.mxu0
        %v4405 = vadd.f32 %v4244, %v4404
        %v4406 = vpop.f32.mrf.mxu0
        %4407 = vmatprep.mubr.bf16.mxu0 %v1532
        %4408 = vmatmul.mubr.bf16.gmra.mxu0 %v1531
        %v4409 = vpop.f32.mrf.mxu0
        %v4410 = vadd.f32 %v4249, %v4409
        %v4411 = vpop.f32.mrf.mxu0
        %v4412 = vpop.f32.mrf.mxu0
        %v4413 = vadd.f32 %v4252, %v4412
        %v4414 = vpop.f32.mrf.mxu0
        %4415 = vmatprep.mubr.bf16.mxu0 %v1534
        %4416 = vmatmul.mubr.bf16.gmra.mxu0 %v1533
        %v4417 = vpop.f32.mrf.mxu0
        %v4418 = vadd.f32 %v4257, %v4417
        %v4419 = vpop.f32.mrf.mxu0
        %v4420 = vpop.f32.mrf.mxu0
        %v4421 = vadd.f32 %v4260, %v4420
        %v4422 = vpop.f32.mrf.mxu0
        %4423 = vmatprep.mubr.bf16.mxu0 %v1536
        %4424 = vmatmul.mubr.bf16.gmra.mxu0 %v1535
        %v4425 = vpop.f32.mrf.mxu0
        %v4426 = vadd.f32 %v4265, %v4425
        %v4427 = vpop.f32.mrf.mxu0
        %v4428 = vpop.f32.mrf.mxu0
        %v4429 = vadd.f32 %v4268, %v4428
        %v4430 = vpop.f32.mrf.mxu0
        %4431 = vmatprep.mubr.bf16.mxu0 %v1538
        %4432 = vmatmul.mubr.bf16.gmra.mxu0 %v1537
        %v4433 = vpop.f32.mrf.mxu0
        %v4434 = vadd.f32 %v4273, %v4433
        %v4435 = vpop.f32.mrf.mxu0
        %v4436 = vpop.f32.mrf.mxu0
        %v4437 = vadd.f32 %v4276, %v4436
        %v4438 = vpop.f32.mrf.mxu0
        %4439 = vmatprep.mubr.bf16.mxu0 %v1540
        %4440 = vmatmul.mubr.bf16.gmra.mxu0 %v1539
        %v4441 = vpop.f32.mrf.mxu0
        %v4442 = vadd.f32 %v4281, %v4441
        %v4443 = vpop.f32.mrf.mxu0
        %v4444 = vpop.f32.mrf.mxu0
        %v4445 = vadd.f32 %v4284, %v4444
        %v4446 = vpop.f32.mrf.mxu0
        %4447 = vmatprep.mubr.bf16.mxu0 %v1542
        %4448 = vmatmul.mubr.bf16.gmra.mxu0 %v1541
        %v4449 = vpop.f32.mrf.mxu0
        %v4450 = vadd.f32 %v4289, %v4449
        %v4451 = vpop.f32.mrf.mxu0
        %v4452 = vpop.f32.mrf.mxu0
        %v4453 = vadd.f32 %v4292, %v4452
        %v4454 = vpop.f32.mrf.mxu0
        %4455 = vmatprep.mubr.bf16.mxu0 %v1544
        %4456 = vmatmul.mubr.bf16.gmra.mxu0 %v1543
        %v4457 = vpop.f32.mrf.mxu0
        %v4458 = vadd.f32 %v4297, %v4457
        %v4459 = vpop.f32.mrf.mxu0
        %v4460 = vpop.f32.mrf.mxu0
        %v4461 = vadd.f32 %v4300, %v4460
        %v4462 = vpop.f32.mrf.mxu0
        %4463 = vmatprep.mubr.bf16.mxu0 %v1546
        %4464 = vmatmul.mubr.bf16.gmra.mxu0 %v1545
        %v4465 = vpop.f32.mrf.mxu0
        %v4466 = vadd.f32 %v4305, %v4465
        %v4467 = vpop.f32.mrf.mxu0
        %v4468 = vpop.f32.mrf.mxu0
        %v4469 = vadd.f32 %v4308, %v4468
        %v4470 = vpop.f32.mrf.mxu0
        %4471 = vmatprep.mubr.bf16.mxu0 %v1548
        %4472 = vmatmul.mubr.bf16.gmra.mxu0 %v1547
        %v4473 = vpop.f32.mrf.mxu0
        %v4474 = vadd.f32 %v4313, %v4473
        %v4475 = vpop.f32.mrf.mxu0
        %v4476 = vpop.f32.mrf.mxu0
        %v4477 = vadd.f32 %v4316, %v4476
        %v4478 = vpop.f32.mrf.mxu0
        %4479 = vmatprep.mubr.bf16.mxu0 %v1550
        %4480 = vmatmul.mubr.bf16.gmra.mxu0 %v1549
        %v4481 = vpop.f32.mrf.mxu0
        %v4482 = vadd.f32 %v4321, %v4481
        %v4483 = vpop.f32.mrf.mxu0
        %v4484 = vpop.f32.mrf.mxu0
        %v4485 = vadd.f32 %v4324, %v4484
        %v4486 = vpop.f32.mrf.mxu0
        %4487 = vmatprep.mubr.bf16.mxu0 %v1552
        %4488 = vmatmul.mubr.bf16.gmra.mxu0 %v1551
        %v4489 = vpop.f32.mrf.mxu0
        %v4490 = vadd.f32 %v4329, %v4489
        %v4491 = vpop.f32.mrf.mxu0
        %v4492 = vpop.f32.mrf.mxu0
        %v4493 = vadd.f32 %v4332, %v4492
        %v4494 = vpop.f32.mrf.mxu0
        %4495 = vmatprep.mubr.bf16.mxu0 %v1554
        %4496 = vmatmul.mubr.bf16.gmra.mxu0 %v1553
        %v4497 = vpop.f32.mrf.mxu0
        %v4498 = vadd.f32 %v4337, %v4497
        %v4499 = vpop.f32.mrf.mxu0
        %v4500 = vpop.f32.mrf.mxu0
        %v4501 = vadd.f32 %v4340, %v4500
        %v4502 = vpop.f32.mrf.mxu0
        %4503 = vmatprep.mubr.bf16.mxu0 %v1556
        %4504 = vmatmul.mubr.bf16.gmra.mxu0 %v1555
        %v4505 = vpop.f32.mrf.mxu0
        %v4506 = vadd.f32 %v4345, %v4505
        %v4507 = vpop.f32.mrf.mxu0
        %v4508 = vpop.f32.mrf.mxu0
        %v4509 = vadd.f32 %v4348, %v4508
        %v4510 = vpop.f32.mrf.mxu0
        %4511 = vdwg.mxu0
        %4512 = vmatprep.subr.bf16.mxu0 0
        %4513 = vmatpush1.bf16.msra.mxu0 %v3683
        %4514 = vmatprep.subr.bf16.mxu0 0
        %4515 = vmatpush1.bf16.msra.mxu0 %v3682
        %4516 = vmatprep.subr.bf16.mxu0 0
        %4517 = vmatpush1.bf16.msra.mxu0 %v3681
        %4518 = vmatprep.subr.bf16.mxu0 0
        %4519 = vmatpush1.bf16.msra.mxu0 %v3680
        %4520 = vmatprep.subr.bf16.mxu0 0
        %4521 = vmatpush1.bf16.msra.mxu0 %v3679
        %4522 = vmatprep.subr.bf16.mxu0 0
        %4523 = vmatpush1.bf16.msra.mxu0 %v3678
        %4524 = vmatprep.subr.bf16.mxu0 0
        %4525 = vmatpush1.bf16.msra.mxu0 %v3677
        %4526 = vmatprep.subr.bf16.mxu0 0
        %4527 = vmatpush1.bf16.msra.mxu0 %v3676
        %4528 = vmatprep.subr.bf16.mxu0 0
        %4529 = vmatpush2.bf16.msra.mxu0 %v3691
        %4530 = vmatprep.subr.bf16.mxu0 0
        %4531 = vmatpush2.bf16.msra.mxu0 %v3690
        %4532 = vmatprep.subr.bf16.mxu0 0
        %4533 = vmatpush2.bf16.msra.mxu0 %v3689
        %4534 = vmatprep.subr.bf16.mxu0 0
        %4535 = vmatpush2.bf16.msra.mxu0 %v3688
        %4536 = vmatprep.subr.bf16.mxu0 0
        %4537 = vmatpush2.bf16.msra.mxu0 %v3687
        %4538 = vmatprep.subr.bf16.mxu0 0
        %4539 = vmatpush2.bf16.msra.mxu0 %v3686
        %4540 = vmatprep.subr.bf16.mxu0 0
        %4541 = vmatpush2.bf16.msra.mxu0 %v3685
        %4542 = vmatprep.subr.bf16.mxu0 0
        %4543 = vmatpush2.bf16.msra.mxu0 %v3684
        %4544 = vmatprep.mubr.bf16.mxu0 %v1846
        %4545 = vmatmul.mubr.bf16.gmra.mxu0 %v1845
        %v4546 = vpop.f32.mrf.mxu0
        %v4547 = vadd.f32 %v4386, %v4546
        %v4548 = vpop.f32.mrf.mxu0
        %v4549 = vpop.f32.mrf.mxu0
        %v4550 = vadd.f32 %v4389, %v4549
        %v4551 = vpop.f32.mrf.mxu0
        %4552 = vmatprep.mubr.bf16.mxu0 %v1848
        %4553 = vmatmul.mubr.bf16.gmra.mxu0 %v1847
        %v4554 = vpop.f32.mrf.mxu0
        %v4555 = vadd.f32 %v4394, %v4554
        %v4556 = vpop.f32.mrf.mxu0
        %v4557 = vpop.f32.mrf.mxu0
        %v4558 = vadd.f32 %v4397, %v4557
        %v4559 = vpop.f32.mrf.mxu0
        %4560 = vmatprep.mubr.bf16.mxu0 %v1850
        %4561 = vmatmul.mubr.bf16.gmra.mxu0 %v1849
        %v4562 = vpop.f32.mrf.mxu0
        %v4563 = vadd.f32 %v4402, %v4562
        %v4564 = vpop.f32.mrf.mxu0
        %v4565 = vpop.f32.mrf.mxu0
        %v4566 = vadd.f32 %v4405, %v4565
        %v4567 = vpop.f32.mrf.mxu0
        %4568 = vmatprep.mubr.bf16.mxu0 %v1852
        %4569 = vmatmul.mubr.bf16.gmra.mxu0 %v1851
        %v4570 = vpop.f32.mrf.mxu0
        %v4571 = vadd.f32 %v4410, %v4570
        %v4572 = vpop.f32.mrf.mxu0
        %v4573 = vpop.f32.mrf.mxu0
        %v4574 = vadd.f32 %v4413, %v4573
        %v4575 = vpop.f32.mrf.mxu0
        %4576 = vmatprep.mubr.bf16.mxu0 %v1854
        %4577 = vmatmul.mubr.bf16.gmra.mxu0 %v1853
        %v4578 = vpop.f32.mrf.mxu0
        %v4579 = vadd.f32 %v4418, %v4578
        %v4580 = vpop.f32.mrf.mxu0
        %v4581 = vpop.f32.mrf.mxu0
        %v4582 = vadd.f32 %v4421, %v4581
        %v4583 = vpop.f32.mrf.mxu0
        %4584 = vmatprep.mubr.bf16.mxu0 %v1856
        %4585 = vmatmul.mubr.bf16.gmra.mxu0 %v1855
        %v4586 = vpop.f32.mrf.mxu0
        %v4587 = vadd.f32 %v4426, %v4586
        %v4588 = vpop.f32.mrf.mxu0
        %v4589 = vpop.f32.mrf.mxu0
        %v4590 = vadd.f32 %v4429, %v4589
        %v4591 = vpop.f32.mrf.mxu0
        %4592 = vmatprep.mubr.bf16.mxu0 %v1858
        %4593 = vmatmul.mubr.bf16.gmra.mxu0 %v1857
        %v4594 = vpop.f32.mrf.mxu0
        %v4595 = vadd.f32 %v4434, %v4594
        %v4596 = vpop.f32.mrf.mxu0
        %v4597 = vpop.f32.mrf.mxu0
        %v4598 = vadd.f32 %v4437, %v4597
        %v4599 = vpop.f32.mrf.mxu0
        %4600 = vmatprep.mubr.bf16.mxu0 %v1860
        %4601 = vmatmul.mubr.bf16.gmra.mxu0 %v1859
        %v4602 = vpop.f32.mrf.mxu0
        %v4603 = vadd.f32 %v4442, %v4602
        %v4604 = vpop.f32.mrf.mxu0
        %v4605 = vpop.f32.mrf.mxu0
        %v4606 = vadd.f32 %v4445, %v4605
        %v4607 = vpop.f32.mrf.mxu0
        %4608 = vmatprep.mubr.bf16.mxu0 %v1862
        %4609 = vmatmul.mubr.bf16.gmra.mxu0 %v1861
        %v4610 = vpop.f32.mrf.mxu0
        %v4611 = vadd.f32 %v4450, %v4610
        %v4612 = vpop.f32.mrf.mxu0
        %v4613 = vpop.f32.mrf.mxu0
        %v4614 = vadd.f32 %v4453, %v4613
        %v4615 = vpop.f32.mrf.mxu0
        %4616 = vmatprep.mubr.bf16.mxu0 %v1864
        %4617 = vmatmul.mubr.bf16.gmra.mxu0 %v1863
        %v4618 = vpop.f32.mrf.mxu0
        %v4619 = vadd.f32 %v4458, %v4618
        %v4620 = vpop.f32.mrf.mxu0
        %v4621 = vpop.f32.mrf.mxu0
        %v4622 = vadd.f32 %v4461, %v4621
        %v4623 = vpop.f32.mrf.mxu0
        %4624 = vmatprep.mubr.bf16.mxu0 %v1866
        %4625 = vmatmul.mubr.bf16.gmra.mxu0 %v1865
        %v4626 = vpop.f32.mrf.mxu0
        %v4627 = vadd.f32 %v4466, %v4626
        %v4628 = vpop.f32.mrf.mxu0
        %v4629 = vpop.f32.mrf.mxu0
        %v4630 = vadd.f32 %v4469, %v4629
        %v4631 = vpop.f32.mrf.mxu0
        %4632 = vmatprep.mubr.bf16.mxu0 %v1868
        %4633 = vmatmul.mubr.bf16.gmra.mxu0 %v1867
        %v4634 = vpop.f32.mrf.mxu0
        %v4635 = vadd.f32 %v4474, %v4634
        %v4636 = vpop.f32.mrf.mxu0
        %v4637 = vpop.f32.mrf.mxu0
        %v4638 = vadd.f32 %v4477, %v4637
        %v4639 = vpop.f32.mrf.mxu0
        %4640 = vmatprep.mubr.bf16.mxu0 %v1870
        %4641 = vmatmul.mubr.bf16.gmra.mxu0 %v1869
        %v4642 = vpop.f32.mrf.mxu0
        %v4643 = vadd.f32 %v4482, %v4642
        %v4644 = vpop.f32.mrf.mxu0
        %v4645 = vpop.f32.mrf.mxu0
        %v4646 = vadd.f32 %v4485, %v4645
        %v4647 = vpop.f32.mrf.mxu0
        %4648 = vmatprep.mubr.bf16.mxu0 %v1872
        %4649 = vmatmul.mubr.bf16.gmra.mxu0 %v1871
        %v4650 = vpop.f32.mrf.mxu0
        %v4651 = vadd.f32 %v4490, %v4650
        %v4652 = vpop.f32.mrf.mxu0
        %v4653 = vpop.f32.mrf.mxu0
        %v4654 = vadd.f32 %v4493, %v4653
        %v4655 = vpop.f32.mrf.mxu0
        %4656 = vmatprep.mubr.bf16.mxu0 %v1874
        %4657 = vmatmul.mubr.bf16.gmra.mxu0 %v1873
        %v4658 = vpop.f32.mrf.mxu0
        %v4659 = vadd.f32 %v4498, %v4658
        %v4660 = vpop.f32.mrf.mxu0
        %v4661 = vpop.f32.mrf.mxu0
        %v4662 = vadd.f32 %v4501, %v4661
        %v4663 = vpop.f32.mrf.mxu0
        %4664 = vmatprep.mubr.bf16.mxu0 %v1876
        %4665 = vmatmul.mubr.bf16.gmra.mxu0 %v1875
        %v4666 = vpop.f32.mrf.mxu0
        %v4667 = vadd.f32 %v4506, %v4666
        %v4668 = vpop.f32.mrf.mxu0
        %v4669 = vpop.f32.mrf.mxu0
        %v4670 = vadd.f32 %v4509, %v4669
        %v4671 = vpop.f32.mrf.mxu0
        %4672 = vdwg.mxu0
        %4673 = vmatprep.subr.bf16.mxu0 0
        %4674 = vmatpush1.bf16.msra.mxu0 %v3699
        %4675 = vmatprep.subr.bf16.mxu0 0
        %4676 = vmatpush1.bf16.msra.mxu0 %v3698
        %4677 = vmatprep.subr.bf16.mxu0 0
        %4678 = vmatpush1.bf16.msra.mxu0 %v3697
        %4679 = vmatprep.subr.bf16.mxu0 0
        %4680 = vmatpush1.bf16.msra.mxu0 %v3696
        %4681 = vmatprep.subr.bf16.mxu0 0
        %4682 = vmatpush1.bf16.msra.mxu0 %v3695
        %4683 = vmatprep.subr.bf16.mxu0 0
        %4684 = vmatpush1.bf16.msra.mxu0 %v3694
        %4685 = vmatprep.subr.bf16.mxu0 0
        %4686 = vmatpush1.bf16.msra.mxu0 %v3693
        %4687 = vmatprep.subr.bf16.mxu0 0
        %4688 = vmatpush1.bf16.msra.mxu0 %v3692
        %4689 = vmatprep.subr.bf16.mxu0 0
        %4690 = vmatpush2.bf16.msra.mxu0 %v3707
        %4691 = vmatprep.subr.bf16.mxu0 0
        %4692 = vmatpush2.bf16.msra.mxu0 %v3706
        %4693 = vmatprep.subr.bf16.mxu0 0
        %4694 = vmatpush2.bf16.msra.mxu0 %v3705
        %4695 = vmatprep.subr.bf16.mxu0 0
        %4696 = vmatpush2.bf16.msra.mxu0 %v3704
        %4697 = vmatprep.subr.bf16.mxu0 0
        %4698 = vmatpush2.bf16.msra.mxu0 %v3703
        %4699 = vmatprep.subr.bf16.mxu0 0
        %4700 = vmatpush2.bf16.msra.mxu0 %v3702
        %4701 = vmatprep.subr.bf16.mxu0 0
        %4702 = vmatpush2.bf16.msra.mxu0 %v3701
        %4703 = vmatprep.subr.bf16.mxu0 0
        %4704 = vmatpush2.bf16.msra.mxu0 %v3700
        %4705 = vmatprep.mubr.bf16.mxu0 %v2166
        %4706 = vmatmul.mubr.bf16.gmra.mxu0 %v2165
        %v4707 = vpop.f32.mrf.mxu0
        %v4708 = vadd.f32 %v4547, %v4707
        %v4709 = vpop.f32.mrf.mxu0
        %v4710 = vpop.f32.mrf.mxu0
        %v4711 = vadd.f32 %v4550, %v4710
        %v4712 = vpop.f32.mrf.mxu0
        %4713 = vmatprep.mubr.bf16.mxu0 %v2168
        %4714 = vmatmul.mubr.bf16.gmra.mxu0 %v2167
        %v4715 = vpop.f32.mrf.mxu0
        %v4716 = vadd.f32 %v4555, %v4715
        %v4717 = vpop.f32.mrf.mxu0
        %v4718 = vpop.f32.mrf.mxu0
        %v4719 = vadd.f32 %v4558, %v4718
        %v4720 = vpop.f32.mrf.mxu0
        %4721 = vmatprep.mubr.bf16.mxu0 %v2170
        %4722 = vmatmul.mubr.bf16.gmra.mxu0 %v2169
        %v4723 = vpop.f32.mrf.mxu0
        %v4724 = vadd.f32 %v4563, %v4723
        %v4725 = vpop.f32.mrf.mxu0
        %v4726 = vpop.f32.mrf.mxu0
        %v4727 = vadd.f32 %v4566, %v4726
        %v4728 = vpop.f32.mrf.mxu0
        %4729 = vmatprep.mubr.bf16.mxu0 %v2172
        %4730 = vmatmul.mubr.bf16.gmra.mxu0 %v2171
        %v4731 = vpop.f32.mrf.mxu0
        %v4732 = vadd.f32 %v4571, %v4731
        %v4733 = vpop.f32.mrf.mxu0
        %v4734 = vpop.f32.mrf.mxu0
        %v4735 = vadd.f32 %v4574, %v4734
        %v4736 = vpop.f32.mrf.mxu0
        %4737 = vmatprep.mubr.bf16.mxu0 %v2174
        %4738 = vmatmul.mubr.bf16.gmra.mxu0 %v2173
        %v4739 = vpop.f32.mrf.mxu0
        %v4740 = vadd.f32 %v4579, %v4739
        %v4741 = vpop.f32.mrf.mxu0
        %v4742 = vpop.f32.mrf.mxu0
        %v4743 = vadd.f32 %v4582, %v4742
        %v4744 = vpop.f32.mrf.mxu0
        %4745 = vmatprep.mubr.bf16.mxu0 %v2176
        %4746 = vmatmul.mubr.bf16.gmra.mxu0 %v2175
        %v4747 = vpop.f32.mrf.mxu0
        %v4748 = vadd.f32 %v4587, %v4747
        %v4749 = vpop.f32.mrf.mxu0
        %v4750 = vpop.f32.mrf.mxu0
        %v4751 = vadd.f32 %v4590, %v4750
        %v4752 = vpop.f32.mrf.mxu0
        %4753 = vmatprep.mubr.bf16.mxu0 %v2178
        %4754 = vmatmul.mubr.bf16.gmra.mxu0 %v2177
        %v4755 = vpop.f32.mrf.mxu0
        %v4756 = vadd.f32 %v4595, %v4755
        %v4757 = vpop.f32.mrf.mxu0
        %v4758 = vpop.f32.mrf.mxu0
        %v4759 = vadd.f32 %v4598, %v4758
        %v4760 = vpop.f32.mrf.mxu0
        %4761 = vmatprep.mubr.bf16.mxu0 %v2180
        %4762 = vmatmul.mubr.bf16.gmra.mxu0 %v2179
        %v4763 = vpop.f32.mrf.mxu0
        %v4764 = vadd.f32 %v4603, %v4763
        %v4765 = vpop.f32.mrf.mxu0
        %v4766 = vpop.f32.mrf.mxu0
        %v4767 = vadd.f32 %v4606, %v4766
        %v4768 = vpop.f32.mrf.mxu0
        %4769 = vmatprep.mubr.bf16.mxu0 %v2182
        %4770 = vmatmul.mubr.bf16.gmra.mxu0 %v2181
        %v4771 = vpop.f32.mrf.mxu0
        %v4772 = vadd.f32 %v4611, %v4771
        %v4773 = vpop.f32.mrf.mxu0
        %v4774 = vpop.f32.mrf.mxu0
        %v4775 = vadd.f32 %v4614, %v4774
        %v4776 = vpop.f32.mrf.mxu0
        %4777 = vmatprep.mubr.bf16.mxu0 %v2184
        %4778 = vmatmul.mubr.bf16.gmra.mxu0 %v2183
        %v4779 = vpop.f32.mrf.mxu0
        %v4780 = vadd.f32 %v4619, %v4779
        %v4781 = vpop.f32.mrf.mxu0
        %v4782 = vpop.f32.mrf.mxu0
        %v4783 = vadd.f32 %v4622, %v4782
        %v4784 = vpop.f32.mrf.mxu0
        %4785 = vmatprep.mubr.bf16.mxu0 %v2186
        %4786 = vmatmul.mubr.bf16.gmra.mxu0 %v2185
        %v4787 = vpop.f32.mrf.mxu0
        %v4788 = vadd.f32 %v4627, %v4787
        %v4789 = vpop.f32.mrf.mxu0
        %v4790 = vpop.f32.mrf.mxu0
        %v4791 = vadd.f32 %v4630, %v4790
        %v4792 = vpop.f32.mrf.mxu0
        %4793 = vmatprep.mubr.bf16.mxu0 %v2188
        %4794 = vmatmul.mubr.bf16.gmra.mxu0 %v2187
        %v4795 = vpop.f32.mrf.mxu0
        %v4796 = vadd.f32 %v4635, %v4795
        %v4797 = vpop.f32.mrf.mxu0
        %v4798 = vpop.f32.mrf.mxu0
        %v4799 = vadd.f32 %v4638, %v4798
        %v4800 = vpop.f32.mrf.mxu0
        %4801 = vmatprep.mubr.bf16.mxu0 %v2190
        %4802 = vmatmul.mubr.bf16.gmra.mxu0 %v2189
        %v4803 = vpop.f32.mrf.mxu0
        %v4804 = vadd.f32 %v4643, %v4803
        %v4805 = vpop.f32.mrf.mxu0
        %v4806 = vpop.f32.mrf.mxu0
        %v4807 = vadd.f32 %v4646, %v4806
        %v4808 = vpop.f32.mrf.mxu0
        %4809 = vmatprep.mubr.bf16.mxu0 %v2192
        %4810 = vmatmul.mubr.bf16.gmra.mxu0 %v2191
        %v4811 = vpop.f32.mrf.mxu0
        %v4812 = vadd.f32 %v4651, %v4811
        %v4813 = vpop.f32.mrf.mxu0
        %v4814 = vpop.f32.mrf.mxu0
        %v4815 = vadd.f32 %v4654, %v4814
        %v4816 = vpop.f32.mrf.mxu0
        %4817 = vmatprep.mubr.bf16.mxu0 %v2194
        %4818 = vmatmul.mubr.bf16.gmra.mxu0 %v2193
        %v4819 = vpop.f32.mrf.mxu0
        %v4820 = vadd.f32 %v4659, %v4819
        %v4821 = vpop.f32.mrf.mxu0
        %v4822 = vpop.f32.mrf.mxu0
        %v4823 = vadd.f32 %v4662, %v4822
        %v4824 = vpop.f32.mrf.mxu0
        %4825 = vmatprep.mubr.bf16.mxu0 %v2196
        %4826 = vmatmul.mubr.bf16.gmra.mxu0 %v2195
        %v4827 = vpop.f32.mrf.mxu0
        %v4828 = vadd.f32 %v4667, %v4827
        %v4829 = vpop.f32.mrf.mxu0
        %v4830 = vpop.f32.mrf.mxu0
        %v4831 = vadd.f32 %v4670, %v4830
        %v4832 = vpop.f32.mrf.mxu0
        %4833 = vdwg.mxu0
        %4834 = vmatprep.subr.bf16.mxu0 0
        %4835 = vmatpush1.bf16.msra.mxu0 %v3715
        %4836 = vmatprep.subr.bf16.mxu0 0
        %4837 = vmatpush1.bf16.msra.mxu0 %v3714
        %4838 = vmatprep.subr.bf16.mxu0 0
        %4839 = vmatpush1.bf16.msra.mxu0 %v3713
        %4840 = vmatprep.subr.bf16.mxu0 0
        %4841 = vmatpush1.bf16.msra.mxu0 %v3712
        %4842 = vmatprep.subr.bf16.mxu0 0
        %4843 = vmatpush1.bf16.msra.mxu0 %v3711
        %4844 = vmatprep.subr.bf16.mxu0 0
        %4845 = vmatpush1.bf16.msra.mxu0 %v3710
        %4846 = vmatprep.subr.bf16.mxu0 0
        %4847 = vmatpush1.bf16.msra.mxu0 %v3709
        %4848 = vmatprep.subr.bf16.mxu0 0
        %4849 = vmatpush1.bf16.msra.mxu0 %v3708
        %4850 = vmatprep.subr.bf16.mxu0 0
        %4851 = vmatpush2.bf16.msra.mxu0 %v3723
        %4852 = vmatprep.subr.bf16.mxu0 0
        %4853 = vmatpush2.bf16.msra.mxu0 %v3722
        %4854 = vmatprep.subr.bf16.mxu0 0
        %4855 = vmatpush2.bf16.msra.mxu0 %v3721
        %4856 = vmatprep.subr.bf16.mxu0 0
        %4857 = vmatpush2.bf16.msra.mxu0 %v3720
        %4858 = vmatprep.subr.bf16.mxu0 0
        %4859 = vmatpush2.bf16.msra.mxu0 %v3719
        %4860 = vmatprep.subr.bf16.mxu0 0
        %4861 = vmatpush2.bf16.msra.mxu0 %v3718
        %4862 = vmatprep.subr.bf16.mxu0 0
        %4863 = vmatpush2.bf16.msra.mxu0 %v3717
        %4864 = vmatprep.subr.bf16.mxu0 0
        %4865 = vmatpush2.bf16.msra.mxu0 %v3716
        %4866 = vmatprep.mubr.bf16.mxu0 %v2486
        %4867 = vmatmul.mubr.bf16.gmra.mxu0 %v2485
        %v4868 = vpop.f32.mrf.mxu0
        %v4869 = vadd.f32 %v4708, %v4868
        %v4870 = vpop.f32.mrf.mxu0
        %v4871 = vpop.f32.mrf.mxu0
        %v4872 = vadd.f32 %v4711, %v4871
        %v4873 = vpop.f32.mrf.mxu0
        %4874 = vmatprep.mubr.bf16.mxu0 %v2488
        %4875 = vmatmul.mubr.bf16.gmra.mxu0 %v2487
        %v4876 = vpop.f32.mrf.mxu0
        %v4877 = vadd.f32 %v4716, %v4876
        %v4878 = vpop.f32.mrf.mxu0
        %v4879 = vpop.f32.mrf.mxu0
        %v4880 = vadd.f32 %v4719, %v4879
        %v4881 = vpop.f32.mrf.mxu0
        %4882 = vmatprep.mubr.bf16.mxu0 %v2490
        %4883 = vmatmul.mubr.bf16.gmra.mxu0 %v2489
        %v4884 = vpop.f32.mrf.mxu0
        %v4885 = vadd.f32 %v4724, %v4884
        %v4886 = vpop.f32.mrf.mxu0
        %v4887 = vpop.f32.mrf.mxu0
        %v4888 = vadd.f32 %v4727, %v4887
        %v4889 = vpop.f32.mrf.mxu0
        %4890 = vmatprep.mubr.bf16.mxu0 %v2492
        %4891 = vmatmul.mubr.bf16.gmra.mxu0 %v2491
        %v4892 = vpop.f32.mrf.mxu0
        %v4893 = vadd.f32 %v4732, %v4892
        %v4894 = vpop.f32.mrf.mxu0
        %v4895 = vpop.f32.mrf.mxu0
        %v4896 = vadd.f32 %v4735, %v4895
        %v4897 = vpop.f32.mrf.mxu0
        %4898 = vmatprep.mubr.bf16.mxu0 %v2494
        %4899 = vmatmul.mubr.bf16.gmra.mxu0 %v2493
        %v4900 = vpop.f32.mrf.mxu0
        %v4901 = vadd.f32 %v4740, %v4900
        %v4902 = vpop.f32.mrf.mxu0
        %v4903 = vpop.f32.mrf.mxu0
        %v4904 = vadd.f32 %v4743, %v4903
        %v4905 = vpop.f32.mrf.mxu0
        %4906 = vmatprep.mubr.bf16.mxu0 %v2496
        %4907 = vmatmul.mubr.bf16.gmra.mxu0 %v2495
        %v4908 = vpop.f32.mrf.mxu0
        %v4909 = vadd.f32 %v4748, %v4908
        %v4910 = vpop.f32.mrf.mxu0
        %v4911 = vpop.f32.mrf.mxu0
        %v4912 = vadd.f32 %v4751, %v4911
        %v4913 = vpop.f32.mrf.mxu0
        %4914 = vmatprep.mubr.bf16.mxu0 %v2498
        %4915 = vmatmul.mubr.bf16.gmra.mxu0 %v2497
        %v4916 = vpop.f32.mrf.mxu0
        %v4917 = vadd.f32 %v4756, %v4916
        %v4918 = vpop.f32.mrf.mxu0
        %v4919 = vpop.f32.mrf.mxu0
        %v4920 = vadd.f32 %v4759, %v4919
        %v4921 = vpop.f32.mrf.mxu0
        %4922 = vmatprep.mubr.bf16.mxu0 %v2500
        %4923 = vmatmul.mubr.bf16.gmra.mxu0 %v2499
        %v4924 = vpop.f32.mrf.mxu0
        %v4925 = vadd.f32 %v4764, %v4924
        %v4926 = vpop.f32.mrf.mxu0
        %v4927 = vpop.f32.mrf.mxu0
        %v4928 = vadd.f32 %v4767, %v4927
        %v4929 = vpop.f32.mrf.mxu0
        %4930 = vmatprep.mubr.bf16.mxu0 %v2502
        %4931 = vmatmul.mubr.bf16.gmra.mxu0 %v2501
        %v4932 = vpop.f32.mrf.mxu0
        %v4933 = vadd.f32 %v4772, %v4932
        %v4934 = vpop.f32.mrf.mxu0
        %v4935 = vpop.f32.mrf.mxu0
        %v4936 = vadd.f32 %v4775, %v4935
        %v4937 = vpop.f32.mrf.mxu0
        %4938 = vmatprep.mubr.bf16.mxu0 %v2504
        %4939 = vmatmul.mubr.bf16.gmra.mxu0 %v2503
        %v4940 = vpop.f32.mrf.mxu0
        %v4941 = vadd.f32 %v4780, %v4940
        %v4942 = vpop.f32.mrf.mxu0
        %v4943 = vpop.f32.mrf.mxu0
        %v4944 = vadd.f32 %v4783, %v4943
        %v4945 = vpop.f32.mrf.mxu0
        %4946 = vmatprep.mubr.bf16.mxu0 %v2506
        %4947 = vmatmul.mubr.bf16.gmra.mxu0 %v2505
        %v4948 = vpop.f32.mrf.mxu0
        %v4949 = vadd.f32 %v4788, %v4948
        %v4950 = vpop.f32.mrf.mxu0
        %v4951 = vpop.f32.mrf.mxu0
        %v4952 = vadd.f32 %v4791, %v4951
        %v4953 = vpop.f32.mrf.mxu0
        %4954 = vmatprep.mubr.bf16.mxu0 %v2508
        %4955 = vmatmul.mubr.bf16.gmra.mxu0 %v2507
        %v4956 = vpop.f32.mrf.mxu0
        %v4957 = vadd.f32 %v4796, %v4956
        %v4958 = vpop.f32.mrf.mxu0
        %v4959 = vpop.f32.mrf.mxu0
        %v4960 = vadd.f32 %v4799, %v4959
        %v4961 = vpop.f32.mrf.mxu0
        %4962 = vmatprep.mubr.bf16.mxu0 %v2510
        %4963 = vmatmul.mubr.bf16.gmra.mxu0 %v2509
        %v4964 = vpop.f32.mrf.mxu0
        %v4965 = vadd.f32 %v4804, %v4964
        %v4966 = vpop.f32.mrf.mxu0
        %v4967 = vpop.f32.mrf.mxu0
        %v4968 = vadd.f32 %v4807, %v4967
        %v4969 = vpop.f32.mrf.mxu0
        %4970 = vmatprep.mubr.bf16.mxu0 %v2512
        %4971 = vmatmul.mubr.bf16.gmra.mxu0 %v2511
        %v4972 = vpop.f32.mrf.mxu0
        %v4973 = vadd.f32 %v4812, %v4972
        %v4974 = vpop.f32.mrf.mxu0
        %v4975 = vpop.f32.mrf.mxu0
        %v4976 = vadd.f32 %v4815, %v4975
        %v4977 = vpop.f32.mrf.mxu0
        %4978 = vmatprep.mubr.bf16.mxu0 %v2514
        %4979 = vmatmul.mubr.bf16.gmra.mxu0 %v2513
        %v4980 = vpop.f32.mrf.mxu0
        %v4981 = vadd.f32 %v4820, %v4980
        %v4982 = vpop.f32.mrf.mxu0
        %v4983 = vpop.f32.mrf.mxu0
        %v4984 = vadd.f32 %v4823, %v4983
        %v4985 = vpop.f32.mrf.mxu0
        %4986 = vmatprep.mubr.bf16.mxu0 %v2516
        %4987 = vmatmul.mubr.bf16.gmra.mxu0 %v2515
        %v4988 = vpop.f32.mrf.mxu0
        %v4989 = vadd.f32 %v4828, %v4988
        %v4990 = vpop.f32.mrf.mxu0
        %v4991 = vpop.f32.mrf.mxu0
        %v4992 = vadd.f32 %v4831, %v4991
        %v4993 = vpop.f32.mrf.mxu0
        %4994 = vdwg.mxu0
        %4995 = vmatprep.subr.bf16.mxu0 0
        %4996 = vmatpush1.bf16.msra.mxu0 %v3731
        %4997 = vmatprep.subr.bf16.mxu0 0
        %4998 = vmatpush1.bf16.msra.mxu0 %v3730
        %4999 = vmatprep.subr.bf16.mxu0 0
        %5000 = vmatpush1.bf16.msra.mxu0 %v3729
        %5001 = vmatprep.subr.bf16.mxu0 0
        %5002 = vmatpush1.bf16.msra.mxu0 %v3728
        %5003 = vmatprep.subr.bf16.mxu0 0
        %5004 = vmatpush1.bf16.msra.mxu0 %v3727
        %5005 = vmatprep.subr.bf16.mxu0 0
        %5006 = vmatpush1.bf16.msra.mxu0 %v3726
        %5007 = vmatprep.subr.bf16.mxu0 0
        %5008 = vmatpush1.bf16.msra.mxu0 %v3725
        %5009 = vmatprep.subr.bf16.mxu0 0
        %5010 = vmatpush1.bf16.msra.mxu0 %v3724
        %5011 = vmatprep.subr.bf16.mxu0 0
        %5012 = vmatpush2.bf16.msra.mxu0 %v3739
        %5013 = vmatprep.subr.bf16.mxu0 0
        %5014 = vmatpush2.bf16.msra.mxu0 %v3738
        %5015 = vmatprep.subr.bf16.mxu0 0
        %5016 = vmatpush2.bf16.msra.mxu0 %v3737
        %5017 = vmatprep.subr.bf16.mxu0 0
        %5018 = vmatpush2.bf16.msra.mxu0 %v3736
        %5019 = vmatprep.subr.bf16.mxu0 0
        %5020 = vmatpush2.bf16.msra.mxu0 %v3735
        %5021 = vmatprep.subr.bf16.mxu0 0
        %5022 = vmatpush2.bf16.msra.mxu0 %v3734
        %5023 = vmatprep.subr.bf16.mxu0 0
        %5024 = vmatpush2.bf16.msra.mxu0 %v3733
        %5025 = vmatprep.subr.bf16.mxu0 0
        %5026 = vmatpush2.bf16.msra.mxu0 %v3732
        %5027 = vmatprep.mubr.bf16.mxu0 %v2806
        %5028 = vmatmul.mubr.bf16.gmra.mxu0 %v2805
        %v5029 = vpop.f32.mrf.mxu0
        %v5030 = vadd.f32 %v4869, %v5029
        %v5031 = vpop.f32.mrf.mxu0
        %v5032 = vpop.f32.mrf.mxu0
        %v5033 = vadd.f32 %v4872, %v5032
        %v5034 = vpop.f32.mrf.mxu0
        %5035 = vmatprep.mubr.bf16.mxu0 %v2808
        %5036 = vmatmul.mubr.bf16.gmra.mxu0 %v2807
        %v5037 = vpop.f32.mrf.mxu0
        %v5038 = vadd.f32 %v4877, %v5037
        %v5039 = vpop.f32.mrf.mxu0
        %v5040 = vpop.f32.mrf.mxu0
        %v5041 = vadd.f32 %v4880, %v5040
        %v5042 = vpop.f32.mrf.mxu0
        %5043 = vmatprep.mubr.bf16.mxu0 %v2810
        %5044 = vmatmul.mubr.bf16.gmra.mxu0 %v2809
        %v5045 = vpop.f32.mrf.mxu0
        %v5046 = vadd.f32 %v4885, %v5045
        %v5047 = vpop.f32.mrf.mxu0
        %v5048 = vpop.f32.mrf.mxu0
        %v5049 = vadd.f32 %v4888, %v5048
        %v5050 = vpop.f32.mrf.mxu0
        %5051 = vmatprep.mubr.bf16.mxu0 %v2812
        %5052 = vmatmul.mubr.bf16.gmra.mxu0 %v2811
        %v5053 = vpop.f32.mrf.mxu0
        %v5054 = vadd.f32 %v4893, %v5053
        %v5055 = vpop.f32.mrf.mxu0
        %v5056 = vpop.f32.mrf.mxu0
        %v5057 = vadd.f32 %v4896, %v5056
        %v5058 = vpop.f32.mrf.mxu0
        %5059 = vmatprep.mubr.bf16.mxu0 %v2814
        %5060 = vmatmul.mubr.bf16.gmra.mxu0 %v2813
        %v5061 = vpop.f32.mrf.mxu0
        %v5062 = vadd.f32 %v4901, %v5061
        %v5063 = vpop.f32.mrf.mxu0
        %v5064 = vpop.f32.mrf.mxu0
        %v5065 = vadd.f32 %v4904, %v5064
        %v5066 = vpop.f32.mrf.mxu0
        %5067 = vmatprep.mubr.bf16.mxu0 %v2816
        %5068 = vmatmul.mubr.bf16.gmra.mxu0 %v2815
        %v5069 = vpop.f32.mrf.mxu0
        %v5070 = vadd.f32 %v4909, %v5069
        %v5071 = vpop.f32.mrf.mxu0
        %v5072 = vpop.f32.mrf.mxu0
        %v5073 = vadd.f32 %v4912, %v5072
        %v5074 = vpop.f32.mrf.mxu0
        %5075 = vmatprep.mubr.bf16.mxu0 %v2818
        %5076 = vmatmul.mubr.bf16.gmra.mxu0 %v2817
        %v5077 = vpop.f32.mrf.mxu0
        %v5078 = vadd.f32 %v4917, %v5077
        %v5079 = vpop.f32.mrf.mxu0
        %v5080 = vpop.f32.mrf.mxu0
        %v5081 = vadd.f32 %v4920, %v5080
        %v5082 = vpop.f32.mrf.mxu0
        %5083 = vmatprep.mubr.bf16.mxu0 %v2820
        %5084 = vmatmul.mubr.bf16.gmra.mxu0 %v2819
        %v5085 = vpop.f32.mrf.mxu0
        %v5086 = vadd.f32 %v4925, %v5085
        %v5087 = vpop.f32.mrf.mxu0
        %v5088 = vpop.f32.mrf.mxu0
        %v5089 = vadd.f32 %v4928, %v5088
        %v5090 = vpop.f32.mrf.mxu0
        %5091 = vmatprep.mubr.bf16.mxu0 %v2822
        %5092 = vmatmul.mubr.bf16.gmra.mxu0 %v2821
        %v5093 = vpop.f32.mrf.mxu0
        %v5094 = vadd.f32 %v4933, %v5093
        %v5095 = vpop.f32.mrf.mxu0
        %v5096 = vpop.f32.mrf.mxu0
        %v5097 = vadd.f32 %v4936, %v5096
        %v5098 = vpop.f32.mrf.mxu0
        %5099 = vmatprep.mubr.bf16.mxu0 %v2824
        %5100 = vmatmul.mubr.bf16.gmra.mxu0 %v2823
        %v5101 = vpop.f32.mrf.mxu0
        %v5102 = vadd.f32 %v4941, %v5101
        %v5103 = vpop.f32.mrf.mxu0
        %v5104 = vpop.f32.mrf.mxu0
        %v5105 = vadd.f32 %v4944, %v5104
        %v5106 = vpop.f32.mrf.mxu0
        %5107 = vmatprep.mubr.bf16.mxu0 %v2826
        %5108 = vmatmul.mubr.bf16.gmra.mxu0 %v2825
        %v5109 = vpop.f32.mrf.mxu0
        %v5110 = vadd.f32 %v4949, %v5109
        %v5111 = vpop.f32.mrf.mxu0
        %v5112 = vpop.f32.mrf.mxu0
        %v5113 = vadd.f32 %v4952, %v5112
        %v5114 = vpop.f32.mrf.mxu0
        %5115 = vmatprep.mubr.bf16.mxu0 %v2828
        %5116 = vmatmul.mubr.bf16.gmra.mxu0 %v2827
        %v5117 = vpop.f32.mrf.mxu0
        %v5118 = vadd.f32 %v4957, %v5117
        %v5119 = vpop.f32.mrf.mxu0
        %v5120 = vpop.f32.mrf.mxu0
        %v5121 = vadd.f32 %v4960, %v5120
        %v5122 = vpop.f32.mrf.mxu0
        %5123 = vmatprep.mubr.bf16.mxu0 %v2830
        %5124 = vmatmul.mubr.bf16.gmra.mxu0 %v2829
        %v5125 = vpop.f32.mrf.mxu0
        %v5126 = vadd.f32 %v4965, %v5125
        %v5127 = vpop.f32.mrf.mxu0
        %v5128 = vpop.f32.mrf.mxu0
        %v5129 = vadd.f32 %v4968, %v5128
        %v5130 = vpop.f32.mrf.mxu0
        %5131 = vmatprep.mubr.bf16.mxu0 %v2832
        %5132 = vmatmul.mubr.bf16.gmra.mxu0 %v2831
        %v5133 = vpop.f32.mrf.mxu0
        %v5134 = vadd.f32 %v4973, %v5133
        %v5135 = vpop.f32.mrf.mxu0
        %v5136 = vpop.f32.mrf.mxu0
        %v5137 = vadd.f32 %v4976, %v5136
        %v5138 = vpop.f32.mrf.mxu0
        %5139 = vmatprep.mubr.bf16.mxu0 %v2834
        %5140 = vmatmul.mubr.bf16.gmra.mxu0 %v2833
        %v5141 = vpop.f32.mrf.mxu0
        %v5142 = vadd.f32 %v4981, %v5141
        %v5143 = vpop.f32.mrf.mxu0
        %v5144 = vpop.f32.mrf.mxu0
        %v5145 = vadd.f32 %v4984, %v5144
        %v5146 = vpop.f32.mrf.mxu0
        %5147 = vmatprep.mubr.bf16.mxu0 %v2836
        %5148 = vmatmul.mubr.bf16.gmra.mxu0 %v2835
        %v5149 = vpop.f32.mrf.mxu0
        %v5150 = vadd.f32 %v4989, %v5149
        %v5151 = vpop.f32.mrf.mxu0
        %v5152 = vpop.f32.mrf.mxu0
        %v5153 = vadd.f32 %v4992, %v5152
        %v5154 = vpop.f32.mrf.mxu0
        %5155 = vdwg.mxu0
        %v5156 = vmax.f32 %v5030, 0.0
        %v5157 = vmax.f32 %v5033, 0.0
        %v5158 = vmax.f32 %v5038, 0.0
        %v5159 = vmax.f32 %v5041, 0.0
        %v5160 = vmax.f32 %v5046, 0.0
        %v5161 = vmax.f32 %v5049, 0.0
        %v5162 = vmax.f32 %v5054, 0.0
        %v5163 = vmax.f32 %v5057, 0.0
        %v5164 = vmax.f32 %v5062, 0.0
        %v5165 = vmax.f32 %v5065, 0.0
        %v5166 = vmax.f32 %v5070, 0.0
        %v5167 = vmax.f32 %v5073, 0.0
        %v5168 = vmax.f32 %v5078, 0.0
        %v5169 = vmax.f32 %v5081, 0.0
        %v5170 = vmax.f32 %v5086, 0.0
        %v5171 = vmax.f32 %v5089, 0.0
        %v5172 = vmax.f32 %v5094, 0.0
        %v5173 = vmax.f32 %v5097, 0.0
        %v5174 = vmax.f32 %v5102, 0.0
        %v5175 = vmax.f32 %v5105, 0.0
        %v5176 = vmax.f32 %v5110, 0.0
        %v5177 = vmax.f32 %v5113, 0.0
        %v5178 = vmax.f32 %v5118, 0.0
        %v5179 = vmax.f32 %v5121, 0.0
        %v5180 = vmax.f32 %v5126, 0.0
        %v5181 = vmax.f32 %v5129, 0.0
        %v5182 = vmax.f32 %v5134, 0.0
        %v5183 = vmax.f32 %v5137, 0.0
        %v5184 = vmax.f32 %v5142, 0.0
        %v5185 = vmax.f32 %v5145, 0.0
        %v5186 = vmax.f32 %v5150, 0.0
        %v5187 = vmax.f32 %v5153, 0.0
        %v5188 = vpack.c.bf16 %v5157, %v5156
        %v5189 = vpack.c.bf16 %v5159, %v5158
        %v5190 = vpack.c.bf16 %v5161, %v5160
        %v5191 = vpack.c.bf16 %v5163, %v5162
        %v5192 = vpack.c.bf16 %v5165, %v5164
        %v5193 = vpack.c.bf16 %v5167, %v5166
        %v5194 = vpack.c.bf16 %v5169, %v5168
        %v5195 = vpack.c.bf16 %v5171, %v5170
        %v5196 = vpack.c.bf16 %v5173, %v5172
        %v5197 = vpack.c.bf16 %v5175, %v5174
        %v5198 = vpack.c.bf16 %v5177, %v5176
        %v5199 = vpack.c.bf16 %v5179, %v5178
        %v5200 = vpack.c.bf16 %v5181, %v5180
        %v5201 = vpack.c.bf16 %v5183, %v5182
        %v5202 = vpack.c.bf16 %v5185, %v5184
        %v5203 = vpack.c.bf16 %v5187, %v5186
        %v5204 = vld [vmem:[%s3] sm:$0xff]
        %v5205 = vld [vmem:[%s3 + $0x8] sm:$0xff]
        %v5206 = vld [vmem:[%s3 + $0x10] sm:$0xff]
        %v5207 = vld [vmem:[%s3 + $0x18] sm:$0xff]
        %v5208 = vld [vmem:[%s3 + $0x20] sm:$0xff]
        %v5209 = vld [vmem:[%s3 + $0x28] sm:$0xff]
        %v5210 = vld [vmem:[%s3 + $0x30] sm:$0xff]
        %v5211 = vld [vmem:[%s3 + $0x38] sm:$0xff]
        %v5212 = vld [vmem:[%s3 + $0x40] sm:$0xff]
        %v5213 = vld [vmem:[%s3 + $0x48] sm:$0xff]
        %v5214 = vld [vmem:[%s3 + $0x50] sm:$0xff]
        %v5215 = vld [vmem:[%s3 + $0x58] sm:$0xff]
        %v5216 = vld [vmem:[%s3 + $0x60] sm:$0xff]
        %v5217 = vld [vmem:[%s3 + $0x68] sm:$0xff]
        %v5218 = vld [vmem:[%s3 + $0x70] sm:$0xff]
        %v5219 = vld [vmem:[%s3 + $0x78] sm:$0xff]
        %v5220 = vld [vmem:[%s4] sm:$0x3]
        %v5222 = vlaneseq
        %v5223 = vshrl.u32 %v5222, 7
        %v5224 = vsub.s32 0, %v5223
        %v5225 = vrot.slane %v5220, %v5224
        %v5226 = vlaneseq
        %v5227 = vshrl.u32 %v5226, 7
        %v5228 = vsub.s32 1, %v5227
        %v5229 = vrot.slane %v5220, %v5228
        %v5248 = vunpack.c.l.b16 %v5204
        %v5249 = vunpack.c.h.b16 %v5204
        %v5250 = vunpack.c.l.b16 %v5205
        %v5251 = vunpack.c.h.b16 %v5205
        %v5252 = vunpack.c.l.b16 %v5206
        %v5253 = vunpack.c.h.b16 %v5206
        %v5254 = vunpack.c.l.b16 %v5207
        %v5255 = vunpack.c.h.b16 %v5207
        %v5256 = vunpack.c.l.b16 %v5208
        %v5257 = vunpack.c.h.b16 %v5208
        %v5258 = vunpack.c.l.b16 %v5209
        %v5259 = vunpack.c.h.b16 %v5209
        %v5260 = vunpack.c.l.b16 %v5210
        %v5261 = vunpack.c.h.b16 %v5210
        %v5262 = vunpack.c.l.b16 %v5211
        %v5263 = vunpack.c.h.b16 %v5211
        %v5264 = vunpack.c.l.b16 %v5212
        %v5265 = vunpack.c.h.b16 %v5212
        %v5266 = vunpack.c.l.b16 %v5213
        %v5267 = vunpack.c.h.b16 %v5213
        %v5268 = vunpack.c.l.b16 %v5214
        %v5269 = vunpack.c.h.b16 %v5214
        %v5270 = vunpack.c.l.b16 %v5215
        %v5271 = vunpack.c.h.b16 %v5215
        %v5272 = vunpack.c.l.b16 %v5216
        %v5273 = vunpack.c.h.b16 %v5216
        %v5274 = vunpack.c.l.b16 %v5217
        %v5275 = vunpack.c.h.b16 %v5217
        %v5276 = vunpack.c.l.b16 %v5218
        %v5277 = vunpack.c.h.b16 %v5218
        %v5278 = vunpack.c.l.b16 %v5219
        %v5279 = vunpack.c.h.b16 %v5219
        %v5280 = vpack.c.b16 %v5250, %v5248
        %v5281 = vpack.c.b16 %v5251, %v5249
        %v5282 = vpack.c.b16 %v5254, %v5252
        %v5283 = vpack.c.b16 %v5255, %v5253
        %v5284 = vpack.c.b16 %v5258, %v5256
        %v5285 = vpack.c.b16 %v5259, %v5257
        %v5286 = vpack.c.b16 %v5262, %v5260
        %v5287 = vpack.c.b16 %v5263, %v5261
        %v5288 = vpack.c.b16 %v5266, %v5264
        %v5289 = vpack.c.b16 %v5267, %v5265
        %v5290 = vpack.c.b16 %v5270, %v5268
        %v5291 = vpack.c.b16 %v5271, %v5269
        %v5292 = vpack.c.b16 %v5274, %v5272
        %v5293 = vpack.c.b16 %v5275, %v5273
        %v5294 = vpack.c.b16 %v5278, %v5276
        %v5295 = vpack.c.b16 %v5279, %v5277
        %5312 = vmatprep.subr.bf16.mxu0 %v5295
        %5313 = vmatpush1.bf16.msra.mxu0 %v5294
        %5314 = vmatprep.subr.bf16.mxu0 %v5293
        %5315 = vmatpush1.bf16.msra.mxu0 %v5292
        %5316 = vmatprep.subr.bf16.mxu0 %v5291
        %5317 = vmatpush1.bf16.msra.mxu0 %v5290
        %5318 = vmatprep.subr.bf16.mxu0 %v5289
        %5319 = vmatpush1.bf16.msra.mxu0 %v5288
        %5320 = vmatprep.subr.bf16.mxu0 %v5287
        %5321 = vmatpush1.bf16.msra.mxu0 %v5286
        %5322 = vmatprep.subr.bf16.mxu0 %v5285
        %5323 = vmatpush1.bf16.msra.mxu0 %v5284
        %5324 = vmatprep.subr.bf16.mxu0 %v5283
        %5325 = vmatpush1.bf16.msra.mxu0 %v5282
        %5326 = vmatprep.subr.bf16.mxu0 %v5281
        %5327 = vmatpush1.bf16.msra.mxu0 %v5280
        %5328 = vmatprep.subr.bf16.mxu0 0
        %5329 = vmatpush2.bf16.msra.mxu0 0
        %5330 = vmatprep.subr.bf16.mxu0 0
        %5331 = vmatpush2.bf16.msra.mxu0 0
        %5332 = vmatprep.subr.bf16.mxu0 0
        %5333 = vmatpush2.bf16.msra.mxu0 0
        %5334 = vmatprep.subr.bf16.mxu0 0
        %5335 = vmatpush2.bf16.msra.mxu0 0
        %5336 = vmatprep.subr.bf16.mxu0 0
        %5337 = vmatpush2.bf16.msra.mxu0 0
        %5338 = vmatprep.subr.bf16.mxu0 0
        %5339 = vmatpush2.bf16.msra.mxu0 0
        %5340 = vmatprep.subr.bf16.mxu0 0
        %5341 = vmatpush2.bf16.msra.mxu0 0
        %5342 = vmatprep.subr.bf16.mxu0 0
        %5343 = vmatpush2.bf16.msra.mxu0 0
        %5344 = vmatprep.mubr.bf16.mxu0 0
        %5345 = vmatmul.mubr.bf16.gmra.mxu0 %v5188
        %v5346 = vpop.f32.mrf.mxu0
        %v5347 = vadd.f32 %v5225, %v5346
        %v5348 = vpop.f32.mrf.mxu0
        %v5349 = vadd.f32 %v5229, %v5348
        %v5350 = vpop.f32.mrf.mxu0
        %v5351 = vadd.f32 %v5225, %v5350
        %v5352 = vpop.f32.mrf.mxu0
        %v5353 = vadd.f32 %v5229, %v5352
        %5354 = vmatprep.mubr.bf16.mxu0 0
        %5355 = vmatmul.mubr.bf16.gmra.mxu0 %v5189
        %v5356 = vpop.f32.mrf.mxu0
        %v5357 = vadd.f32 %v5225, %v5356
        %v5358 = vpop.f32.mrf.mxu0
        %v5359 = vadd.f32 %v5229, %v5358
        %v5360 = vpop.f32.mrf.mxu0
        %v5361 = vadd.f32 %v5225, %v5360
        %v5362 = vpop.f32.mrf.mxu0
        %v5363 = vadd.f32 %v5229, %v5362
        %5364 = vmatprep.mubr.bf16.mxu0 0
        %5365 = vmatmul.mubr.bf16.gmra.mxu0 %v5190
        %v5366 = vpop.f32.mrf.mxu0
        %v5367 = vadd.f32 %v5225, %v5366
        %v5368 = vpop.f32.mrf.mxu0
        %v5369 = vadd.f32 %v5229, %v5368
        %v5370 = vpop.f32.mrf.mxu0
        %v5371 = vadd.f32 %v5225, %v5370
        %v5372 = vpop.f32.mrf.mxu0
        %v5373 = vadd.f32 %v5229, %v5372
        %5374 = vmatprep.mubr.bf16.mxu0 0
        %5375 = vmatmul.mubr.bf16.gmra.mxu0 %v5191
        %v5376 = vpop.f32.mrf.mxu0
        %v5377 = vadd.f32 %v5225, %v5376
        %v5378 = vpop.f32.mrf.mxu0
        %v5379 = vadd.f32 %v5229, %v5378
        %v5380 = vpop.f32.mrf.mxu0
        %v5381 = vadd.f32 %v5225, %v5380
        %v5382 = vpop.f32.mrf.mxu0
        %v5383 = vadd.f32 %v5229, %v5382
        %5384 = vmatprep.mubr.bf16.mxu0 0
        %5385 = vmatmul.mubr.bf16.gmra.mxu0 %v5192
        %v5386 = vpop.f32.mrf.mxu0
        %v5387 = vadd.f32 %v5225, %v5386
        %v5388 = vpop.f32.mrf.mxu0
        %v5389 = vadd.f32 %v5229, %v5388
        %v5390 = vpop.f32.mrf.mxu0
        %v5391 = vadd.f32 %v5225, %v5390
        %v5392 = vpop.f32.mrf.mxu0
        %v5393 = vadd.f32 %v5229, %v5392
        %5394 = vmatprep.mubr.bf16.mxu0 0
        %5395 = vmatmul.mubr.bf16.gmra.mxu0 %v5193
        %v5396 = vpop.f32.mrf.mxu0
        %v5397 = vadd.f32 %v5225, %v5396
        %v5398 = vpop.f32.mrf.mxu0
        %v5399 = vadd.f32 %v5229, %v5398
        %v5400 = vpop.f32.mrf.mxu0
        %v5401 = vadd.f32 %v5225, %v5400
        %v5402 = vpop.f32.mrf.mxu0
        %v5403 = vadd.f32 %v5229, %v5402
        %5404 = vmatprep.mubr.bf16.mxu0 0
        %5405 = vmatmul.mubr.bf16.gmra.mxu0 %v5194
        %v5406 = vpop.f32.mrf.mxu0
        %v5407 = vadd.f32 %v5225, %v5406
        %v5408 = vpop.f32.mrf.mxu0
        %v5409 = vadd.f32 %v5229, %v5408
        %v5410 = vpop.f32.mrf.mxu0
        %v5411 = vadd.f32 %v5225, %v5410
        %v5412 = vpop.f32.mrf.mxu0
        %v5413 = vadd.f32 %v5229, %v5412
        %5414 = vmatprep.mubr.bf16.mxu0 0
        %5415 = vmatmul.mubr.bf16.gmra.mxu0 %v5195
        %v5416 = vpop.f32.mrf.mxu0
        %v5417 = vadd.f32 %v5225, %v5416
        %v5418 = vpop.f32.mrf.mxu0
        %v5419 = vadd.f32 %v5229, %v5418
        %v5420 = vpop.f32.mrf.mxu0
        %v5421 = vadd.f32 %v5225, %v5420
        %v5422 = vpop.f32.mrf.mxu0
        %v5423 = vadd.f32 %v5229, %v5422
        %5424 = vmatprep.mubr.bf16.mxu0 0
        %5425 = vmatmul.mubr.bf16.gmra.mxu0 %v5196
        %v5426 = vpop.f32.mrf.mxu0
        %v5427 = vadd.f32 %v5225, %v5426
        %v5428 = vpop.f32.mrf.mxu0
        %v5429 = vadd.f32 %v5229, %v5428
        %v5430 = vpop.f32.mrf.mxu0
        %v5431 = vadd.f32 %v5225, %v5430
        %v5432 = vpop.f32.mrf.mxu0
        %v5433 = vadd.f32 %v5229, %v5432
        %5434 = vmatprep.mubr.bf16.mxu0 0
        %5435 = vmatmul.mubr.bf16.gmra.mxu0 %v5197
        %v5436 = vpop.f32.mrf.mxu0
        %v5437 = vadd.f32 %v5225, %v5436
        %v5438 = vpop.f32.mrf.mxu0
        %v5439 = vadd.f32 %v5229, %v5438
        %v5440 = vpop.f32.mrf.mxu0
        %v5441 = vadd.f32 %v5225, %v5440
        %v5442 = vpop.f32.mrf.mxu0
        %v5443 = vadd.f32 %v5229, %v5442
        %5444 = vmatprep.mubr.bf16.mxu0 0
        %5445 = vmatmul.mubr.bf16.gmra.mxu0 %v5198
        %v5446 = vpop.f32.mrf.mxu0
        %v5447 = vadd.f32 %v5225, %v5446
        %v5448 = vpop.f32.mrf.mxu0
        %v5449 = vadd.f32 %v5229, %v5448
        %v5450 = vpop.f32.mrf.mxu0
        %v5451 = vadd.f32 %v5225, %v5450
        %v5452 = vpop.f32.mrf.mxu0
        %v5453 = vadd.f32 %v5229, %v5452
        %5454 = vmatprep.mubr.bf16.mxu0 0
        %5455 = vmatmul.mubr.bf16.gmra.mxu0 %v5199
        %v5456 = vpop.f32.mrf.mxu0
        %v5457 = vadd.f32 %v5225, %v5456
        %v5458 = vpop.f32.mrf.mxu0
        %v5459 = vadd.f32 %v5229, %v5458
        %v5460 = vpop.f32.mrf.mxu0
        %v5461 = vadd.f32 %v5225, %v5460
        %v5462 = vpop.f32.mrf.mxu0
        %v5463 = vadd.f32 %v5229, %v5462
        %5464 = vmatprep.mubr.bf16.mxu0 0
        %5465 = vmatmul.mubr.bf16.gmra.mxu0 %v5200
        %v5466 = vpop.f32.mrf.mxu0
        %v5467 = vadd.f32 %v5225, %v5466
        %v5468 = vpop.f32.mrf.mxu0
        %v5469 = vadd.f32 %v5229, %v5468
        %v5470 = vpop.f32.mrf.mxu0
        %v5471 = vadd.f32 %v5225, %v5470
        %v5472 = vpop.f32.mrf.mxu0
        %v5473 = vadd.f32 %v5229, %v5472
        %5474 = vmatprep.mubr.bf16.mxu0 0
        %5475 = vmatmul.mubr.bf16.gmra.mxu0 %v5201
        %v5476 = vpop.f32.mrf.mxu0
        %v5477 = vadd.f32 %v5225, %v5476
        %v5478 = vpop.f32.mrf.mxu0
        %v5479 = vadd.f32 %v5229, %v5478
        %v5480 = vpop.f32.mrf.mxu0
        %v5481 = vadd.f32 %v5225, %v5480
        %v5482 = vpop.f32.mrf.mxu0
        %v5483 = vadd.f32 %v5229, %v5482
        %5484 = vmatprep.mubr.bf16.mxu0 0
        %5485 = vmatmul.mubr.bf16.gmra.mxu0 %v5202
        %v5486 = vpop.f32.mrf.mxu0
        %v5487 = vadd.f32 %v5225, %v5486
        %v5488 = vpop.f32.mrf.mxu0
        %v5489 = vadd.f32 %v5229, %v5488
        %v5490 = vpop.f32.mrf.mxu0
        %v5491 = vadd.f32 %v5225, %v5490
        %v5492 = vpop.f32.mrf.mxu0
        %v5493 = vadd.f32 %v5229, %v5492
        %5494 = vmatprep.mubr.bf16.mxu0 0
        %5495 = vmatmul.mubr.bf16.gmra.mxu0 %v5203
        %v5496 = vpop.f32.mrf.mxu0
        %v5497 = vadd.f32 %v5225, %v5496
        %v5498 = vpop.f32.mrf.mxu0
        %v5499 = vadd.f32 %v5229, %v5498
        %v5500 = vpop.f32.mrf.mxu0
        %v5501 = vadd.f32 %v5225, %v5500
        %v5502 = vpop.f32.mrf.mxu0
        %v5503 = vadd.f32 %v5229, %v5502
        %5504 = vdwg.mxu0
        %v5505 = vmax.f32 %v5347, %v5349
        %5506 = vmax.xlane.f32.xlu0 %v5505
        %v5507 = vpop.xlane.xlu0 %5506
        %v5508 = vmax.f32 %v5351, %v5353
        %5509 = vmax.xlane.f32.xlu0 %v5508
        %v5510 = vpop.xlane.xlu0 %5509
        %v5511 = vmax.f32 %v5357, %v5359
        %5512 = vmax.xlane.f32.xlu0 %v5511
        %v5513 = vpop.xlane.xlu0 %5512
        %v5514 = vmax.f32 %v5361, %v5363
        %5515 = vmax.xlane.f32.xlu0 %v5514
        %v5516 = vpop.xlane.xlu0 %5515
        %v5517 = vmax.f32 %v5367, %v5369
        %5518 = vmax.xlane.f32.xlu0 %v5517
        %v5519 = vpop.xlane.xlu0 %5518
        %v5520 = vmax.f32 %v5371, %v5373
        %5521 = vmax.xlane.f32.xlu0 %v5520
        %v5522 = vpop.xlane.xlu0 %5521
        %v5523 = vmax.f32 %v5377, %v5379
        %5524 = vmax.xlane.f32.xlu0 %v5523
        %v5525 = vpop.xlane.xlu0 %5524
        %v5526 = vmax.f32 %v5381, %v5383
        %5527 = vmax.xlane.f32.xlu0 %v5526
        %v5528 = vpop.xlane.xlu0 %5527
        %v5529 = vmax.f32 %v5387, %v5389
        %5530 = vmax.xlane.f32.xlu0 %v5529
        %v5531 = vpop.xlane.xlu0 %5530
        %v5532 = vmax.f32 %v5391, %v5393
        %5533 = vmax.xlane.f32.xlu0 %v5532
        %v5534 = vpop.xlane.xlu0 %5533
        %v5535 = vmax.f32 %v5397, %v5399
        %5536 = vmax.xlane.f32.xlu0 %v5535
        %v5537 = vpop.xlane.xlu0 %5536
        %v5538 = vmax.f32 %v5401, %v5403
        %5539 = vmax.xlane.f32.xlu0 %v5538
        %v5540 = vpop.xlane.xlu0 %5539
        %v5541 = vmax.f32 %v5407, %v5409
        %5542 = vmax.xlane.f32.xlu0 %v5541
        %v5543 = vpop.xlane.xlu0 %5542
        %v5544 = vmax.f32 %v5411, %v5413
        %5545 = vmax.xlane.f32.xlu0 %v5544
        %v5546 = vpop.xlane.xlu0 %5545
        %v5547 = vmax.f32 %v5417, %v5419
        %5548 = vmax.xlane.f32.xlu0 %v5547
        %v5549 = vpop.xlane.xlu0 %5548
        %v5550 = vmax.f32 %v5421, %v5423
        %5551 = vmax.xlane.f32.xlu0 %v5550
        %v5552 = vpop.xlane.xlu0 %5551
        %v5553 = vmax.f32 %v5427, %v5429
        %5554 = vmax.xlane.f32.xlu0 %v5553
        %v5555 = vpop.xlane.xlu0 %5554
        %v5556 = vmax.f32 %v5431, %v5433
        %5557 = vmax.xlane.f32.xlu0 %v5556
        %v5558 = vpop.xlane.xlu0 %5557
        %v5559 = vmax.f32 %v5437, %v5439
        %5560 = vmax.xlane.f32.xlu0 %v5559
        %v5561 = vpop.xlane.xlu0 %5560
        %v5562 = vmax.f32 %v5441, %v5443
        %5563 = vmax.xlane.f32.xlu0 %v5562
        %v5564 = vpop.xlane.xlu0 %5563
        %v5565 = vmax.f32 %v5447, %v5449
        %5566 = vmax.xlane.f32.xlu0 %v5565
        %v5567 = vpop.xlane.xlu0 %5566
        %v5568 = vmax.f32 %v5451, %v5453
        %5569 = vmax.xlane.f32.xlu0 %v5568
        %v5570 = vpop.xlane.xlu0 %5569
        %v5571 = vmax.f32 %v5457, %v5459
        %5572 = vmax.xlane.f32.xlu0 %v5571
        %v5573 = vpop.xlane.xlu0 %5572
        %v5574 = vmax.f32 %v5461, %v5463
        %5575 = vmax.xlane.f32.xlu0 %v5574
        %v5576 = vpop.xlane.xlu0 %5575
        %v5577 = vmax.f32 %v5467, %v5469
        %5578 = vmax.xlane.f32.xlu0 %v5577
        %v5579 = vpop.xlane.xlu0 %5578
        %v5580 = vmax.f32 %v5471, %v5473
        %5581 = vmax.xlane.f32.xlu0 %v5580
        %v5582 = vpop.xlane.xlu0 %5581
        %v5583 = vmax.f32 %v5477, %v5479
        %5584 = vmax.xlane.f32.xlu0 %v5583
        %v5585 = vpop.xlane.xlu0 %5584
        %v5586 = vmax.f32 %v5481, %v5483
        %5587 = vmax.xlane.f32.xlu0 %v5586
        %v5588 = vpop.xlane.xlu0 %5587
        %v5589 = vmax.f32 %v5487, %v5489
        %5590 = vmax.xlane.f32.xlu0 %v5589
        %v5591 = vpop.xlane.xlu0 %5590
        %v5592 = vmax.f32 %v5491, %v5493
        %5593 = vmax.xlane.f32.xlu0 %v5592
        %v5594 = vpop.xlane.xlu0 %5593
        %v5595 = vmax.f32 %v5497, %v5499
        %5596 = vmax.xlane.f32.xlu0 %v5595
        %v5597 = vpop.xlane.xlu0 %5596
        %v5598 = vmax.f32 %v5501, %v5503
        %5599 = vmax.xlane.f32.xlu0 %v5598
        %v5600 = vpop.xlane.xlu0 %5599
        %v5601 = vsub.f32 %v5347, %v5507
        %v5602 = vsub.f32 %v5349, %v5507
        %v5603 = vsub.f32 %v5351, %v5510
        %v5604 = vsub.f32 %v5353, %v5510
        %v5605 = vsub.f32 %v5357, %v5513
        %v5606 = vsub.f32 %v5359, %v5513
        %v5607 = vsub.f32 %v5361, %v5516
        %v5608 = vsub.f32 %v5363, %v5516
        %v5609 = vsub.f32 %v5367, %v5519
        %v5610 = vsub.f32 %v5369, %v5519
        %v5611 = vsub.f32 %v5371, %v5522
        %v5612 = vsub.f32 %v5373, %v5522
        %v5613 = vsub.f32 %v5377, %v5525
        %v5614 = vsub.f32 %v5379, %v5525
        %v5615 = vsub.f32 %v5381, %v5528
        %v5616 = vsub.f32 %v5383, %v5528
        %v5617 = vsub.f32 %v5387, %v5531
        %v5618 = vsub.f32 %v5389, %v5531
        %v5619 = vsub.f32 %v5391, %v5534
        %v5620 = vsub.f32 %v5393, %v5534
        %v5621 = vsub.f32 %v5397, %v5537
        %v5622 = vsub.f32 %v5399, %v5537
        %v5623 = vsub.f32 %v5401, %v5540
        %v5624 = vsub.f32 %v5403, %v5540
        %v5625 = vsub.f32 %v5407, %v5543
        %v5626 = vsub.f32 %v5409, %v5543
        %v5627 = vsub.f32 %v5411, %v5546
        %v5628 = vsub.f32 %v5413, %v5546
        %v5629 = vsub.f32 %v5417, %v5549
        %v5630 = vsub.f32 %v5419, %v5549
        %v5631 = vsub.f32 %v5421, %v5552
        %v5632 = vsub.f32 %v5423, %v5552
        %v5633 = vsub.f32 %v5427, %v5555
        %v5634 = vsub.f32 %v5429, %v5555
        %v5635 = vsub.f32 %v5431, %v5558
        %v5636 = vsub.f32 %v5433, %v5558
        %v5637 = vsub.f32 %v5437, %v5561
        %v5638 = vsub.f32 %v5439, %v5561
        %v5639 = vsub.f32 %v5441, %v5564
        %v5640 = vsub.f32 %v5443, %v5564
        %v5641 = vsub.f32 %v5447, %v5567
        %v5642 = vsub.f32 %v5449, %v5567
        %v5643 = vsub.f32 %v5451, %v5570
        %v5644 = vsub.f32 %v5453, %v5570
        %v5645 = vsub.f32 %v5457, %v5573
        %v5646 = vsub.f32 %v5459, %v5573
        %v5647 = vsub.f32 %v5461, %v5576
        %v5648 = vsub.f32 %v5463, %v5576
        %v5649 = vsub.f32 %v5467, %v5579
        %v5650 = vsub.f32 %v5469, %v5579
        %v5651 = vsub.f32 %v5471, %v5582
        %v5652 = vsub.f32 %v5473, %v5582
        %v5653 = vsub.f32 %v5477, %v5585
        %v5654 = vsub.f32 %v5479, %v5585
        %v5655 = vsub.f32 %v5481, %v5588
        %v5656 = vsub.f32 %v5483, %v5588
        %v5657 = vsub.f32 %v5487, %v5591
        %v5658 = vsub.f32 %v5489, %v5591
        %v5659 = vsub.f32 %v5491, %v5594
        %v5660 = vsub.f32 %v5493, %v5594
        %v5661 = vsub.f32 %v5497, %v5597
        %v5662 = vsub.f32 %v5499, %v5597
        %v5663 = vsub.f32 %v5501, %v5600
        %v5664 = vsub.f32 %v5503, %v5600
        %v5665 = vmul.f32 %v5601, 1.442695
        %v5666 = vpow.pop %v5665
        %v5667 = vmul.f32 %v5602, 1.442695
        %v5668 = vpow.pop %v5667
        %v5669 = vmul.f32 %v5603, 1.442695
        %v5670 = vpow.pop %v5669
        %v5671 = vmul.f32 %v5604, 1.442695
        %v5672 = vpow.pop %v5671
        %v5673 = vmul.f32 %v5605, 1.442695
        %v5674 = vpow.pop %v5673
        %v5675 = vmul.f32 %v5606, 1.442695
        %v5676 = vpow.pop %v5675
        %v5677 = vmul.f32 %v5607, 1.442695
        %v5678 = vpow.pop %v5677
        %v5679 = vmul.f32 %v5608, 1.442695
        %v5680 = vpow.pop %v5679
        %v5681 = vmul.f32 %v5609, 1.442695
        %v5682 = vpow.pop %v5681
        %v5683 = vmul.f32 %v5610, 1.442695
        %v5684 = vpow.pop %v5683
        %v5685 = vmul.f32 %v5611, 1.442695
        %v5686 = vpow.pop %v5685
        %v5687 = vmul.f32 %v5612, 1.442695
        %v5688 = vpow.pop %v5687
        %v5689 = vmul.f32 %v5613, 1.442695
        %v5690 = vpow.pop %v5689
        %v5691 = vmul.f32 %v5614, 1.442695
        %v5692 = vpow.pop %v5691
        %v5693 = vmul.f32 %v5615, 1.442695
        %v5694 = vpow.pop %v5693
        %v5695 = vmul.f32 %v5616, 1.442695
        %v5696 = vpow.pop %v5695
        %v5697 = vmul.f32 %v5617, 1.442695
        %v5698 = vpow.pop %v5697
        %v5699 = vmul.f32 %v5618, 1.442695
        %v5700 = vpow.pop %v5699
        %v5701 = vmul.f32 %v5619, 1.442695
        %v5702 = vpow.pop %v5701
        %v5703 = vmul.f32 %v5620, 1.442695
        %v5704 = vpow.pop %v5703
        %v5705 = vmul.f32 %v5621, 1.442695
        %v5706 = vpow.pop %v5705
        %v5707 = vmul.f32 %v5622, 1.442695
        %v5708 = vpow.pop %v5707
        %v5709 = vmul.f32 %v5623, 1.442695
        %v5710 = vpow.pop %v5709
        %v5711 = vmul.f32 %v5624, 1.442695
        %v5712 = vpow.pop %v5711
        %v5713 = vmul.f32 %v5625, 1.442695
        %v5714 = vpow.pop %v5713
        %v5715 = vmul.f32 %v5626, 1.442695
        %v5716 = vpow.pop %v5715
        %v5717 = vmul.f32 %v5627, 1.442695
        %v5718 = vpow.pop %v5717
        %v5719 = vmul.f32 %v5628, 1.442695
        %v5720 = vpow.pop %v5719
        %v5721 = vmul.f32 %v5629, 1.442695
        %v5722 = vpow.pop %v5721
        %v5723 = vmul.f32 %v5630, 1.442695
        %v5724 = vpow.pop %v5723
        %v5725 = vmul.f32 %v5631, 1.442695
        %v5726 = vpow.pop %v5725
        %v5727 = vmul.f32 %v5632, 1.442695
        %v5728 = vpow.pop %v5727
        %v5729 = vmul.f32 %v5633, 1.442695
        %v5730 = vpow.pop %v5729
        %v5731 = vmul.f32 %v5634, 1.442695
        %v5732 = vpow.pop %v5731
        %v5733 = vmul.f32 %v5635, 1.442695
        %v5734 = vpow.pop %v5733
        %v5735 = vmul.f32 %v5636, 1.442695
        %v5736 = vpow.pop %v5735
        %v5737 = vmul.f32 %v5637, 1.442695
        %v5738 = vpow.pop %v5737
        %v5739 = vmul.f32 %v5638, 1.442695
        %v5740 = vpow.pop %v5739
        %v5741 = vmul.f32 %v5639, 1.442695
        %v5742 = vpow.pop %v5741
        %v5743 = vmul.f32 %v5640, 1.442695
        %v5744 = vpow.pop %v5743
        %v5745 = vmul.f32 %v5641, 1.442695
        %v5746 = vpow.pop %v5745
        %v5747 = vmul.f32 %v5642, 1.442695
        %v5748 = vpow.pop %v5747
        %v5749 = vmul.f32 %v5643, 1.442695
        %v5750 = vpow.pop %v5749
        %v5751 = vmul.f32 %v5644, 1.442695
        %v5752 = vpow.pop %v5751
        %v5753 = vmul.f32 %v5645, 1.442695
        %v5754 = vpow.pop %v5753
        %v5755 = vmul.f32 %v5646, 1.442695
        %v5756 = vpow.pop %v5755
        %v5757 = vmul.f32 %v5647, 1.442695
        %v5758 = vpow.pop %v5757
        %v5759 = vmul.f32 %v5648, 1.442695
        %v5760 = vpow.pop %v5759
        %v5761 = vmul.f32 %v5649, 1.442695
        %v5762 = vpow.pop %v5761
        %v5763 = vmul.f32 %v5650, 1.442695
        %v5764 = vpow.pop %v5763
        %v5765 = vmul.f32 %v5651, 1.442695
        %v5766 = vpow.pop %v5765
        %v5767 = vmul.f32 %v5652, 1.442695
        %v5768 = vpow.pop %v5767
        %v5769 = vmul.f32 %v5653, 1.442695
        %v5770 = vpow.pop %v5769
        %v5771 = vmul.f32 %v5654, 1.442695
        %v5772 = vpow.pop %v5771
        %v5773 = vmul.f32 %v5655, 1.442695
        %v5774 = vpow.pop %v5773
        %v5775 = vmul.f32 %v5656, 1.442695
        %v5776 = vpow.pop %v5775
        %v5777 = vmul.f32 %v5657, 1.442695
        %v5778 = vpow.pop %v5777
        %v5779 = vmul.f32 %v5658, 1.442695
        %v5780 = vpow.pop %v5779
        %v5781 = vmul.f32 %v5659, 1.442695
        %v5782 = vpow.pop %v5781
        %v5783 = vmul.f32 %v5660, 1.442695
        %v5784 = vpow.pop %v5783
        %v5785 = vmul.f32 %v5661, 1.442695
        %v5786 = vpow.pop %v5785
        %v5787 = vmul.f32 %v5662, 1.442695
        %v5788 = vpow.pop %v5787
        %v5789 = vmul.f32 %v5663, 1.442695
        %v5790 = vpow.pop %v5789
        %v5791 = vmul.f32 %v5664, 1.442695
        %v5792 = vpow.pop %v5791
        %v5793 = vadd.f32 %v5666, %v5668
        %5794 = vadd.xlane.f32.xlu0 %v5793
        %v5795 = vpop.xlane.xlu0 %5794
        %v5796 = vadd.f32 %v5670, %v5672
        %5797 = vadd.xlane.f32.xlu0 %v5796
        %v5798 = vpop.xlane.xlu0 %5797
        %v5799 = vadd.f32 %v5674, %v5676
        %5800 = vadd.xlane.f32.xlu0 %v5799
        %v5801 = vpop.xlane.xlu0 %5800
        %v5802 = vadd.f32 %v5678, %v5680
        %5803 = vadd.xlane.f32.xlu0 %v5802
        %v5804 = vpop.xlane.xlu0 %5803
        %v5805 = vadd.f32 %v5682, %v5684
        %5806 = vadd.xlane.f32.xlu0 %v5805
        %v5807 = vpop.xlane.xlu0 %5806
        %v5808 = vadd.f32 %v5686, %v5688
        %5809 = vadd.xlane.f32.xlu0 %v5808
        %v5810 = vpop.xlane.xlu0 %5809
        %v5811 = vadd.f32 %v5690, %v5692
        %5812 = vadd.xlane.f32.xlu0 %v5811
        %v5813 = vpop.xlane.xlu0 %5812
        %v5814 = vadd.f32 %v5694, %v5696
        %5815 = vadd.xlane.f32.xlu0 %v5814
        %v5816 = vpop.xlane.xlu0 %5815
        %v5817 = vadd.f32 %v5698, %v5700
        %5818 = vadd.xlane.f32.xlu0 %v5817
        %v5819 = vpop.xlane.xlu0 %5818
        %v5820 = vadd.f32 %v5702, %v5704
        %5821 = vadd.xlane.f32.xlu0 %v5820
        %v5822 = vpop.xlane.xlu0 %5821
        %v5823 = vadd.f32 %v5706, %v5708
        %5824 = vadd.xlane.f32.xlu0 %v5823
        %v5825 = vpop.xlane.xlu0 %5824
        %v5826 = vadd.f32 %v5710, %v5712
        %5827 = vadd.xlane.f32.xlu0 %v5826
        %v5828 = vpop.xlane.xlu0 %5827
        %v5829 = vadd.f32 %v5714, %v5716
        %5830 = vadd.xlane.f32.xlu0 %v5829
        %v5831 = vpop.xlane.xlu0 %5830
        %v5832 = vadd.f32 %v5718, %v5720
        %5833 = vadd.xlane.f32.xlu0 %v5832
        %v5834 = vpop.xlane.xlu0 %5833
        %v5835 = vadd.f32 %v5722, %v5724
        %5836 = vadd.xlane.f32.xlu0 %v5835
        %v5837 = vpop.xlane.xlu0 %5836
        %v5838 = vadd.f32 %v5726, %v5728
        %5839 = vadd.xlane.f32.xlu0 %v5838
        %v5840 = vpop.xlane.xlu0 %5839
        %v5841 = vadd.f32 %v5730, %v5732
        %5842 = vadd.xlane.f32.xlu0 %v5841
        %v5843 = vpop.xlane.xlu0 %5842
        %v5844 = vadd.f32 %v5734, %v5736
        %5845 = vadd.xlane.f32.xlu0 %v5844
        %v5846 = vpop.xlane.xlu0 %5845
        %v5847 = vadd.f32 %v5738, %v5740
        %5848 = vadd.xlane.f32.xlu0 %v5847
        %v5849 = vpop.xlane.xlu0 %5848
        %v5850 = vadd.f32 %v5742, %v5744
        %5851 = vadd.xlane.f32.xlu0 %v5850
        %v5852 = vpop.xlane.xlu0 %5851
        %v5853 = vadd.f32 %v5746, %v5748
        %5854 = vadd.xlane.f32.xlu0 %v5853
        %v5855 = vpop.xlane.xlu0 %5854
        %v5856 = vadd.f32 %v5750, %v5752
        %5857 = vadd.xlane.f32.xlu0 %v5856
        %v5858 = vpop.xlane.xlu0 %5857
        %v5859 = vadd.f32 %v5754, %v5756
        %5860 = vadd.xlane.f32.xlu0 %v5859
        %v5861 = vpop.xlane.xlu0 %5860
        %v5862 = vadd.f32 %v5758, %v5760
        %5863 = vadd.xlane.f32.xlu0 %v5862
        %v5864 = vpop.xlane.xlu0 %5863
        %v5865 = vadd.f32 %v5762, %v5764
        %5866 = vadd.xlane.f32.xlu0 %v5865
        %v5867 = vpop.xlane.xlu0 %5866
        %v5868 = vadd.f32 %v5766, %v5768
        %5869 = vadd.xlane.f32.xlu0 %v5868
        %v5870 = vpop.xlane.xlu0 %5869
        %v5871 = vadd.f32 %v5770, %v5772
        %5872 = vadd.xlane.f32.xlu0 %v5871
        %v5873 = vpop.xlane.xlu0 %5872
        %v5874 = vadd.f32 %v5774, %v5776
        %5875 = vadd.xlane.f32.xlu0 %v5874
        %v5876 = vpop.xlane.xlu0 %5875
        %v5877 = vadd.f32 %v5778, %v5780
        %5878 = vadd.xlane.f32.xlu0 %v5877
        %v5879 = vpop.xlane.xlu0 %5878
        %v5880 = vadd.f32 %v5782, %v5784
        %5881 = vadd.xlane.f32.xlu0 %v5880
        %v5882 = vpop.xlane.xlu0 %5881
        %v5883 = vadd.f32 %v5786, %v5788
        %5884 = vadd.xlane.f32.xlu0 %v5883
        %v5885 = vpop.xlane.xlu0 %5884
        %v5886 = vadd.f32 %v5790, %v5792
        %5887 = vadd.xlane.f32.xlu0 %v5886
        %v5888 = vpop.xlane.xlu0 %5887
        %v5889 = vlog2.pop %v5795
        %v5890 = vmul.f32 %v5889, 0.6931472
        %v5891 = vlog2.pop %v5798
        %v5892 = vmul.f32 %v5891, 0.6931472
        %v5893 = vlog2.pop %v5801
        %v5894 = vmul.f32 %v5893, 0.6931472
        %v5895 = vlog2.pop %v5804
        %v5896 = vmul.f32 %v5895, 0.6931472
        %v5897 = vlog2.pop %v5807
        %v5898 = vmul.f32 %v5897, 0.6931472
        %v5899 = vlog2.pop %v5810
        %v5900 = vmul.f32 %v5899, 0.6931472
        %v5901 = vlog2.pop %v5813
        %v5902 = vmul.f32 %v5901, 0.6931472
        %v5903 = vlog2.pop %v5816
        %v5904 = vmul.f32 %v5903, 0.6931472
        %v5905 = vlog2.pop %v5819
        %v5906 = vmul.f32 %v5905, 0.6931472
        %v5907 = vlog2.pop %v5822
        %v5908 = vmul.f32 %v5907, 0.6931472
        %v5909 = vlog2.pop %v5825
        %v5910 = vmul.f32 %v5909, 0.6931472
        %v5911 = vlog2.pop %v5828
        %v5912 = vmul.f32 %v5911, 0.6931472
        %v5913 = vlog2.pop %v5831
        %v5914 = vmul.f32 %v5913, 0.6931472
        %v5915 = vlog2.pop %v5834
        %v5916 = vmul.f32 %v5915, 0.6931472
        %v5917 = vlog2.pop %v5837
        %v5918 = vmul.f32 %v5917, 0.6931472
        %v5919 = vlog2.pop %v5840
        %v5920 = vmul.f32 %v5919, 0.6931472
        %v5921 = vlog2.pop %v5843
        %v5922 = vmul.f32 %v5921, 0.6931472
        %v5923 = vlog2.pop %v5846
        %v5924 = vmul.f32 %v5923, 0.6931472
        %v5925 = vlog2.pop %v5849
        %v5926 = vmul.f32 %v5925, 0.6931472
        %v5927 = vlog2.pop %v5852
        %v5928 = vmul.f32 %v5927, 0.6931472
        %v5929 = vlog2.pop %v5855
        %v5930 = vmul.f32 %v5929, 0.6931472
        %v5931 = vlog2.pop %v5858
        %v5932 = vmul.f32 %v5931, 0.6931472
        %v5933 = vlog2.pop %v5861
        %v5934 = vmul.f32 %v5933, 0.6931472
        %v5935 = vlog2.pop %v5864
        %v5936 = vmul.f32 %v5935, 0.6931472
        %v5937 = vlog2.pop %v5867
        %v5938 = vmul.f32 %v5937, 0.6931472
        %v5939 = vlog2.pop %v5870
        %v5940 = vmul.f32 %v5939, 0.6931472
        %v5941 = vlog2.pop %v5873
        %v5942 = vmul.f32 %v5941, 0.6931472
        %v5943 = vlog2.pop %v5876
        %v5944 = vmul.f32 %v5943, 0.6931472
        %v5945 = vlog2.pop %v5879
        %v5946 = vmul.f32 %v5945, 0.6931472
        %v5947 = vlog2.pop %v5882
        %v5948 = vmul.f32 %v5947, 0.6931472
        %v5949 = vlog2.pop %v5885
        %v5950 = vmul.f32 %v5949, 0.6931472
        %v5951 = vlog2.pop %v5888
        %v5952 = vmul.f32 %v5951, 0.6931472
        %v5953 = vsub.f32 %v5601, %v5890
        %v5954 = vsub.f32 %v5602, %v5890
        %v5955 = vsub.f32 %v5603, %v5892
        %v5956 = vsub.f32 %v5604, %v5892
        %v5957 = vsub.f32 %v5605, %v5894
        %v5958 = vsub.f32 %v5606, %v5894
        %v5959 = vsub.f32 %v5607, %v5896
        %v5960 = vsub.f32 %v5608, %v5896
        %v5961 = vsub.f32 %v5609, %v5898
        %v5962 = vsub.f32 %v5610, %v5898
        %v5963 = vsub.f32 %v5611, %v5900
        %v5964 = vsub.f32 %v5612, %v5900
        %v5965 = vsub.f32 %v5613, %v5902
        %v5966 = vsub.f32 %v5614, %v5902
        %v5967 = vsub.f32 %v5615, %v5904
        %v5968 = vsub.f32 %v5616, %v5904
        %v5969 = vsub.f32 %v5617, %v5906
        %v5970 = vsub.f32 %v5618, %v5906
        %v5971 = vsub.f32 %v5619, %v5908
        %v5972 = vsub.f32 %v5620, %v5908
        %v5973 = vsub.f32 %v5621, %v5910
        %v5974 = vsub.f32 %v5622, %v5910
        %v5975 = vsub.f32 %v5623, %v5912
        %v5976 = vsub.f32 %v5624, %v5912
        %v5977 = vsub.f32 %v5625, %v5914
        %v5978 = vsub.f32 %v5626, %v5914
        %v5979 = vsub.f32 %v5627, %v5916
        %v5980 = vsub.f32 %v5628, %v5916
        %v5981 = vsub.f32 %v5629, %v5918
        %v5982 = vsub.f32 %v5630, %v5918
        %v5983 = vsub.f32 %v5631, %v5920
        %v5984 = vsub.f32 %v5632, %v5920
        %v5985 = vsub.f32 %v5633, %v5922
        %v5986 = vsub.f32 %v5634, %v5922
        %v5987 = vsub.f32 %v5635, %v5924
        %v5988 = vsub.f32 %v5636, %v5924
        %v5989 = vsub.f32 %v5637, %v5926
        %v5990 = vsub.f32 %v5638, %v5926
        %v5991 = vsub.f32 %v5639, %v5928
        %v5992 = vsub.f32 %v5640, %v5928
        %v5993 = vsub.f32 %v5641, %v5930
        %v5994 = vsub.f32 %v5642, %v5930
        %v5995 = vsub.f32 %v5643, %v5932
        %v5996 = vsub.f32 %v5644, %v5932
        %v5997 = vsub.f32 %v5645, %v5934
        %v5998 = vsub.f32 %v5646, %v5934
        %v5999 = vsub.f32 %v5647, %v5936
        %v6000 = vsub.f32 %v5648, %v5936
        %v6001 = vsub.f32 %v5649, %v5938
        %v6002 = vsub.f32 %v5650, %v5938
        %v6003 = vsub.f32 %v5651, %v5940
        %v6004 = vsub.f32 %v5652, %v5940
        %v6005 = vsub.f32 %v5653, %v5942
        %v6006 = vsub.f32 %v5654, %v5942
        %v6007 = vsub.f32 %v5655, %v5944
        %v6008 = vsub.f32 %v5656, %v5944
        %v6009 = vsub.f32 %v5657, %v5946
        %v6010 = vsub.f32 %v5658, %v5946
        %v6011 = vsub.f32 %v5659, %v5948
        %v6012 = vsub.f32 %v5660, %v5948
        %v6013 = vsub.f32 %v5661, %v5950
        %v6014 = vsub.f32 %v5662, %v5950
        %v6015 = vsub.f32 %v5663, %v5952
        %v6016 = vsub.f32 %v5664, %v5952
        %6017 = vst [vmem:[%s233] sm:$0xff] %v5953
        %6018 = vst [vmem:[%s233 + $0x8] sm:$0xff] %v5954
        %6019 = vst [vmem:[%s233 + $0x10] sm:$0xff] %v5955
        %6020 = vst [vmem:[%s233 + $0x18] sm:$0xff] %v5956
        %6021 = vst [vmem:[%s233 + $0x20] sm:$0xff] %v5957
        %6022 = vst [vmem:[%s233 + $0x28] sm:$0xff] %v5958
        %6023 = vst [vmem:[%s233 + $0x30] sm:$0xff] %v5959
        %6024 = vst [vmem:[%s233 + $0x38] sm:$0xff] %v5960
        %6025 = vst [vmem:[%s233 + $0x40] sm:$0xff] %v5961
        %6026 = vst [vmem:[%s233 + $0x48] sm:$0xff] %v5962
        %6027 = vst [vmem:[%s233 + $0x50] sm:$0xff] %v5963
        %6028 = vst [vmem:[%s233 + $0x58] sm:$0xff] %v5964
        %6029 = vst [vmem:[%s233 + $0x60] sm:$0xff] %v5965
        %6030 = vst [vmem:[%s233 + $0x68] sm:$0xff] %v5966
        %6031 = vst [vmem:[%s233 + $0x70] sm:$0xff] %v5967
        %6032 = vst [vmem:[%s233 + $0x78] sm:$0xff] %v5968
        %6033 = vst [vmem:[%s233 + $0x80] sm:$0xff] %v5969
        %6034 = vst [vmem:[%s233 + $0x88] sm:$0xff] %v5970
        %6035 = vst [vmem:[%s233 + $0x90] sm:$0xff] %v5971
        %6036 = vst [vmem:[%s233 + $0x98] sm:$0xff] %v5972
        %6037 = vst [vmem:[%s233 + $0xa0] sm:$0xff] %v5973
        %6038 = vst [vmem:[%s233 + $0xa8] sm:$0xff] %v5974
        %6039 = vst [vmem:[%s233 + $0xb0] sm:$0xff] %v5975
        %6040 = vst [vmem:[%s233 + $0xb8] sm:$0xff] %v5976
        %6041 = vst [vmem:[%s233 + $0xc0] sm:$0xff] %v5977
        %6042 = vst [vmem:[%s233 + $0xc8] sm:$0xff] %v5978
        %6043 = vst [vmem:[%s233 + $0xd0] sm:$0xff] %v5979
        %6044 = vst [vmem:[%s233 + $0xd8] sm:$0xff] %v5980
        %6045 = vst [vmem:[%s233 + $0xe0] sm:$0xff] %v5981
        %6046 = vst [vmem:[%s233 + $0xe8] sm:$0xff] %v5982
        %6047 = vst [vmem:[%s233 + $0xf0] sm:$0xff] %v5983
        %6048 = vst [vmem:[%s233 + $0xf8] sm:$0xff] %v5984
        %6049 = vst [vmem:[%s233 + $0x100] sm:$0xff] %v5985
        %6050 = vst [vmem:[%s233 + $0x108] sm:$0xff] %v5986
        %6051 = vst [vmem:[%s233 + $0x110] sm:$0xff] %v5987
        %6052 = vst [vmem:[%s233 + $0x118] sm:$0xff] %v5988
        %6053 = vst [vmem:[%s233 + $0x120] sm:$0xff] %v5989
        %6054 = vst [vmem:[%s233 + $0x128] sm:$0xff] %v5990
        %6055 = vst [vmem:[%s233 + $0x130] sm:$0xff] %v5991
        %6056 = vst [vmem:[%s233 + $0x138] sm:$0xff] %v5992
        %6057 = vst [vmem:[%s233 + $0x140] sm:$0xff] %v5993
        %6058 = vst [vmem:[%s233 + $0x148] sm:$0xff] %v5994
        %6059 = vst [vmem:[%s233 + $0x150] sm:$0xff] %v5995
        %6060 = vst [vmem:[%s233 + $0x158] sm:$0xff] %v5996
        %6061 = vst [vmem:[%s233 + $0x160] sm:$0xff] %v5997
        %6062 = vst [vmem:[%s233 + $0x168] sm:$0xff] %v5998
        %6063 = vst [vmem:[%s233 + $0x170] sm:$0xff] %v5999
        %6064 = vst [vmem:[%s233 + $0x178] sm:$0xff] %v6000
        %6065 = vst [vmem:[%s233 + $0x180] sm:$0xff] %v6001
        %6066 = vst [vmem:[%s233 + $0x188] sm:$0xff] %v6002
        %6067 = vst [vmem:[%s233 + $0x190] sm:$0xff] %v6003
        %6068 = vst [vmem:[%s233 + $0x198] sm:$0xff] %v6004
        %6069 = vst [vmem:[%s233 + $0x1a0] sm:$0xff] %v6005
        %6070 = vst [vmem:[%s233 + $0x1a8] sm:$0xff] %v6006
        %6071 = vst [vmem:[%s233 + $0x1b0] sm:$0xff] %v6007
        %6072 = vst [vmem:[%s233 + $0x1b8] sm:$0xff] %v6008
        %6073 = vst [vmem:[%s233 + $0x1c0] sm:$0xff] %v6009
        %6074 = vst [vmem:[%s233 + $0x1c8] sm:$0xff] %v6010
        %6075 = vst [vmem:[%s233 + $0x1d0] sm:$0xff] %v6011
        %6076 = vst [vmem:[%s233 + $0x1d8] sm:$0xff] %v6012
        %6077 = vst [vmem:[%s233 + $0x1e0] sm:$0xff] %v6013
        %6078 = vst [vmem:[%s233 + $0x1e8] sm:$0xff] %v6014
        %6079 = vst [vmem:[%s233 + $0x1f0] sm:$0xff] %v6015
        %6080 = vst [vmem:[%s233 + $0x1f8] sm:$0xff] %v6016
        %s6081 = sand.u32 %s138, 1
        %s6082 = scalar_lea.sflag [#allocation4], %s6081
        %s6083 = sand.u32 %s138, 1
        %s6084 = smul.addr %s6083, 512
        %s6085 = scalar_lea.vmem [#allocation5], %s6084
        // Predicated region
        $region45: #{tpu_custom_call.1} parent=39 // pred_check
          %p6086 = pneg %p148
        $region46: #{tpu_custom_call.1} parent=39 // pred_check_branch
          %6088 = sbr.rel (%p6086) target = $region48
        $region47: #{tpu_custom_call.1} parent=39 // pred_region
          %s6089 = smul.u32 32, %s20
          %s6091 = ssub.s32 8192, 8192
          %6092 = vsyncadd %s6082, %s6091
          %s6093 = smul.addr %s6089, 2
          %s6094 = smul.addr %s6093, 128
          %s6095 = scalar_lea.hbm %s5, %s6094
          %s6096 = sshll.u32 %s6085, 4
          %s6097 = int_to_ptr.vmem [resolvable:$true] %s6096
          %6102 = dma.vmem_to_hbm [thread:$0]  %s6097, 8192, %s6095, %s6082, 256, 256, 16
        $region48: #{tpu_custom_call.1} parent=39 // pred_fallthru
          _
      $region40: #{tpu_custom_call.1} parent=5 // pred_fallthru
        _
      %p6103 = scmp.le.s32.totalorder 2, %s15
      // Predicated region
      $region49: #{tpu_custom_call.1} parent=5 // pred_check
        %p6104 = pneg %p6103
      $region50: #{tpu_custom_call.1} parent=5 // pred_check_branch
        %6106 = sbr.rel (%p6104) target = $region52
      $region51: #{tpu_custom_call.1} parent=5 // pred_region
        %s6107 = ssub.s32 %s15, 2
        // Predicated region
        $region53: #{tpu_custom_call.1} parent=51 // pred_check
          %p6108 = pneg %p154
        $region54: #{tpu_custom_call.1} parent=51 // pred_check_branch
          %6110 = sbr.rel (%p6108) target = $region56
        $region55: #{tpu_custom_call.1} parent=51 // pred_region
          %s6111 = sand.u32 %s139, 1
          %s6112 = scalar_lea.sflag [#allocation4], %s6111
          %s6113 = sand.u32 %s139, 1
          %s6114 = smul.addr %s6113, 512
          %s6115 = scalar_lea.vmem [#allocation5], %s6114
          %6116 = dma.done %s6112, 8192
        $region56: #{tpu_custom_call.1} parent=51 // pred_fallthru
          _
      $region52: #{tpu_custom_call.1} parent=5 // pred_fallthru
        _
    $region6: #{tpu_custom_call.1} parent=1 // loop_footer
      %s19 = sadd.s32 1, %s15
    $region7: #{tpu_custom_call.1} parent=1 // loop_footer_branch
      %14 = sbr.rel target = $region3
    $region8: #{tpu_custom_call.1} parent=1 // loop_exit
      _
    %6117 = vsyncpa [#allocation3], 1
    %s6118 = scalar_lea.sflag [#allocation3], 1
    %6119 = vsyncpa %s6118, 1
    %6120 = vsyncpa [#allocation4], 1
    %s6121 = scalar_lea.sflag [#allocation4], 1
    %6122 = vsyncpa %s6121, 1

</llo_original>
